<compile_context>
chip_gen: v7x
topology: tpu7x:2x2x1
jax: 0.10.0
libtpu: 0.0.40
codegen_flags: <defaults>
</compile_context>

<pallas_src>
import functools

import jax
import jax.numpy as jnp
from jax.experimental import pallas as pl
from jax.experimental.pallas import tpu as pltpu

NEG_SLOPE = 0.01   # nn.LeakyReLU() default
BN_EPS = 1e-5      # nn.BatchNorm2d default


def _round_up(x, m):
    return (x + m - 1) // m * m


# ---------------------------------------------------------------------------
# Kernel 1: in-VMEM im2col -> one deep MXU matmul -> bf16 conv tile
#           + per-tile BN partial sums taken from the f32 accumulator.
# ---------------------------------------------------------------------------
def _conv_stats_kernel(x_ref, w_ref, y_ref, stat_ref, *, th, W, Cin, H, n_hb):
    """
    x_ref    : (th+2, W+2, Cin)  bf16  halo'd input slab for this row block
    w_ref    : (9*Cin, Cpad)     bf16  weight matrix (only channels zero-padded)
    y_ref    : (th*W, Cpad)      bf16  conv output tile
    stat_ref : (2, Cpad)         f32   row0 = per-channel sum, row1 = sum(y^2)
    """
    slab = x_ref[...]                                        # (th+2, W+2, Cin)

    # im2col in VMEM: 9 shifted taps (static slices), concatenated along K.
    taps = [
        slab[dy:dy + th, dx:dx + W, :].reshape(th * W, Cin)
        for dy in range(3) for dx in range(3)
    ]
    patch = jnp.concatenate(taps, axis=-1)                   # (th*W, 9*Cin) bf16

    # Single deep matmul, f32 accumulation on the MXU.
    y = jnp.dot(patch, w_ref[...], preferred_element_type=jnp.float32)

    # BN partial stats from the f32 accumulator (before the bf16 downcast).
    if H % th != 0:
        # Last row block of each image carries (n_hb*th - H) padded rows: mask them.
        hb = pl.program_id(0) % n_hb
        rows = jax.lax.broadcasted_iota(jnp.int32, (th * W, 1), 0)
        ym = jnp.where(rows < (H - hb * th) * W, y, 0.0)
    else:
        ym = y
    stat_ref[0:1, :] = jnp.sum(ym, axis=0, keepdims=True)
    stat_ref[1:2, :] = jnp.sum(ym * ym, axis=0, keepdims=True)

    y_ref[...] = y.astype(y_ref.dtype)


# ---------------------------------------------------------------------------
# Kernel 2: BN affine (precomputed scale/shift) + LeakyReLU, streaming tiles.
# ---------------------------------------------------------------------------
def _bn_lrelu_kernel(y_ref, scale_ref, shift_ref, o_ref):
    z = y_ref[...].astype(jnp.float32) * scale_ref[...] + shift_ref[...]
    o_ref[...] = jnp.where(z >= 0, z, NEG_SLOPE * z).astype(o_ref.dtype)


# ---------------------------------------------------------------------------
# One Conv -> BN -> LeakyReLU layer. x is NHWC; returns NHWC in `out_dtype`.
# ---------------------------------------------------------------------------
def _layer(x_nhwc, w, gamma, beta, out_dtype):
    N, H, W, Cin = x_nhwc.shape
    Cout = w.shape[-1]
    K = 9 * Cin                        # contraction depth; NOT padded in HBM
    Cpad = _round_up(Cout, 128)        # lane-dense output / MXU N dim

    th = min(max(1, 512 // W), H)      # image rows per conv tile (~512 pixels)
    n_hb = pl.cdiv(H, th)
    Hpad = n_hb * th
    tm = th * W                        # output pixels per conv tile
    NB = N * n_hb                      # conv grid size
    M = N * H * W                      # real pixel count (for batch statistics)

    # Wrapper-side prep (~1.1x input bytes): reflect-pad H/W by 1, pad the bottom
    # to a row-tile multiple, then lay rows out as NB blocks that each carry their
    # 1-row halo so BlockSpec can auto-DMA (th+2, W+2, Cin) slabs, pipelined.
    xb = x_nhwc.astype(jnp.bfloat16)
    xb = jnp.pad(xb, ((0, 0), (1, 1), (1, 1), (0, 0)), mode="reflect")
    if Hpad > H:
        xb = jnp.pad(xb, ((0, 0), (0, Hpad - H), (0, 0), (0, 0)))
    xb = jnp.stack([xb[:, hb * th:hb * th + th + 2] for hb in range(n_hb)], axis=1)
    xb = xb.reshape(NB, th + 2, W + 2, Cin)

    # Weight (3,3,Cin,Cout) -> (9*Cin, Cpad): K left unpadded, channels padded (tiny).
    wmat = jnp.pad(w.reshape(K, Cout), ((0, 0), (0, Cpad - Cout))).astype(jnp.bfloat16)

    kernel = functools.partial(_conv_stats_kernel, th=th, W=W, Cin=Cin, H=H, n_hb=n_hb)
    conv, stats = pl.pallas_call(
        kernel,
        out_shape=(
            jax.ShapeDtypeStruct((NB, tm, Cpad), jnp.bfloat16),   # bf16 intermediate
            jax.ShapeDtypeStruct((NB, 2, Cpad), jnp.float32),     # per-tile partials
        ),
        grid=(NB,),
        in_specs=[
            pl.BlockSpec((None, th + 2, W + 2, Cin), lambda s: (s, 0, 0, 0)),
            # Constant-index weight: single-buffered to save VMEM headroom (v7x).
            pl.BlockSpec((K, Cpad), lambda s: (0, 0), pipeline_mode=pl.Buffered(1)),
        ],
        out_specs=(
            pl.BlockSpec((None, tm, Cpad), lambda s: (s, 0, 0)),
            pl.BlockSpec((None, 2, Cpad), lambda s: (s, 0, 0)),
        ),
        compiler_params=pltpu.CompilerParams(
            dimension_semantics=("parallel",),
            vmem_limit_bytes=64 * 1024 * 1024,
        ),
    )(xb, wmat)

    # Combine partial stats (tiny) and fold BN into scale/shift in plain JAX.
    # Padded rows/channels contribute zeros, so dividing by the real M gives exact
    # training-mode (biased) batch statistics.
    tot = jnp.sum(stats, axis=0)                         # (2, Cpad)
    mean = tot[0] / M
    var = jnp.maximum(tot[1] / M - mean * mean, 0.0)
    gpad = jnp.pad(gamma, (0, Cpad - Cout))
    bpad = jnp.pad(beta, (0, Cpad - Cout))
    scale_v = gpad * jax.lax.rsqrt(var + BN_EPS)
    shift_v = bpad - mean * scale_v
    scale = scale_v.reshape(1, Cpad).astype(jnp.float32)
    shift = shift_v.reshape(1, Cpad).astype(jnp.float32)

    # BN + LeakyReLU: pure streaming; group row blocks so each step moves ~2048
    # rows, and run in place when the output dtype matches the conv intermediate.
    kb = 1
    for d in range(1, NB + 1):
        if NB % d == 0 and d * tm <= 2048:
            kb = d
    grid2 = NB // kb
    alias = {0: 0} if jnp.dtype(out_dtype) == conv.dtype else {}

    y = pl.pallas_call(
        _bn_lrelu_kernel,
        out_shape=jax.ShapeDtypeStruct((NB, tm, Cpad), out_dtype),
        grid=(grid2,),
        in_specs=[
            pl.BlockSpec((kb, tm, Cpad), lambda i: (i, 0, 0)),
            pl.BlockSpec((1, Cpad), lambda i: (0, 0)),
            pl.BlockSpec((1, Cpad), lambda i: (0, 0)),
        ],
        out_specs=pl.BlockSpec((kb, tm, Cpad), lambda i: (i, 0, 0)),
        input_output_aliases=alias,
        compiler_params=pltpu.CompilerParams(
            dimension_semantics=("parallel",),
            vmem_limit_bytes=64 * 1024 * 1024,
        ),
    )(conv, scale, shift)

    # Undo the row-block layout and strip padding in the wrapper (fused by XLA).
    return y.reshape(N, Hpad, W, Cpad)[:, :H, :, :Cout]


def conv_block_forward(x_nchw, params):
    """Equivalent of Conv_Block.forward (training-mode BN). NCHW in / NCHW out."""
    w1, g1, b1, w2, g2, b2 = params
    x = jnp.transpose(x_nchw, (0, 2, 3, 1))              # NCHW -> NHWC
    # TODO(synk): fusing both conv layers into one pallas_call (VMEM halo exchange
    # of the layer-1 activation) only pays off while the per-tile slab stays well
    # under ~8 MiB on v7x's 64 MiB VMEM; kept as two calls with a bf16 hand-off.
    y = _layer(x, w1, g1, b1, out_dtype=jnp.bfloat16)    # layer 2 re-reads as bf16
    y = _layer(y, w2, g2, b2, out_dtype=jnp.float32)     # final block output in f32
    return jnp.transpose(y, (0, 3, 1, 2))                # NHWC -> NCHW


# ---------------------------------------------------------------------------
# Pure-XLA fp32 reference (same semantics) and parameter init.
# ---------------------------------------------------------------------------
def _ref_layer(x, w, gamma, beta):
    xp = jnp.pad(x, ((0, 0), (1, 1), (1, 1), (0, 0)), mode="reflect")
    y = jax.lax.conv_general_dilated(
        xp, w, window_strides=(1, 1), padding="VALID",
        dimension_numbers=("NHWC", "HWIO", "NHWC"))
    mean = y.mean(axis=(0, 1, 2))
    var = y.var(axis=(0, 1, 2))                          # biased, like PyTorch train mode
    z = (y - mean) * jax.lax.rsqrt(var + BN_EPS) * gamma + beta
    return jnp.where(z >= 0, z, NEG_SLOPE * z)


def conv_block_reference(x_nchw, params):
    w1, g1, b1, w2, g2, b2 = params
    x = jnp.transpose(x_nchw, (0, 2, 3, 1))
    y = _ref_layer(x, w1, g1, b1)
    y = _ref_layer(y, w2, g2, b2)
    return jnp.transpose(y, (0, 3, 1, 2))


def init_params(key, c_in, c_out):
    """Deterministic synthetic parameters (shapes match nn.Conv2d / nn.BatchNorm2d)."""
    k1, k2 = jax.random.split(key)
    # PyTorch conv weight is (Cout, Cin, kH, kW); store as (kH, kW, Cin, Cout).
    w1_t = jax.random.normal(k1, (c_out, c_in, 3, 3), jnp.float32) * 0.1
    w2_t = jax.random.normal(k2, (c_out, c_out, 3, 3), jnp.float32) * 0.1
    w1 = jnp.transpose(w1_t, (2, 3, 1, 0))
    w2 = jnp.transpose(w2_t, (2, 3, 1, 0))
    g1 = jnp.ones((c_out,), jnp.float32)
    b1 = jnp.zeros((c_out,), jnp.float32)
    g2 = jnp.ones((c_out,), jnp.float32)
    b2 = jnp.zeros((c_out,), jnp.float32)
    return (w1, g1, b1, w2, g2, b2)


if __name__ == "__main__":
    key = jax.random.PRNGKey(0)
    kx, kp = jax.random.split(key)

    N, C_IN, C_OUT, H, W = 2, 4, 8, 16, 16
    x = jax.random.normal(kx, (N, C_IN, H, W), jnp.float32)
    params = init_params(kp, C_IN, C_OUT)

    out = jax.block_until_ready(jax.jit(conv_block_forward)(x, params))
    assert out.shape == (N, C_OUT, H, W), out.shape
    assert bool(jnp.all(jnp.isfinite(out)))

    # Loose check vs an fp32 XLA reference (bf16 MXU operands / bf16 intermediates
    # introduce ~1e-2-level deviations by design).
    ref = jax.block_until_ready(conv_block_reference(x, params))
    max_err = float(jnp.max(jnp.abs(out - ref)))
    assert max_err < 0.2, f"max abs error vs reference: {max_err}"

    print("KERNEL_OK")
</pallas_src>

<mosaic_0001>
module attributes {stable_mosaic.version = 11 : i64} {
  func.func @_conv_stats_kernel(%arg0: i32, %arg1: memref<1x18x18x4xbf16, #tpu.memory_space<vmem>>, %arg2: memref<36x128xbf16, #tpu.memory_space<vmem>>, %arg3: memref<1x256x128xbf16, #tpu.memory_space<vmem>>, %arg4: memref<1x2x128xf32, #tpu.memory_space<vmem>>) attributes {dimension_semantics = [#tpu.dimension_semantics<parallel>], iteration_bounds = array<i64: 2>, scalar_prefetch = 0 : i64, scratch_operands = 0 : i64, tpu.core_type = #tpu.core_type<tc>, window_params = [{transform_indices = @transform_0, window_bounds = array<i64: 1, 18, 18, 4>}, {pipeline_mode = #tpu.pipeline_mode<synchronous>, transform_indices = @transform_1, window_bounds = array<i64: 36, 128>}, {transform_indices = @transform_2, window_bounds = array<i64: 1, 256, 128>}, {transform_indices = @transform_3, window_bounds = array<i64: 1, 2, 128>}]} {
    %c0 = arith.constant 0 : index
    %c0_0 = arith.constant 0 : index
    %c0_1 = arith.constant 0 : index
    %c0_2 = arith.constant 0 : index
    %0 = vector.load %arg1[%c0, %c0_0, %c0_1, %c0_2] : memref<1x18x18x4xbf16, #tpu.memory_space<vmem>>, vector<1x18x18x4xbf16>
    %1 = vector.shape_cast %0 : vector<1x18x18x4xbf16> to vector<18x18x4xbf16>
    %2 = vector.extract_strided_slice %1 {offsets = [0, 0, 0], sizes = [16, 16, 4], strides = [1, 1, 1]} : vector<18x18x4xbf16> to vector<16x16x4xbf16>
    %3 = vector.shape_cast %2 : vector<16x16x4xbf16> to vector<256x4xbf16>
    %4 = vector.extract_strided_slice %1 {offsets = [0, 1, 0], sizes = [16, 16, 4], strides = [1, 1, 1]} : vector<18x18x4xbf16> to vector<16x16x4xbf16>
    %5 = vector.shape_cast %4 : vector<16x16x4xbf16> to vector<256x4xbf16>
    %6 = vector.extract_strided_slice %1 {offsets = [0, 2, 0], sizes = [16, 16, 4], strides = [1, 1, 1]} : vector<18x18x4xbf16> to vector<16x16x4xbf16>
    %7 = vector.shape_cast %6 : vector<16x16x4xbf16> to vector<256x4xbf16>
    %8 = vector.extract_strided_slice %1 {offsets = [1, 0, 0], sizes = [16, 16, 4], strides = [1, 1, 1]} : vector<18x18x4xbf16> to vector<16x16x4xbf16>
    %9 = vector.shape_cast %8 : vector<16x16x4xbf16> to vector<256x4xbf16>
    %10 = vector.extract_strided_slice %1 {offsets = [1, 1, 0], sizes = [16, 16, 4], strides = [1, 1, 1]} : vector<18x18x4xbf16> to vector<16x16x4xbf16>
    %11 = vector.shape_cast %10 : vector<16x16x4xbf16> to vector<256x4xbf16>
    %12 = vector.extract_strided_slice %1 {offsets = [1, 2, 0], sizes = [16, 16, 4], strides = [1, 1, 1]} : vector<18x18x4xbf16> to vector<16x16x4xbf16>
    %13 = vector.shape_cast %12 : vector<16x16x4xbf16> to vector<256x4xbf16>
    %14 = vector.extract_strided_slice %1 {offsets = [2, 0, 0], sizes = [16, 16, 4], strides = [1, 1, 1]} : vector<18x18x4xbf16> to vector<16x16x4xbf16>
    %15 = vector.shape_cast %14 : vector<16x16x4xbf16> to vector<256x4xbf16>
    %16 = vector.extract_strided_slice %1 {offsets = [2, 1, 0], sizes = [16, 16, 4], strides = [1, 1, 1]} : vector<18x18x4xbf16> to vector<16x16x4xbf16>
    %17 = vector.shape_cast %16 : vector<16x16x4xbf16> to vector<256x4xbf16>
    %18 = vector.extract_strided_slice %1 {offsets = [2, 2, 0], sizes = [16, 16, 4], strides = [1, 1, 1]} : vector<18x18x4xbf16> to vector<16x16x4xbf16>
    %19 = vector.shape_cast %18 : vector<16x16x4xbf16> to vector<256x4xbf16>
    %20 = tpu.concatenate %3, %5, %7, %9, %11, %13, %15, %17, %19 in 1 : vector<256x4xbf16>, vector<256x4xbf16>, vector<256x4xbf16>, vector<256x4xbf16>, vector<256x4xbf16>, vector<256x4xbf16>, vector<256x4xbf16>, vector<256x4xbf16>, vector<256x4xbf16> -> vector<256x36xbf16>
    %c0_3 = arith.constant 0 : index
    %c0_4 = arith.constant 0 : index
    %21 = vector.load %arg2[%c0_3, %c0_4] : memref<36x128xbf16, #tpu.memory_space<vmem>>, vector<36x128xbf16>
    %cst = arith.constant dense<0.000000e+00> : vector<256x128xf32>
    %22 = tpu.matmul %20, %21, %cst {dimension_numbers = #tpu.dot_dimension_numbers<[1], [0], [0], [1], [0, 0, 1, 1], [], []>} : vector<256x36xbf16>, vector<36x128xbf16>, vector<256x128xf32> -> vector<256x128xf32>
    %cst_5 = arith.constant dense<0.000000e+00> : vector<128xf32>
    %23 = vector.multi_reduction <add>, %22, %cst_5 [0] : vector<256x128xf32> to vector<128xf32>
    %24 = vector.shape_cast %23 : vector<128xf32> to vector<1x128xf32>
    %c0_6 = arith.constant 0 : index
    %c0_7 = arith.constant 0 : index
    %c0_8 = arith.constant 0 : index
    %25 = vector.load %arg4[%c0_6, %c0_7, %c0_8] : memref<1x2x128xf32, #tpu.memory_space<vmem>>, vector<1x1x128xf32>
    %26 = vector.shape_cast %25 : vector<1x1x128xf32> to vector<1x128xf32>
    %27 = vector.shape_cast %24 : vector<1x128xf32> to vector<1x1x128xf32>
    tpu.vector_store %arg4[%c0_6, %c0_7, %c0_8], %27 {strides = array<i32>} : memref<1x2x128xf32, #tpu.memory_space<vmem>>, vector<1x1x128xf32>,
    %28 = arith.mulf %22, %22 : vector<256x128xf32>
    %cst_9 = arith.constant dense<0.000000e+00> : vector<128xf32>
    %29 = vector.multi_reduction <add>, %28, %cst_9 [0] : vector<256x128xf32> to vector<128xf32>
    %30 = vector.shape_cast %29 : vector<128xf32> to vector<1x128xf32>
    %c0_10 = arith.constant 0 : index
    %c1 = arith.constant 1 : index
    %c0_11 = arith.constant 0 : index
    %31 = vector.load %arg4[%c0_10, %c1, %c0_11] : memref<1x2x128xf32, #tpu.memory_space<vmem>>, vector<1x1x128xf32>
    %32 = vector.shape_cast %31 : vector<1x1x128xf32> to vector<1x128xf32>
    %33 = vector.shape_cast %30 : vector<1x128xf32> to vector<1x1x128xf32>
    tpu.vector_store %arg4[%c0_10, %c1, %c0_11], %33 {strides = array<i32>} : memref<1x2x128xf32, #tpu.memory_space<vmem>>, vector<1x1x128xf32>,
    %34 = arith.truncf %22 : vector<256x128xf32> to vector<256x128xbf16>
    %c0_12 = arith.constant 0 : index
    %c0_13 = arith.constant 0 : index
    %c0_14 = arith.constant 0 : index
    %35 = vector.load %arg3[%c0_12, %c0_13, %c0_14] : memref<1x256x128xbf16, #tpu.memory_space<vmem>>, vector<1x256x128xbf16>
    %36 = vector.shape_cast %35 : vector<1x256x128xbf16> to vector<256x128xbf16>
    %37 = vector.shape_cast %34 : vector<256x128xbf16> to vector<1x256x128xbf16>
    tpu.vector_store %arg3[%c0_12, %c0_13, %c0_14], %37 {strides = array<i32>} : memref<1x256x128xbf16, #tpu.memory_space<vmem>>, vector<1x256x128xbf16>,
    return
  }
  func.func @transform_0(%arg0: i32) -> (i32, i32, i32, i32) {
    %c0_i32 = arith.constant 0 : i32
    %c0_i32_0 = arith.constant 0 : i32
    %c0_i32_1 = arith.constant 0 : i32
    %c0_i32_2 = arith.constant 0 : i32
    return %arg0, %c0_i32, %c0_i32_0, %c0_i32_1 : i32, i32, i32, i32
  }
  func.func @transform_1(%arg0: i32) -> (i32, i32) {
    %c0_i32 = arith.constant 0 : i32
    %c0_i32_0 = arith.constant 0 : i32
    %c0_i32_1 = arith.constant 0 : i32
    return %c0_i32, %c0_i32_0 : i32, i32
  }
  func.func @transform_2(%arg0: i32) -> (i32, i32, i32) {
    %c0_i32 = arith.constant 0 : i32
    %c0_i32_0 = arith.constant 0 : i32
    %c0_i32_1 = arith.constant 0 : i32
    return %arg0, %c0_i32, %c0_i32_0 : i32, i32, i32
  }
  func.func @transform_3(%arg0: i32) -> (i32, i32, i32) {
    %c0_i32 = arith.constant 0 : i32
    %c0_i32_0 = arith.constant 0 : i32
    %c0_i32_1 = arith.constant 0 : i32
    return %arg0, %c0_i32, %c0_i32_0 : i32, i32, i32
  }
}

module attributes {stable_mosaic.version = 11 : i64} {
  func.func @_bn_lrelu_kernel(%arg0: i32, %arg1: memref<2x256x128xbf16, #tpu.memory_space<vmem>>, %arg2: memref<1x128xf32, #tpu.memory_space<vmem>>, %arg3: memref<1x128xf32, #tpu.memory_space<vmem>>, %arg4: memref<2x256x128xbf16, #tpu.memory_space<vmem>>) attributes {dimension_semantics = [#tpu.dimension_semantics<parallel>], iteration_bounds = array<i64: 1>, scalar_prefetch = 0 : i64, scratch_operands = 0 : i64, tpu.core_type = #tpu.core_type<tc>, window_params = [{transform_indices = @transform_0, window_bounds = array<i64: 2, 256, 128>}, {pipeline_mode = #tpu.pipeline_mode<synchronous>, transform_indices = @transform_1, window_bounds = array<i64: 1, 128>}, {pipeline_mode = #tpu.pipeline_mode<synchronous>, transform_indices = @transform_2, window_bounds = array<i64: 1, 128>}, {transform_indices = @transform_3, window_bounds = array<i64: 2, 256, 128>}]} {
    %c0 = arith.constant 0 : index
    %c0_0 = arith.constant 0 : index
    %c0_1 = arith.constant 0 : index
    %0 = vector.load %arg1[%c0, %c0_0, %c0_1] : memref<2x256x128xbf16, #tpu.memory_space<vmem>>, vector<2x256x128xbf16>
    %1 = arith.extf %0 : vector<2x256x128xbf16> to vector<2x256x128xf32>
    %c0_2 = arith.constant 0 : index
    %c0_3 = arith.constant 0 : index
    %2 = vector.load %arg2[%c0_2, %c0_3] : memref<1x128xf32, #tpu.memory_space<vmem>>, vector<1x128xf32>
    %3 = vector.shape_cast %2 : vector<1x128xf32> to vector<1x1x128xf32>
    %4 = vector.broadcast %3 : vector<1x1x128xf32> to vector<2x256x128xf32>
    %5 = arith.mulf %1, %4 : vector<2x256x128xf32>
    %c0_4 = arith.constant 0 : index
    %c0_5 = arith.constant 0 : index
    %6 = vector.load %arg3[%c0_4, %c0_5] : memref<1x128xf32, #tpu.memory_space<vmem>>, vector<1x128xf32>
    %7 = vector.shape_cast %6 : vector<1x128xf32> to vector<1x1x128xf32>
    %8 = vector.broadcast %7 : vector<1x1x128xf32> to vector<2x256x128xf32>
    %9 = arith.addf %5, %8 : vector<2x256x128xf32>
    %cst = arith.constant 0.000000e+00 : f32
    %10 = vector.broadcast %cst : f32 to vector<2x256x128xf32>
    %11 = arith.cmpf oge, %9, %10 : vector<2x256x128xf32>
    %cst_6 = arith.constant 0.00999999977 : f32
    %12 = vector.broadcast %cst_6 : f32 to vector<2x256x128xf32>
    %13 = arith.mulf %12, %9 : vector<2x256x128xf32>
    %14 = arith.select %11, %9, %13 : vector<2x256x128xi1>, vector<2x256x128xf32>
    %15 = arith.truncf %14 : vector<2x256x128xf32> to vector<2x256x128xbf16>
    %c0_7 = arith.constant 0 : index
    %c0_8 = arith.constant 0 : index
    %c0_9 = arith.constant 0 : index
    %16 = vector.load %arg4[%c0_7, %c0_8, %c0_9] : memref<2x256x128xbf16, #tpu.memory_space<vmem>>, vector<2x256x128xbf16>
    tpu.vector_store %arg4[%c0_7, %c0_8, %c0_9], %15 {strides = array<i32>} : memref<2x256x128xbf16, #tpu.memory_space<vmem>>, vector<2x256x128xbf16>,
    return
  }
  func.func @transform_0(%arg0: i32) -> (i32, i32, i32) {
    %c0_i32 = arith.constant 0 : i32
    %c0_i32_0 = arith.constant 0 : i32
    %c0_i32_1 = arith.constant 0 : i32
    return %arg0, %c0_i32, %c0_i32_0 : i32, i32, i32
  }
  func.func @transform_1(%arg0: i32) -> (i32, i32) {
    %c0_i32 = arith.constant 0 : i32
    %c0_i32_0 = arith.constant 0 : i32
    %c0_i32_1 = arith.constant 0 : i32
    return %c0_i32, %c0_i32_0 : i32, i32
  }
  func.func @transform_2(%arg0: i32) -> (i32, i32) {
    %c0_i32 = arith.constant 0 : i32
    %c0_i32_0 = arith.constant 0 : i32
    %c0_i32_1 = arith.constant 0 : i32
    return %c0_i32, %c0_i32_0 : i32, i32
  }
  func.func @transform_3(%arg0: i32) -> (i32, i32, i32) {
    %c0_i32 = arith.constant 0 : i32
    %c0_i32_0 = arith.constant 0 : i32
    %c0_i32_1 = arith.constant 0 : i32
    return %arg0, %c0_i32, %c0_i32_0 : i32, i32, i32
  }
}

module attributes {stable_mosaic.version = 11 : i64} {
  func.func @_conv_stats_kernel(%arg0: i32, %arg1: memref<1x18x18x8xbf16, #tpu.memory_space<vmem>>, %arg2: memref<72x128xbf16, #tpu.memory_space<vmem>>, %arg3: memref<1x256x128xbf16, #tpu.memory_space<vmem>>, %arg4: memref<1x2x128xf32, #tpu.memory_space<vmem>>) attributes {dimension_semantics = [#tpu.dimension_semantics<parallel>], iteration_bounds = array<i64: 2>, scalar_prefetch = 0 : i64, scratch_operands = 0 : i64, tpu.core_type = #tpu.core_type<tc>, window_params = [{transform_indices = @transform_0, window_bounds = array<i64: 1, 18, 18, 8>}, {pipeline_mode = #tpu.pipeline_mode<synchronous>, transform_indices = @transform_1, window_bounds = array<i64: 72, 128>}, {transform_indices = @transform_2, window_bounds = array<i64: 1, 256, 128>}, {transform_indices = @transform_3, window_bounds = array<i64: 1, 2, 128>}]} {
    %c0 = arith.constant 0 : index
    %c0_0 = arith.constant 0 : index
    %c0_1 = arith.constant 0 : index
    %c0_2 = arith.constant 0 : index
    %0 = vector.load %arg1[%c0, %c0_0, %c0_1, %c0_2] : memref<1x18x18x8xbf16, #tpu.memory_space<vmem>>, vector<1x18x18x8xbf16>
    %1 = vector.shape_cast %0 : vector<1x18x18x8xbf16> to vector<18x18x8xbf16>
    %2 = vector.extract_strided_slice %1 {offsets = [0, 0, 0], sizes = [16, 16, 8], strides = [1, 1, 1]} : vector<18x18x8xbf16> to vector<16x16x8xbf16>
    %3 = vector.shape_cast %2 : vector<16x16x8xbf16> to vector<256x8xbf16>
    %4 = vector.extract_strided_slice %1 {offsets = [0, 1, 0], sizes = [16, 16, 8], strides = [1, 1, 1]} : vector<18x18x8xbf16> to vector<16x16x8xbf16>
    %5 = vector.shape_cast %4 : vector<16x16x8xbf16> to vector<256x8xbf16>
    %6 = vector.extract_strided_slice %1 {offsets = [0, 2, 0], sizes = [16, 16, 8], strides = [1, 1, 1]} : vector<18x18x8xbf16> to vector<16x16x8xbf16>
    %7 = vector.shape_cast %6 : vector<16x16x8xbf16> to vector<256x8xbf16>
    %8 = vector.extract_strided_slice %1 {offsets = [1, 0, 0], sizes = [16, 16, 8], strides = [1, 1, 1]} : vector<18x18x8xbf16> to vector<16x16x8xbf16>
    %9 = vector.shape_cast %8 : vector<16x16x8xbf16> to vector<256x8xbf16>
    %10 = vector.extract_strided_slice %1 {offsets = [1, 1, 0], sizes = [16, 16, 8], strides = [1, 1, 1]} : vector<18x18x8xbf16> to vector<16x16x8xbf16>
    %11 = vector.shape_cast %10 : vector<16x16x8xbf16> to vector<256x8xbf16>
    %12 = vector.extract_strided_slice %1 {offsets = [1, 2, 0], sizes = [16, 16, 8], strides = [1, 1, 1]} : vector<18x18x8xbf16> to vector<16x16x8xbf16>
    %13 = vector.shape_cast %12 : vector<16x16x8xbf16> to vector<256x8xbf16>
    %14 = vector.extract_strided_slice %1 {offsets = [2, 0, 0], sizes = [16, 16, 8], strides = [1, 1, 1]} : vector<18x18x8xbf16> to vector<16x16x8xbf16>
    %15 = vector.shape_cast %14 : vector<16x16x8xbf16> to vector<256x8xbf16>
    %16 = vector.extract_strided_slice %1 {offsets = [2, 1, 0], sizes = [16, 16, 8], strides = [1, 1, 1]} : vector<18x18x8xbf16> to vector<16x16x8xbf16>
    %17 = vector.shape_cast %16 : vector<16x16x8xbf16> to vector<256x8xbf16>
    %18 = vector.extract_strided_slice %1 {offsets = [2, 2, 0], sizes = [16, 16, 8], strides = [1, 1, 1]} : vector<18x18x8xbf16> to vector<16x16x8xbf16>
    %19 = vector.shape_cast %18 : vector<16x16x8xbf16> to vector<256x8xbf16>
    %20 = tpu.concatenate %3, %5, %7, %9, %11, %13, %15, %17, %19 in 1 : vector<256x8xbf16>, vector<256x8xbf16>, vector<256x8xbf16>, vector<256x8xbf16>, vector<256x8xbf16>, vector<256x8xbf16>, vector<256x8xbf16>, vector<256x8xbf16>, vector<256x8xbf16> -> vector<256x72xbf16>
    %c0_3 = arith.constant 0 : index
    %c0_4 = arith.constant 0 : index
    %21 = vector.load %arg2[%c0_3, %c0_4] : memref<72x128xbf16, #tpu.memory_space<vmem>>, vector<72x128xbf16>
    %cst = arith.constant dense<0.000000e+00> : vector<256x128xf32>
    %22 = tpu.matmul %20, %21, %cst {dimension_numbers = #tpu.dot_dimension_numbers<[1], [0], [0], [1], [0, 0, 1, 1], [], []>} : vector<256x72xbf16>, vector<72x128xbf16>, vector<256x128xf32> -> vector<256x128xf32>
    %cst_5 = arith.constant dense<0.000000e+00> : vector<128xf32>
    %23 = vector.multi_reduction <add>, %22, %cst_5 [0] : vector<256x128xf32> to vector<128xf32>
    %24 = vector.shape_cast %23 : vector<128xf32> to vector<1x128xf32>
    %c0_6 = arith.constant 0 : index
    %c0_7 = arith.constant 0 : index
    %c0_8 = arith.constant 0 : index
    %25 = vector.load %arg4[%c0_6, %c0_7, %c0_8] : memref<1x2x128xf32, #tpu.memory_space<vmem>>, vector<1x1x128xf32>
    %26 = vector.shape_cast %25 : vector<1x1x128xf32> to vector<1x128xf32>
    %27 = vector.shape_cast %24 : vector<1x128xf32> to vector<1x1x128xf32>
    tpu.vector_store %arg4[%c0_6, %c0_7, %c0_8], %27 {strides = array<i32>} : memref<1x2x128xf32, #tpu.memory_space<vmem>>, vector<1x1x128xf32>,
    %28 = arith.mulf %22, %22 : vector<256x128xf32>
    %cst_9 = arith.constant dense<0.000000e+00> : vector<128xf32>
    %29 = vector.multi_reduction <add>, %28, %cst_9 [0] : vector<256x128xf32> to vector<128xf32>
    %30 = vector.shape_cast %29 : vector<128xf32> to vector<1x128xf32>
    %c0_10 = arith.constant 0 : index
    %c1 = arith.constant 1 : index
    %c0_11 = arith.constant 0 : index
    %31 = vector.load %arg4[%c0_10, %c1, %c0_11] : memref<1x2x128xf32, #tpu.memory_space<vmem>>, vector<1x1x128xf32>
    %32 = vector.shape_cast %31 : vector<1x1x128xf32> to vector<1x128xf32>
    %33 = vector.shape_cast %30 : vector<1x128xf32> to vector<1x1x128xf32>
    tpu.vector_store %arg4[%c0_10, %c1, %c0_11], %33 {strides = array<i32>} : memref<1x2x128xf32, #tpu.memory_space<vmem>>, vector<1x1x128xf32>,
    %34 = arith.truncf %22 : vector<256x128xf32> to vector<256x128xbf16>
    %c0_12 = arith.constant 0 : index
    %c0_13 = arith.constant 0 : index
    %c0_14 = arith.constant 0 : index
    %35 = vector.load %arg3[%c0_12, %c0_13, %c0_14] : memref<1x256x128xbf16, #tpu.memory_space<vmem>>, vector<1x256x128xbf16>
    %36 = vector.shape_cast %35 : vector<1x256x128xbf16> to vector<256x128xbf16>
    %37 = vector.shape_cast %34 : vector<256x128xbf16> to vector<1x256x128xbf16>
    tpu.vector_store %arg3[%c0_12, %c0_13, %c0_14], %37 {strides = array<i32>} : memref<1x256x128xbf16, #tpu.memory_space<vmem>>, vector<1x256x128xbf16>,
    return
  }
  func.func @transform_0(%arg0: i32) -> (i32, i32, i32, i32) {
    %c0_i32 = arith.constant 0 : i32
    %c0_i32_0 = arith.constant 0 : i32
    %c0_i32_1 = arith.constant 0 : i32
    %c0_i32_2 = arith.constant 0 : i32
    return %arg0, %c0_i32, %c0_i32_0, %c0_i32_1 : i32, i32, i32, i32
  }
  func.func @transform_1(%arg0: i32) -> (i32, i32) {
    %c0_i32 = arith.constant 0 : i32
    %c0_i32_0 = arith.constant 0 : i32
    %c0_i32_1 = arith.constant 0 : i32
    return %c0_i32, %c0_i32_0 : i32, i32
  }
  func.func @transform_2(%arg0: i32) -> (i32, i32, i32) {
    %c0_i32 = arith.constant 0 : i32
    %c0_i32_0 = arith.constant 0 : i32
    %c0_i32_1 = arith.constant 0 : i32
    return %arg0, %c0_i32, %c0_i32_0 : i32, i32, i32
  }
  func.func @transform_3(%arg0: i32) -> (i32, i32, i32) {
    %c0_i32 = arith.constant 0 : i32
    %c0_i32_0 = arith.constant 0 : i32
    %c0_i32_1 = arith.constant 0 : i32
    return %arg0, %c0_i32, %c0_i32_0 : i32, i32, i32
  }
}

module attributes {stable_mosaic.version = 11 : i64} {
  func.func @_bn_lrelu_kernel(%arg0: i32, %arg1: memref<2x256x128xbf16, #tpu.memory_space<vmem>>, %arg2: memref<1x128xf32, #tpu.memory_space<vmem>>, %arg3: memref<1x128xf32, #tpu.memory_space<vmem>>, %arg4: memref<2x256x128xf32, #tpu.memory_space<vmem>>) attributes {dimension_semantics = [#tpu.dimension_semantics<parallel>], iteration_bounds = array<i64: 1>, scalar_prefetch = 0 : i64, scratch_operands = 0 : i64, tpu.core_type = #tpu.core_type<tc>, window_params = [{transform_indices = @transform_0, window_bounds = array<i64: 2, 256, 128>}, {pipeline_mode = #tpu.pipeline_mode<synchronous>, transform_indices = @transform_1, window_bounds = array<i64: 1, 128>}, {pipeline_mode = #tpu.pipeline_mode<synchronous>, transform_indices = @transform_2, window_bounds = array<i64: 1, 128>}, {transform_indices = @transform_3, window_bounds = array<i64: 2, 256, 128>}]} {
    %c0 = arith.constant 0 : index
    %c0_0 = arith.constant 0 : index
    %c0_1 = arith.constant 0 : index
    %0 = vector.load %arg1[%c0, %c0_0, %c0_1] : memref<2x256x128xbf16, #tpu.memory_space<vmem>>, vector<2x256x128xbf16>
    %1 = arith.extf %0 : vector<2x256x128xbf16> to vector<2x256x128xf32>
    %c0_2 = arith.constant 0 : index
    %c0_3 = arith.constant 0 : index
    %2 = vector.load %arg2[%c0_2, %c0_3] : memref<1x128xf32, #tpu.memory_space<vmem>>, vector<1x128xf32>
    %3 = vector.shape_cast %2 : vector<1x128xf32> to vector<1x1x128xf32>
    %4 = vector.broadcast %3 : vector<1x1x128xf32> to vector<2x256x128xf32>
    %5 = arith.mulf %1, %4 : vector<2x256x128xf32>
    %c0_4 = arith.constant 0 : index
    %c0_5 = arith.constant 0 : index
    %6 = vector.load %arg3[%c0_4, %c0_5] : memref<1x128xf32, #tpu.memory_space<vmem>>, vector<1x128xf32>
    %7 = vector.shape_cast %6 : vector<1x128xf32> to vector<1x1x128xf32>
    %8 = vector.broadcast %7 : vector<1x1x128xf32> to vector<2x256x128xf32>
    %9 = arith.addf %5, %8 : vector<2x256x128xf32>
    %cst = arith.constant 0.000000e+00 : f32
    %10 = vector.broadcast %cst : f32 to vector<2x256x128xf32>
    %11 = arith.cmpf oge, %9, %10 : vector<2x256x128xf32>
    %cst_6 = arith.constant 0.00999999977 : f32
    %12 = vector.broadcast %cst_6 : f32 to vector<2x256x128xf32>
    %13 = arith.mulf %12, %9 : vector<2x256x128xf32>
    %14 = arith.select %11, %9, %13 : vector<2x256x128xi1>, vector<2x256x128xf32>
    %c0_7 = arith.constant 0 : index
    %c0_8 = arith.constant 0 : index
    %c0_9 = arith.constant 0 : index
    %15 = vector.load %arg4[%c0_7, %c0_8, %c0_9] : memref<2x256x128xf32, #tpu.memory_space<vmem>>, vector<2x256x128xf32>
    tpu.vector_store %arg4[%c0_7, %c0_8, %c0_9], %14 {strides = array<i32>} : memref<2x256x128xf32, #tpu.memory_space<vmem>>, vector<2x256x128xf32>,
    return
  }
  func.func @transform_0(%arg0: i32) -> (i32, i32, i32) {
    %c0_i32 = arith.constant 0 : i32
    %c0_i32_0 = arith.constant 0 : i32
    %c0_i32_1 = arith.constant 0 : i32
    return %arg0, %c0_i32, %c0_i32_0 : i32, i32, i32
  }
  func.func @transform_1(%arg0: i32) -> (i32, i32) {
    %c0_i32 = arith.constant 0 : i32
    %c0_i32_0 = arith.constant 0 : i32
    %c0_i32_1 = arith.constant 0 : i32
    return %c0_i32, %c0_i32_0 : i32, i32
  }
  func.func @transform_2(%arg0: i32) -> (i32, i32) {
    %c0_i32 = arith.constant 0 : i32
    %c0_i32_0 = arith.constant 0 : i32
    %c0_i32_1 = arith.constant 0 : i32
    return %c0_i32, %c0_i32_0 : i32, i32
  }
  func.func @transform_3(%arg0: i32) -> (i32, i32, i32) {
    %c0_i32 = arith.constant 0 : i32
    %c0_i32_0 = arith.constant 0 : i32
    %c0_i32_1 = arith.constant 0 : i32
    return %arg0, %c0_i32, %c0_i32_0 : i32, i32, i32
  }
}

</mosaic_0001>

<llo_original>
// kernel: conv_block_forward.5
$region0: #{conv_block_forward.5}
  #allocation0 [shape = 'u32[]', space=smem, size = 0x4, offset = 0x4, fixed_abs, tag = 'smem constant byte address 0x4 - core index']
  #allocation1 [shape = 'u32[144,128]{1,0:T(1,128)}', space=vmem, size = 0x12000, scoped, tag = 'internal scratch']
  %s0 = inlined_call_operand.hbm [shape: bf16[2,256,128], index: 0, kind: input, shape index: {}, may-alias: {0,3}]
  %s1 = inlined_call_operand.hbm [shape: f32[1,128], index: 1, kind: input, shape index: {}]
  %s2 = inlined_call_operand.hbm [shape: f32[1,128], index: 2, kind: input, shape index: {}]
  %s3 = inlined_call_operand.hbm [shape: bf16[2,256,128], index: 3, kind: output, shape index: {}, may-alias: {0,3}]
  %s4 = sld [smem:[#allocation0]]
  $region34: #{conv_block_forward.5} parent=0
    _
  %s6 = ssub.s32 1, %s4
  %s7 = scalar_select 0, %s6, %s4
  $region1: #{conv_block_forward.5} parent=0
    #allocation2 [shape = 'u8[131072]{0}', space=vmem, size = 0x20000, scoped, tag = 'input window, operand 0, single buffered']
    #allocation3 [shape = 's32[1]{0}', space=sflag, size = 0x4, scoped, tag = 'scoped memory for conv_block_forward.5']
    #allocation4 [shape = 's32[1]{0}', space=sflag, size = 0x4, scoped, tag = 'scoped memory for conv_block_forward.5']
    #allocation5 [shape = 'u8[512]{0}', space=vmem, size = 0x400, scoped, tag = 'input window, operand 1, single buffered']
    #allocation6 [shape = 's32[1]{0}', space=sflag, size = 0x4, scoped, tag = 'scoped memory for conv_block_forward.5']
    #allocation7 [shape = 'u8[512]{0}', space=vmem, size = 0x400, scoped, tag = 'input window, operand 2, single buffered']
    #allocation8 [shape = 'u8[131072]{0}', space=vmem, size = 0x20000, scoped, tag = 'output window, operand 0, single buffered']
    %8 = vsyncpa [#allocation3], 0
    %9 = vsyncpa [#allocation6], 0
    %10 = vsyncpa [#allocation4], 0
    // Predicated region
    $region2: #{conv_block_forward.5} parent=1 // pred_check
      _
    $region3: #{conv_block_forward.5} parent=1 // pred_check_branch
      %12 = sbr.rel (0) target = $region5
    $region4: #{conv_block_forward.5} parent=1 // pred_region
      %s14 = ssub.s32 4096, 4096
      %15 = vsyncadd [#allocation3], %s14
      %s16 = sshll.u32 [#allocation2], 4
      %s17 = int_to_ptr.vmem [resolvable:$true] %s16
      %22 = dma.hbm_to_vmem [thread:$0]  %s0, 4096, %s17, [#allocation3], 64, 64, 4
    $region5: #{conv_block_forward.5} parent=1 // pred_fallthru
      _
    // Predicated region
    $region6: #{conv_block_forward.5} parent=1 // pred_check
      _
    $region7: #{conv_block_forward.5} parent=1 // pred_check_branch
      %24 = sbr.rel (0) target = $region9
    $region8: #{conv_block_forward.5} parent=1 // pred_region
      %s26 = ssub.s32 16, 16
      %27 = vsyncadd [#allocation6], %s26
      %s29 = sshll.u32 [#allocation5], 4
      %s30 = int_to_ptr.vmem [resolvable:$true] %s29
      %32 = dma.hbm_to_vmem [thread:$0]  %s1, 16, %s30, [#allocation6]
    $region9: #{conv_block_forward.5} parent=1 // pred_fallthru
      _
    // Predicated region
    $region10: #{conv_block_forward.5} parent=1 // pred_check
      _
    $region11: #{conv_block_forward.5} parent=1 // pred_check_branch
      %34 = sbr.rel (0) target = $region13
    $region12: #{conv_block_forward.5} parent=1 // pred_region
      %s36 = ssub.s32 16, 16
      %37 = vsyncadd [#allocation6], %s36
      %s39 = sshll.u32 [#allocation7], 4
      %s40 = int_to_ptr.vmem [resolvable:$true] %s39
      %42 = dma.hbm_to_vmem [thread:$0]  %s2, 16, %s40, [#allocation6]
    $region13: #{conv_block_forward.5} parent=1 // pred_fallthru
      _
    // Predicated region
    $region14: #{conv_block_forward.5} parent=1 // pred_check
      _
    $region15: #{conv_block_forward.5} parent=1 // pred_check_branch
      %44 = sbr.rel (0) target = $region17
    $region16: #{conv_block_forward.5} parent=1 // pred_region
      %45 = dma.done [#allocation3], 4096
    $region17: #{conv_block_forward.5} parent=1 // pred_fallthru
      _
    // Predicated region
    $region18: #{conv_block_forward.5} parent=1 // pred_check
      _
    $region19: #{conv_block_forward.5} parent=1 // pred_check_branch
      %47 = sbr.rel (0) target = $region21
    $region20: #{conv_block_forward.5} parent=1 // pred_region
      %48 = dma.done [#allocation6], 16
    $region21: #{conv_block_forward.5} parent=1 // pred_fallthru
      _
    // Predicated region
    $region22: #{conv_block_forward.5} parent=1 // pred_check
      _
    $region23: #{conv_block_forward.5} parent=1 // pred_check_branch
      %50 = sbr.rel (0) target = $region25
    $region24: #{conv_block_forward.5} parent=1 // pred_region
      %51 = dma.done [#allocation6], 16
    $region25: #{conv_block_forward.5} parent=1 // pred_fallthru
      _
    %v52 = vld [vmem:[#allocation2] sm:$0xf]
    %v53 = vld [vmem:[#allocation2 + $0x4] sm:$0xf]
    %v54 = vld [vmem:[#allocation2 + $0x8] sm:$0xf]
    %v55 = vld [vmem:[#allocation2 + $0xc] sm:$0xf]
    %v56 = vld [vmem:[#allocation2 + $0x10] sm:$0xf]
    %v57 = vld [vmem:[#allocation2 + $0x14] sm:$0xf]
    %v58 = vld [vmem:[#allocation2 + $0x18] sm:$0xf]
    %v59 = vld [vmem:[#allocation2 + $0x1c] sm:$0xf]
    %v60 = vld [vmem:[#allocation2 + $0x20] sm:$0xf]
    %v61 = vld [vmem:[#allocation2 + $0x24] sm:$0xf]
    %v62 = vld [vmem:[#allocation2 + $0x28] sm:$0xf]
    %v63 = vld [vmem:[#allocation2 + $0x2c] sm:$0xf]
    %v64 = vld [vmem:[#allocation2 + $0x30] sm:$0xf]
    %v65 = vld [vmem:[#allocation2 + $0x34] sm:$0xf]
    %v66 = vld [vmem:[#allocation2 + $0x38] sm:$0xf]
    %v67 = vld [vmem:[#allocation2 + $0x3c] sm:$0xf]
    %v68 = vld [vmem:[#allocation2 + $0x40] sm:$0xf]
    %v69 = vld [vmem:[#allocation2 + $0x44] sm:$0xf]
    %v70 = vld [vmem:[#allocation2 + $0x48] sm:$0xf]
    %v71 = vld [vmem:[#allocation2 + $0x4c] sm:$0xf]
    %v72 = vld [vmem:[#allocation2 + $0x50] sm:$0xf]
    %v73 = vld [vmem:[#allocation2 + $0x54] sm:$0xf]
    %v74 = vld [vmem:[#allocation2 + $0x58] sm:$0xf]
    %v75 = vld [vmem:[#allocation2 + $0x5c] sm:$0xf]
    %v76 = vld [vmem:[#allocation2 + $0x60] sm:$0xf]
    %v77 = vld [vmem:[#allocation2 + $0x64] sm:$0xf]
    %v78 = vld [vmem:[#allocation2 + $0x68] sm:$0xf]
    %v79 = vld [vmem:[#allocation2 + $0x6c] sm:$0xf]
    %v80 = vld [vmem:[#allocation2 + $0x70] sm:$0xf]
    %v81 = vld [vmem:[#allocation2 + $0x74] sm:$0xf]
    %v82 = vld [vmem:[#allocation2 + $0x78] sm:$0xf]
    %v83 = vld [vmem:[#allocation2 + $0x7c] sm:$0xf]
    %v84 = vld [vmem:[#allocation2 + $0x80] sm:$0xf]
    %v85 = vld [vmem:[#allocation2 + $0x84] sm:$0xf]
    %v86 = vld [vmem:[#allocation2 + $0x88] sm:$0xf]
    %v87 = vld [vmem:[#allocation2 + $0x8c] sm:$0xf]
    %v88 = vld [vmem:[#allocation2 + $0x90] sm:$0xf]
    %v89 = vld [vmem:[#allocation2 + $0x94] sm:$0xf]
    %v90 = vld [vmem:[#allocation2 + $0x98] sm:$0xf]
    %v91 = vld [vmem:[#allocation2 + $0x9c] sm:$0xf]
    %v92 = vld [vmem:[#allocation2 + $0xa0] sm:$0xf]
    %v93 = vld [vmem:[#allocation2 + $0xa4] sm:$0xf]
    %v94 = vld [vmem:[#allocation2 + $0xa8] sm:$0xf]
    %v95 = vld [vmem:[#allocation2 + $0xac] sm:$0xf]
    %v96 = vld [vmem:[#allocation2 + $0xb0] sm:$0xf]
    %v97 = vld [vmem:[#allocation2 + $0xb4] sm:$0xf]
    %v98 = vld [vmem:[#allocation2 + $0xb8] sm:$0xf]
    %v99 = vld [vmem:[#allocation2 + $0xbc] sm:$0xf]
    %v100 = vld [vmem:[#allocation2 + $0xc0] sm:$0xf]
    %v101 = vld [vmem:[#allocation2 + $0xc4] sm:$0xf]
    %v102 = vld [vmem:[#allocation2 + $0xc8] sm:$0xf]
    %v103 = vld [vmem:[#allocation2 + $0xcc] sm:$0xf]
    %v104 = vld [vmem:[#allocation2 + $0xd0] sm:$0xf]
    %v105 = vld [vmem:[#allocation2 + $0xd4] sm:$0xf]
    %v106 = vld [vmem:[#allocation2 + $0xd8] sm:$0xf]
    %v107 = vld [vmem:[#allocation2 + $0xdc] sm:$0xf]
    %v108 = vld [vmem:[#allocation2 + $0xe0] sm:$0xf]
    %v109 = vld [vmem:[#allocation2 + $0xe4] sm:$0xf]
    %v110 = vld [vmem:[#allocation2 + $0xe8] sm:$0xf]
    %v111 = vld [vmem:[#allocation2 + $0xec] sm:$0xf]
    %v112 = vld [vmem:[#allocation2 + $0xf0] sm:$0xf]
    %v113 = vld [vmem:[#allocation2 + $0xf4] sm:$0xf]
    %v114 = vld [vmem:[#allocation2 + $0xf8] sm:$0xf]
    %v115 = vld [vmem:[#allocation2 + $0xfc] sm:$0xf]
    %v116 = vunpack.c.l.bf16 %v52
    %v117 = vunpack.c.l.bf16 %v53
    %v118 = vunpack.c.l.bf16 %v54
    %v119 = vunpack.c.l.bf16 %v55
    %v120 = vunpack.c.l.bf16 %v56
    %v121 = vunpack.c.l.bf16 %v57
    %v122 = vunpack.c.l.bf16 %v58
    %v123 = vunpack.c.l.bf16 %v59
    %v124 = vunpack.c.l.bf16 %v60
    %v125 = vunpack.c.l.bf16 %v61
    %v126 = vunpack.c.l.bf16 %v62
    %v127 = vunpack.c.l.bf16 %v63
    %v128 = vunpack.c.l.bf16 %v64
    %v129 = vunpack.c.l.bf16 %v65
    %v130 = vunpack.c.l.bf16 %v66
    %v131 = vunpack.c.l.bf16 %v67
    %v132 = vunpack.c.l.bf16 %v68
    %v133 = vunpack.c.l.bf16 %v69
    %v134 = vunpack.c.l.bf16 %v70
    %v135 = vunpack.c.l.bf16 %v71
    %v136 = vunpack.c.l.bf16 %v72
    %v137 = vunpack.c.l.bf16 %v73
    %v138 = vunpack.c.l.bf16 %v74
    %v139 = vunpack.c.l.bf16 %v75
    %v140 = vunpack.c.l.bf16 %v76
    %v141 = vunpack.c.l.bf16 %v77
    %v142 = vunpack.c.l.bf16 %v78
    %v143 = vunpack.c.l.bf16 %v79
    %v144 = vunpack.c.l.bf16 %v80
    %v145 = vunpack.c.l.bf16 %v81
    %v146 = vunpack.c.l.bf16 %v82
    %v147 = vunpack.c.l.bf16 %v83
    %v148 = vunpack.c.l.bf16 %v84
    %v149 = vunpack.c.l.bf16 %v85
    %v150 = vunpack.c.l.bf16 %v86
    %v151 = vunpack.c.l.bf16 %v87
    %v152 = vunpack.c.l.bf16 %v88
    %v153 = vunpack.c.l.bf16 %v89
    %v154 = vunpack.c.l.bf16 %v90
    %v155 = vunpack.c.l.bf16 %v91
    %v156 = vunpack.c.l.bf16 %v92
    %v157 = vunpack.c.l.bf16 %v93
    %v158 = vunpack.c.l.bf16 %v94
    %v159 = vunpack.c.l.bf16 %v95
    %v160 = vunpack.c.l.bf16 %v96
    %v161 = vunpack.c.l.bf16 %v97
    %v162 = vunpack.c.l.bf16 %v98
    %v163 = vunpack.c.l.bf16 %v99
    %v164 = vunpack.c.l.bf16 %v100
    %v165 = vunpack.c.l.bf16 %v101
    %v166 = vunpack.c.l.bf16 %v102
    %v167 = vunpack.c.l.bf16 %v103
    %v168 = vunpack.c.l.bf16 %v104
    %v169 = vunpack.c.l.bf16 %v105
    %v170 = vunpack.c.l.bf16 %v106
    %v171 = vunpack.c.l.bf16 %v107
    %v172 = vunpack.c.l.bf16 %v108
    %v173 = vunpack.c.l.bf16 %v109
    %v174 = vunpack.c.l.bf16 %v110
    %v175 = vunpack.c.l.bf16 %v111
    %v176 = vunpack.c.l.bf16 %v112
    %v177 = vunpack.c.l.bf16 %v113
    %v178 = vunpack.c.l.bf16 %v114
    %v179 = vunpack.c.l.bf16 %v115
    %v180 = vld [vmem:[#allocation5] sm:$0x1]
    %v182 = vlaneseq
    %v183 = vshrl.u32 %v182, 7
    %v184 = vsub.s32 0, %v183
    %v185 = vrot.slane %v180, %v184
    %v187 = vmul.f32 %v116, %v185
    %v188 = vmul.f32 %v117, %v185
    %v189 = vmul.f32 %v118, %v185
    %v190 = vmul.f32 %v119, %v185
    %v191 = vmul.f32 %v120, %v185
    %v192 = vmul.f32 %v121, %v185
    %v193 = vmul.f32 %v122, %v185
    %v194 = vmul.f32 %v123, %v185
    %v195 = vmul.f32 %v124, %v185
    %v196 = vmul.f32 %v125, %v185
    %v197 = vmul.f32 %v126, %v185
    %v198 = vmul.f32 %v127, %v185
    %v199 = vmul.f32 %v128, %v185
    %v200 = vmul.f32 %v129, %v185
    %v201 = vmul.f32 %v130, %v185
    %v202 = vmul.f32 %v131, %v185
    %v203 = vmul.f32 %v132, %v185
    %v204 = vmul.f32 %v133, %v185
    %v205 = vmul.f32 %v134, %v185
    %v206 = vmul.f32 %v135, %v185
    %v207 = vmul.f32 %v136, %v185
    %v208 = vmul.f32 %v137, %v185
    %v209 = vmul.f32 %v138, %v185
    %v210 = vmul.f32 %v139, %v185
    %v211 = vmul.f32 %v140, %v185
    %v212 = vmul.f32 %v141, %v185
    %v213 = vmul.f32 %v142, %v185
    %v214 = vmul.f32 %v143, %v185
    %v215 = vmul.f32 %v144, %v185
    %v216 = vmul.f32 %v145, %v185
    %v217 = vmul.f32 %v146, %v185
    %v218 = vmul.f32 %v147, %v185
    %v219 = vmul.f32 %v148, %v185
    %v220 = vmul.f32 %v149, %v185
    %v221 = vmul.f32 %v150, %v185
    %v222 = vmul.f32 %v151, %v185
    %v223 = vmul.f32 %v152, %v185
    %v224 = vmul.f32 %v153, %v185
    %v225 = vmul.f32 %v154, %v185
    %v226 = vmul.f32 %v155, %v185
    %v227 = vmul.f32 %v156, %v185
    %v228 = vmul.f32 %v157, %v185
    %v229 = vmul.f32 %v158, %v185
    %v230 = vmul.f32 %v159, %v185
    %v231 = vmul.f32 %v160, %v185
    %v232 = vmul.f32 %v161, %v185
    %v233 = vmul.f32 %v162, %v185
    %v234 = vmul.f32 %v163, %v185
    %v235 = vmul.f32 %v164, %v185
    %v236 = vmul.f32 %v165, %v185
    %v237 = vmul.f32 %v166, %v185
    %v238 = vmul.f32 %v167, %v185
    %v239 = vmul.f32 %v168, %v185
    %v240 = vmul.f32 %v169, %v185
    %v241 = vmul.f32 %v170, %v185
    %v242 = vmul.f32 %v171, %v185
    %v243 = vmul.f32 %v172, %v185
    %v244 = vmul.f32 %v173, %v185
    %v245 = vmul.f32 %v174, %v185
    %v246 = vmul.f32 %v175, %v185
    %v247 = vmul.f32 %v176, %v185
    %v248 = vmul.f32 %v177, %v185
    %v249 = vmul.f32 %v178, %v185
    %v250 = vmul.f32 %v179, %v185
    %v251 = vld [vmem:[#allocation7] sm:$0x1]
    %v253 = vlaneseq
    %v254 = vshrl.u32 %v253, 7
    %v255 = vsub.s32 0, %v254
    %v256 = vrot.slane %v251, %v255
    %v258 = vadd.f32 %v187, %v256
    %v259 = vadd.f32 %v188, %v256
    %v260 = vadd.f32 %v189, %v256
    %v261 = vadd.f32 %v190, %v256
    %v262 = vadd.f32 %v191, %v256
    %v263 = vadd.f32 %v192, %v256
    %v264 = vadd.f32 %v193, %v256
    %v265 = vadd.f32 %v194, %v256
    %v266 = vadd.f32 %v195, %v256
    %v267 = vadd.f32 %v196, %v256
    %v268 = vadd.f32 %v197, %v256
    %v269 = vadd.f32 %v198, %v256
    %v270 = vadd.f32 %v199, %v256
    %v271 = vadd.f32 %v200, %v256
    %v272 = vadd.f32 %v201, %v256
    %v273 = vadd.f32 %v202, %v256
    %v274 = vadd.f32 %v203, %v256
    %v275 = vadd.f32 %v204, %v256
    %v276 = vadd.f32 %v205, %v256
    %v277 = vadd.f32 %v206, %v256
    %v278 = vadd.f32 %v207, %v256
    %v279 = vadd.f32 %v208, %v256
    %v280 = vadd.f32 %v209, %v256
    %v281 = vadd.f32 %v210, %v256
    %v282 = vadd.f32 %v211, %v256
    %v283 = vadd.f32 %v212, %v256
    %v284 = vadd.f32 %v213, %v256
    %v285 = vadd.f32 %v214, %v256
    %v286 = vadd.f32 %v215, %v256
    %v287 = vadd.f32 %v216, %v256
    %v288 = vadd.f32 %v217, %v256
    %v289 = vadd.f32 %v218, %v256
    %v290 = vadd.f32 %v219, %v256
    %v291 = vadd.f32 %v220, %v256
    %v292 = vadd.f32 %v221, %v256
    %v293 = vadd.f32 %v222, %v256
    %v294 = vadd.f32 %v223, %v256
    %v295 = vadd.f32 %v224, %v256
    %v296 = vadd.f32 %v225, %v256
    %v297 = vadd.f32 %v226, %v256
    %v298 = vadd.f32 %v227, %v256
    %v299 = vadd.f32 %v228, %v256
    %v300 = vadd.f32 %v229, %v256
    %v301 = vadd.f32 %v230, %v256
    %v302 = vadd.f32 %v231, %v256
    %v303 = vadd.f32 %v232, %v256
    %v304 = vadd.f32 %v233, %v256
    %v305 = vadd.f32 %v234, %v256
    %v306 = vadd.f32 %v235, %v256
    %v307 = vadd.f32 %v236, %v256
    %v308 = vadd.f32 %v237, %v256
    %v309 = vadd.f32 %v238, %v256
    %v310 = vadd.f32 %v239, %v256
    %v311 = vadd.f32 %v240, %v256
    %v312 = vadd.f32 %v241, %v256
    %v313 = vadd.f32 %v242, %v256
    %v314 = vadd.f32 %v243, %v256
    %v315 = vadd.f32 %v244, %v256
    %v316 = vadd.f32 %v245, %v256
    %v317 = vadd.f32 %v246, %v256
    %v318 = vadd.f32 %v247, %v256
    %v319 = vadd.f32 %v248, %v256
    %v320 = vadd.f32 %v249, %v256
    %v321 = vadd.f32 %v250, %v256
    %vm322 = vcmp.ge.f32.partialorder %v258, 0.0
    %vm323 = vcmp.ge.f32.partialorder %v259, 0.0
    %vm324 = vcmp.ge.f32.partialorder %v260, 0.0
    %vm325 = vcmp.ge.f32.partialorder %v261, 0.0
    %vm326 = vcmp.ge.f32.partialorder %v262, 0.0
    %vm327 = vcmp.ge.f32.partialorder %v263, 0.0
    %vm328 = vcmp.ge.f32.partialorder %v264, 0.0
    %vm329 = vcmp.ge.f32.partialorder %v265, 0.0
    %vm330 = vcmp.ge.f32.partialorder %v266, 0.0
    %vm331 = vcmp.ge.f32.partialorder %v267, 0.0
    %vm332 = vcmp.ge.f32.partialorder %v268, 0.0
    %vm333 = vcmp.ge.f32.partialorder %v269, 0.0
    %vm334 = vcmp.ge.f32.partialorder %v270, 0.0
    %vm335 = vcmp.ge.f32.partialorder %v271, 0.0
    %vm336 = vcmp.ge.f32.partialorder %v272, 0.0
    %vm337 = vcmp.ge.f32.partialorder %v273, 0.0
    %vm338 = vcmp.ge.f32.partialorder %v274, 0.0
    %vm339 = vcmp.ge.f32.partialorder %v275, 0.0
    %vm340 = vcmp.ge.f32.partialorder %v276, 0.0
    %vm341 = vcmp.ge.f32.partialorder %v277, 0.0
    %vm342 = vcmp.ge.f32.partialorder %v278, 0.0
    %vm343 = vcmp.ge.f32.partialorder %v279, 0.0
    %vm344 = vcmp.ge.f32.partialorder %v280, 0.0
    %vm345 = vcmp.ge.f32.partialorder %v281, 0.0
    %vm346 = vcmp.ge.f32.partialorder %v282, 0.0
    %vm347 = vcmp.ge.f32.partialorder %v283, 0.0
    %vm348 = vcmp.ge.f32.partialorder %v284, 0.0
    %vm349 = vcmp.ge.f32.partialorder %v285, 0.0
    %vm350 = vcmp.ge.f32.partialorder %v286, 0.0
    %vm351 = vcmp.ge.f32.partialorder %v287, 0.0
    %vm352 = vcmp.ge.f32.partialorder %v288, 0.0
    %vm353 = vcmp.ge.f32.partialorder %v289, 0.0
    %vm354 = vcmp.ge.f32.partialorder %v290, 0.0
    %vm355 = vcmp.ge.f32.partialorder %v291, 0.0
    %vm356 = vcmp.ge.f32.partialorder %v292, 0.0
    %vm357 = vcmp.ge.f32.partialorder %v293, 0.0
    %vm358 = vcmp.ge.f32.partialorder %v294, 0.0
    %vm359 = vcmp.ge.f32.partialorder %v295, 0.0
    %vm360 = vcmp.ge.f32.partialorder %v296, 0.0
    %vm361 = vcmp.ge.f32.partialorder %v297, 0.0
    %vm362 = vcmp.ge.f32.partialorder %v298, 0.0
    %vm363 = vcmp.ge.f32.partialorder %v299, 0.0
    %vm364 = vcmp.ge.f32.partialorder %v300, 0.0
    %vm365 = vcmp.ge.f32.partialorder %v301, 0.0
    %vm366 = vcmp.ge.f32.partialorder %v302, 0.0
    %vm367 = vcmp.ge.f32.partialorder %v303, 0.0
    %vm368 = vcmp.ge.f32.partialorder %v304, 0.0
    %vm369 = vcmp.ge.f32.partialorder %v305, 0.0
    %vm370 = vcmp.ge.f32.partialorder %v306, 0.0
    %vm371 = vcmp.ge.f32.partialorder %v307, 0.0
    %vm372 = vcmp.ge.f32.partialorder %v308, 0.0
    %vm373 = vcmp.ge.f32.partialorder %v309, 0.0
    %vm374 = vcmp.ge.f32.partialorder %v310, 0.0
    %vm375 = vcmp.ge.f32.partialorder %v311, 0.0
    %vm376 = vcmp.ge.f32.partialorder %v312, 0.0
    %vm377 = vcmp.ge.f32.partialorder %v313, 0.0
    %vm378 = vcmp.ge.f32.partialorder %v314, 0.0
    %vm379 = vcmp.ge.f32.partialorder %v315, 0.0
    %vm380 = vcmp.ge.f32.partialorder %v316, 0.0
    %vm381 = vcmp.ge.f32.partialorder %v317, 0.0
    %vm382 = vcmp.ge.f32.partialorder %v318, 0.0
    %vm383 = vcmp.ge.f32.partialorder %v319, 0.0
    %vm384 = vcmp.ge.f32.partialorder %v320, 0.0
    %vm385 = vcmp.ge.f32.partialorder %v321, 0.0
    %v386 = vmul.f32 %v258, 0.01
    %v387 = vmul.f32 %v259, 0.01
    %v388 = vmul.f32 %v260, 0.01
    %v389 = vmul.f32 %v261, 0.01
    %v390 = vmul.f32 %v262, 0.01
    %v391 = vmul.f32 %v263, 0.01
    %v392 = vmul.f32 %v264, 0.01
    %v393 = vmul.f32 %v265, 0.01
    %v394 = vmul.f32 %v266, 0.01
    %v395 = vmul.f32 %v267, 0.01
    %v396 = vmul.f32 %v268, 0.01
    %v397 = vmul.f32 %v269, 0.01
    %v398 = vmul.f32 %v270, 0.01
    %v399 = vmul.f32 %v271, 0.01
    %v400 = vmul.f32 %v272, 0.01
    %v401 = vmul.f32 %v273, 0.01
    %v402 = vmul.f32 %v274, 0.01
    %v403 = vmul.f32 %v275, 0.01
    %v404 = vmul.f32 %v276, 0.01
    %v405 = vmul.f32 %v277, 0.01
    %v406 = vmul.f32 %v278, 0.01
    %v407 = vmul.f32 %v279, 0.01
    %v408 = vmul.f32 %v280, 0.01
    %v409 = vmul.f32 %v281, 0.01
    %v410 = vmul.f32 %v282, 0.01
    %v411 = vmul.f32 %v283, 0.01
    %v412 = vmul.f32 %v284, 0.01
    %v413 = vmul.f32 %v285, 0.01
    %v414 = vmul.f32 %v286, 0.01
    %v415 = vmul.f32 %v287, 0.01
    %v416 = vmul.f32 %v288, 0.01
    %v417 = vmul.f32 %v289, 0.01
    %v418 = vmul.f32 %v290, 0.01
    %v419 = vmul.f32 %v291, 0.01
    %v420 = vmul.f32 %v292, 0.01
    %v421 = vmul.f32 %v293, 0.01
    %v422 = vmul.f32 %v294, 0.01
    %v423 = vmul.f32 %v295, 0.01
    %v424 = vmul.f32 %v296, 0.01
    %v425 = vmul.f32 %v297, 0.01
    %v426 = vmul.f32 %v298, 0.01
    %v427 = vmul.f32 %v299, 0.01
    %v428 = vmul.f32 %v300, 0.01
    %v429 = vmul.f32 %v301, 0.01
    %v430 = vmul.f32 %v302, 0.01
    %v431 = vmul.f32 %v303, 0.01
    %v432 = vmul.f32 %v304, 0.01
    %v433 = vmul.f32 %v305, 0.01
    %v434 = vmul.f32 %v306, 0.01
    %v435 = vmul.f32 %v307, 0.01
    %v436 = vmul.f32 %v308, 0.01
    %v437 = vmul.f32 %v309, 0.01
    %v438 = vmul.f32 %v310, 0.01
    %v439 = vmul.f32 %v311, 0.01
    %v440 = vmul.f32 %v312, 0.01
    %v441 = vmul.f32 %v313, 0.01
    %v442 = vmul.f32 %v314, 0.01
    %v443 = vmul.f32 %v315, 0.01
    %v444 = vmul.f32 %v316, 0.01
    %v445 = vmul.f32 %v317, 0.01
    %v446 = vmul.f32 %v318, 0.01
    %v447 = vmul.f32 %v319, 0.01
    %v448 = vmul.f32 %v320, 0.01
    %v449 = vmul.f32 %v321, 0.01
    %v450 = vsel %vm322, %v258, %v386
    %v451 = vsel %vm323, %v259, %v387
    %v452 = vsel %vm324, %v260, %v388
    %v453 = vsel %vm325, %v261, %v389
    %v454 = vsel %vm326, %v262, %v390
    %v455 = vsel %vm327, %v263, %v391
    %v456 = vsel %vm328, %v264, %v392
    %v457 = vsel %vm329, %v265, %v393
    %v458 = vsel %vm330, %v266, %v394
    %v459 = vsel %vm331, %v267, %v395
    %v460 = vsel %vm332, %v268, %v396
    %v461 = vsel %vm333, %v269, %v397
    %v462 = vsel %vm334, %v270, %v398
    %v463 = vsel %vm335, %v271, %v399
    %v464 = vsel %vm336, %v272, %v400
    %v465 = vsel %vm337, %v273, %v401
    %v466 = vsel %vm338, %v274, %v402
    %v467 = vsel %vm339, %v275, %v403
    %v468 = vsel %vm340, %v276, %v404
    %v469 = vsel %vm341, %v277, %v405
    %v470 = vsel %vm342, %v278, %v406
    %v471 = vsel %vm343, %v279, %v407
    %v472 = vsel %vm344, %v280, %v408
    %v473 = vsel %vm345, %v281, %v409
    %v474 = vsel %vm346, %v282, %v410
    %v475 = vsel %vm347, %v283, %v411
    %v476 = vsel %vm348, %v284, %v412
    %v477 = vsel %vm349, %v285, %v413
    %v478 = vsel %vm350, %v286, %v414
    %v479 = vsel %vm351, %v287, %v415
    %v480 = vsel %vm352, %v288, %v416
    %v481 = vsel %vm353, %v289, %v417
    %v482 = vsel %vm354, %v290, %v418
    %v483 = vsel %vm355, %v291, %v419
    %v484 = vsel %vm356, %v292, %v420
    %v485 = vsel %vm357, %v293, %v421
    %v486 = vsel %vm358, %v294, %v422
    %v487 = vsel %vm359, %v295, %v423
    %v488 = vsel %vm360, %v296, %v424
    %v489 = vsel %vm361, %v297, %v425
    %v490 = vsel %vm362, %v298, %v426
    %v491 = vsel %vm363, %v299, %v427
    %v492 = vsel %vm364, %v300, %v428
    %v493 = vsel %vm365, %v301, %v429
    %v494 = vsel %vm366, %v302, %v430
    %v495 = vsel %vm367, %v303, %v431
    %v496 = vsel %vm368, %v304, %v432
    %v497 = vsel %vm369, %v305, %v433
    %v498 = vsel %vm370, %v306, %v434
    %v499 = vsel %vm371, %v307, %v435
    %v500 = vsel %vm372, %v308, %v436
    %v501 = vsel %vm373, %v309, %v437
    %v502 = vsel %vm374, %v310, %v438
    %v503 = vsel %vm375, %v311, %v439
    %v504 = vsel %vm376, %v312, %v440
    %v505 = vsel %vm377, %v313, %v441
    %v506 = vsel %vm378, %v314, %v442
    %v507 = vsel %vm379, %v315, %v443
    %v508 = vsel %vm380, %v316, %v444
    %v509 = vsel %vm381, %v317, %v445
    %v510 = vsel %vm382, %v318, %v446
    %v511 = vsel %vm383, %v319, %v447
    %v512 = vsel %vm384, %v320, %v448
    %v513 = vsel %vm385, %v321, %v449
    %v514 = vpack.c.bf16 %v451, %v450
    %v515 = vpack.c.bf16 %v453, %v452
    %v516 = vpack.c.bf16 %v455, %v454
    %v517 = vpack.c.bf16 %v457, %v456
    %v518 = vpack.c.bf16 %v459, %v458
    %v519 = vpack.c.bf16 %v461, %v460
    %v520 = vpack.c.bf16 %v463, %v462
    %v521 = vpack.c.bf16 %v465, %v464
    %v522 = vpack.c.bf16 %v467, %v466
    %v523 = vpack.c.bf16 %v469, %v468
    %v524 = vpack.c.bf16 %v471, %v470
    %v525 = vpack.c.bf16 %v473, %v472
    %v526 = vpack.c.bf16 %v475, %v474
    %v527 = vpack.c.bf16 %v477, %v476
    %v528 = vpack.c.bf16 %v479, %v478
    %v529 = vpack.c.bf16 %v481, %v480
    %v530 = vpack.c.bf16 %v483, %v482
    %v531 = vpack.c.bf16 %v485, %v484
    %v532 = vpack.c.bf16 %v487, %v486
    %v533 = vpack.c.bf16 %v489, %v488
    %v534 = vpack.c.bf16 %v491, %v490
    %v535 = vpack.c.bf16 %v493, %v492
    %v536 = vpack.c.bf16 %v495, %v494
    %v537 = vpack.c.bf16 %v497, %v496
    %v538 = vpack.c.bf16 %v499, %v498
    %v539 = vpack.c.bf16 %v501, %v500
    %v540 = vpack.c.bf16 %v503, %v502
    %v541 = vpack.c.bf16 %v505, %v504
    %v542 = vpack.c.bf16 %v507, %v506
    %v543 = vpack.c.bf16 %v509, %v508
    %v544 = vpack.c.bf16 %v511, %v510
    %v545 = vpack.c.bf16 %v513, %v512
    %v578 = vunpack.c.l.b16 %v514
    %v579 = vunpack.c.h.b16 %v514
    %v580 = vunpack.c.l.b16 %v515
    %v581 = vunpack.c.h.b16 %v515
    %v582 = vunpack.c.l.b16 %v516
    %v583 = vunpack.c.h.b16 %v516
    %v584 = vunpack.c.l.b16 %v517
    %v585 = vunpack.c.h.b16 %v517
    %v586 = vunpack.c.l.b16 %v518
    %v587 = vunpack.c.h.b16 %v518
    %v588 = vunpack.c.l.b16 %v519
    %v589 = vunpack.c.h.b16 %v519
    %v590 = vunpack.c.l.b16 %v520
    %v591 = vunpack.c.h.b16 %v520
    %v592 = vunpack.c.l.b16 %v521
    %v593 = vunpack.c.h.b16 %v521
    %v594 = vunpack.c.l.b16 %v522
    %v595 = vunpack.c.h.b16 %v522
    %v596 = vunpack.c.l.b16 %v523
    %v597 = vunpack.c.h.b16 %v523
    %v598 = vunpack.c.l.b16 %v524
    %v599 = vunpack.c.h.b16 %v524
    %v600 = vunpack.c.l.b16 %v525
    %v601 = vunpack.c.h.b16 %v525
    %v602 = vunpack.c.l.b16 %v526
    %v603 = vunpack.c.h.b16 %v526
    %v604 = vunpack.c.l.b16 %v527
    %v605 = vunpack.c.h.b16 %v527
    %v606 = vunpack.c.l.b16 %v528
    %v607 = vunpack.c.h.b16 %v528
    %v608 = vunpack.c.l.b16 %v529
    %v609 = vunpack.c.h.b16 %v529
    %v610 = vunpack.c.l.b16 %v530
    %v611 = vunpack.c.h.b16 %v530
    %v612 = vunpack.c.l.b16 %v531
    %v613 = vunpack.c.h.b16 %v531
    %v614 = vunpack.c.l.b16 %v532
    %v615 = vunpack.c.h.b16 %v532
    %v616 = vunpack.c.l.b16 %v533
    %v617 = vunpack.c.h.b16 %v533
    %v618 = vunpack.c.l.b16 %v534
    %v619 = vunpack.c.h.b16 %v534
    %v620 = vunpack.c.l.b16 %v535
    %v621 = vunpack.c.h.b16 %v535
    %v622 = vunpack.c.l.b16 %v536
    %v623 = vunpack.c.h.b16 %v536
    %v624 = vunpack.c.l.b16 %v537
    %v625 = vunpack.c.h.b16 %v537
    %v626 = vunpack.c.l.b16 %v538
    %v627 = vunpack.c.h.b16 %v538
    %v628 = vunpack.c.l.b16 %v539
    %v629 = vunpack.c.h.b16 %v539
    %v630 = vunpack.c.l.b16 %v540
    %v631 = vunpack.c.h.b16 %v540
    %v632 = vunpack.c.l.b16 %v541
    %v633 = vunpack.c.h.b16 %v541
    %v634 = vunpack.c.l.b16 %v542
    %v635 = vunpack.c.h.b16 %v542
    %v636 = vunpack.c.l.b16 %v543
    %v637 = vunpack.c.h.b16 %v543
    %v638 = vunpack.c.l.b16 %v544
    %v639 = vunpack.c.h.b16 %v544
    %v640 = vunpack.c.l.b16 %v545
    %v641 = vunpack.c.h.b16 %v545
    %v642 = vpack.c.b16 %v578, %v578
    %v643 = vpack.c.b16 %v579, %v579
    %v644 = vpack.c.b16 %v580, %v580
    %v645 = vpack.c.b16 %v581, %v581
    %v646 = vpack.c.b16 %v582, %v582
    %v647 = vpack.c.b16 %v583, %v583
    %v648 = vpack.c.b16 %v584, %v584
    %v649 = vpack.c.b16 %v585, %v585
    %v650 = vpack.c.b16 %v586, %v586
    %v651 = vpack.c.b16 %v587, %v587
    %v652 = vpack.c.b16 %v588, %v588
    %v653 = vpack.c.b16 %v589, %v589
    %v654 = vpack.c.b16 %v590, %v590
    %v655 = vpack.c.b16 %v591, %v591
    %v656 = vpack.c.b16 %v592, %v592
    %v657 = vpack.c.b16 %v593, %v593
    %v658 = vpack.c.b16 %v594, %v594
    %v659 = vpack.c.b16 %v595, %v595
    %v660 = vpack.c.b16 %v596, %v596
    %v661 = vpack.c.b16 %v597, %v597
    %v662 = vpack.c.b16 %v598, %v598
    %v663 = vpack.c.b16 %v599, %v599
    %v664 = vpack.c.b16 %v600, %v600
    %v665 = vpack.c.b16 %v601, %v601
    %v666 = vpack.c.b16 %v602, %v602
    %v667 = vpack.c.b16 %v603, %v603
    %v668 = vpack.c.b16 %v604, %v604
    %v669 = vpack.c.b16 %v605, %v605
    %v670 = vpack.c.b16 %v606, %v606
    %v671 = vpack.c.b16 %v607, %v607
    %v672 = vpack.c.b16 %v608, %v608
    %v673 = vpack.c.b16 %v609, %v609
    %v674 = vpack.c.b16 %v610, %v610
    %v675 = vpack.c.b16 %v611, %v611
    %v676 = vpack.c.b16 %v612, %v612
    %v677 = vpack.c.b16 %v613, %v613
    %v678 = vpack.c.b16 %v614, %v614
    %v679 = vpack.c.b16 %v615, %v615
    %v680 = vpack.c.b16 %v616, %v616
    %v681 = vpack.c.b16 %v617, %v617
    %v682 = vpack.c.b16 %v618, %v618
    %v683 = vpack.c.b16 %v619, %v619
    %v684 = vpack.c.b16 %v620, %v620
    %v685 = vpack.c.b16 %v621, %v621
    %v686 = vpack.c.b16 %v622, %v622
    %v687 = vpack.c.b16 %v623, %v623
    %v688 = vpack.c.b16 %v624, %v624
    %v689 = vpack.c.b16 %v625, %v625
    %v690 = vpack.c.b16 %v626, %v626
    %v691 = vpack.c.b16 %v627, %v627
    %v692 = vpack.c.b16 %v628, %v628
    %v693 = vpack.c.b16 %v629, %v629
    %v694 = vpack.c.b16 %v630, %v630
    %v695 = vpack.c.b16 %v631, %v631
    %v696 = vpack.c.b16 %v632, %v632
    %v697 = vpack.c.b16 %v633, %v633
    %v698 = vpack.c.b16 %v634, %v634
    %v699 = vpack.c.b16 %v635, %v635
    %v700 = vpack.c.b16 %v636, %v636
    %v701 = vpack.c.b16 %v637, %v637
    %v702 = vpack.c.b16 %v638, %v638
    %v703 = vpack.c.b16 %v639, %v639
    %v704 = vpack.c.b16 %v640, %v640
    %v705 = vpack.c.b16 %v641, %v641
    %770 = vst [vmem:[#allocation8] sm:$0xf] %v642
    %771 = vst [vmem:[#allocation8 + $0x4] sm:$0xf] %v643
    %772 = vst [vmem:[#allocation8 + $0x8] sm:$0xf] %v644
    %773 = vst [vmem:[#allocation8 + $0xc] sm:$0xf] %v645
    %774 = vst [vmem:[#allocation8 + $0x10] sm:$0xf] %v646
    %775 = vst [vmem:[#allocation8 + $0x14] sm:$0xf] %v647
    %776 = vst [vmem:[#allocation8 + $0x18] sm:$0xf] %v648
    %777 = vst [vmem:[#allocation8 + $0x1c] sm:$0xf] %v649
    %778 = vst [vmem:[#allocation8 + $0x20] sm:$0xf] %v650
    %779 = vst [vmem:[#allocation8 + $0x24] sm:$0xf] %v651
    %780 = vst [vmem:[#allocation8 + $0x28] sm:$0xf] %v652
    %781 = vst [vmem:[#allocation8 + $0x2c] sm:$0xf] %v653
    %782 = vst [vmem:[#allocation8 + $0x30] sm:$0xf] %v654
    %783 = vst [vmem:[#allocation8 + $0x34] sm:$0xf] %v655
    %784 = vst [vmem:[#allocation8 + $0x38] sm:$0xf] %v656
    %785 = vst [vmem:[#allocation8 + $0x3c] sm:$0xf] %v657
    %786 = vst [vmem:[#allocation8 + $0x40] sm:$0xf] %v658
    %787 = vst [vmem:[#allocation8 + $0x44] sm:$0xf] %v659
    %788 = vst [vmem:[#allocation8 + $0x48] sm:$0xf] %v660
    %789 = vst [vmem:[#allocation8 + $0x4c] sm:$0xf] %v661
    %790 = vst [vmem:[#allocation8 + $0x50] sm:$0xf] %v662
    %791 = vst [vmem:[#allocation8 + $0x54] sm:$0xf] %v663
    %792 = vst [vmem:[#allocation8 + $0x58] sm:$0xf] %v664
    %793 = vst [vmem:[#allocation8 + $0x5c] sm:$0xf] %v665
    %794 = vst [vmem:[#allocation8 + $0x60] sm:$0xf] %v666
    %795 = vst [vmem:[#allocation8 + $0x64] sm:$0xf] %v667
    %796 = vst [vmem:[#allocation8 + $0x68] sm:$0xf] %v668
    %797 = vst [vmem:[#allocation8 + $0x6c] sm:$0xf] %v669
    %798 = vst [vmem:[#allocation8 + $0x70] sm:$0xf] %v670
    %799 = vst [vmem:[#allocation8 + $0x74] sm:$0xf] %v671
    %800 = vst [vmem:[#allocation8 + $0x78] sm:$0xf] %v672
    %801 = vst [vmem:[#allocation8 + $0x7c] sm:$0xf] %v673
    %802 = vst [vmem:[#allocation8 + $0x80] sm:$0xf] %v674
    %803 = vst [vmem:[#allocation8 + $0x84] sm:$0xf] %v675
    %804 = vst [vmem:[#allocation8 + $0x88] sm:$0xf] %v676
    %805 = vst [vmem:[#allocation8 + $0x8c] sm:$0xf] %v677
    %806 = vst [vmem:[#allocation8 + $0x90] sm:$0xf] %v678
    %807 = vst [vmem:[#allocation8 + $0x94] sm:$0xf] %v679
    %808 = vst [vmem:[#allocation8 + $0x98] sm:$0xf] %v680
    %809 = vst [vmem:[#allocation8 + $0x9c] sm:$0xf] %v681
    %810 = vst [vmem:[#allocation8 + $0xa0] sm:$0xf] %v682
    %811 = vst [vmem:[#allocation8 + $0xa4] sm:$0xf] %v683
    %812 = vst [vmem:[#allocation8 + $0xa8] sm:$0xf] %v684
    %813 = vst [vmem:[#allocation8 + $0xac] sm:$0xf] %v685
    %814 = vst [vmem:[#allocation8 + $0xb0] sm:$0xf] %v686
    %815 = vst [vmem:[#allocation8 + $0xb4] sm:$0xf] %v687
    %816 = vst [vmem:[#allocation8 + $0xb8] sm:$0xf] %v688
    %817 = vst [vmem:[#allocation8 + $0xbc] sm:$0xf] %v689
    %818 = vst [vmem:[#allocation8 + $0xc0] sm:$0xf] %v690
    %819 = vst [vmem:[#allocation8 + $0xc4] sm:$0xf] %v691
    %820 = vst [vmem:[#allocation8 + $0xc8] sm:$0xf] %v692
    %821 = vst [vmem:[#allocation8 + $0xcc] sm:$0xf] %v693
    %822 = vst [vmem:[#allocation8 + $0xd0] sm:$0xf] %v694
    %823 = vst [vmem:[#allocation8 + $0xd4] sm:$0xf] %v695
    %824 = vst [vmem:[#allocation8 + $0xd8] sm:$0xf] %v696
    %825 = vst [vmem:[#allocation8 + $0xdc] sm:$0xf] %v697
    %826 = vst [vmem:[#allocation8 + $0xe0] sm:$0xf] %v698
    %827 = vst [vmem:[#allocation8 + $0xe4] sm:$0xf] %v699
    %828 = vst [vmem:[#allocation8 + $0xe8] sm:$0xf] %v700
    %829 = vst [vmem:[#allocation8 + $0xec] sm:$0xf] %v701
    %830 = vst [vmem:[#allocation8 + $0xf0] sm:$0xf] %v702
    %831 = vst [vmem:[#allocation8 + $0xf4] sm:$0xf] %v703
    %832 = vst [vmem:[#allocation8 + $0xf8] sm:$0xf] %v704
    %833 = vst [vmem:[#allocation8 + $0xfc] sm:$0xf] %v705
    // Predicated region
    $region26: #{conv_block_forward.5} parent=1 // pred_check
      _
    $region27: #{conv_block_forward.5} parent=1 // pred_check_branch
      %835 = sbr.rel (0) target = $region29
    $region28: #{conv_block_forward.5} parent=1 // pred_region
      %s837 = ssub.s32 4096, 4096
      %838 = vsyncadd [#allocation4], %s837
      %s839 = sshll.u32 [#allocation8], 4
      %s840 = int_to_ptr.vmem [resolvable:$true] %s839
      %845 = dma.vmem_to_hbm [thread:$0]  %s840, 4096, %s3, [#allocation4], 64, 64, 4
    $region29: #{conv_block_forward.5} parent=1 // pred_fallthru
      _
    // Predicated region
    $region30: #{conv_block_forward.5} parent=1 // pred_check
      _
    $region31: #{conv_block_forward.5} parent=1 // pred_check_branch
      %847 = sbr.rel (0) target = $region33
    $region32: #{conv_block_forward.5} parent=1 // pred_region
      %848 = dma.done [#allocation4], 4096
    $region33: #{conv_block_forward.5} parent=1 // pred_fallthru
      _
    %849 = vsyncpa [#allocation3], 1
    %850 = vsyncpa [#allocation6], 1
    %851 = vsyncpa [#allocation4], 1

// kernel: conv_block_forward.4
$region0: #{conv_block_forward.4}
  #allocation0 [shape = 'u32[]', space=smem, size = 0x4, offset = 0x4, fixed_abs, tag = 'smem constant byte address 0x4 - core index']
  #allocation1 [shape = 'u32[144,128]{1,0:T(1,128)}', space=vmem, size = 0x12000, scoped, tag = 'internal scratch']
  %s0 = inlined_call_operand.hbm [shape: bf16[2,18,18,4], index: 0, kind: input, shape index: {}]
  %s1 = inlined_call_operand.hbm [shape: bf16[36,128], index: 1, kind: input, shape index: {}]
  %s2 = inlined_call_operand.hbm [shape: bf16[2,256,128], index: 2, kind: output, shape index: {0}]
  %s3 = inlined_call_operand.hbm [shape: f32[2,2,128], index: 3, kind: output, shape index: {1}]
  %4 = xla_tuple %s2, %s3
  %s5 = sld [smem:[#allocation0]]
  $region57: #{conv_block_forward.4} parent=0
    _
  %s7 = ssub.s32 1, %s5
  %s8 = scalar_select 0, %s7, %s5
  $region1: #{conv_block_forward.4} parent=0
    #allocation2 [shape = 'u8[221184]{0}', space=vmem, size = 0x36000, scoped, tag = 'input window, operand 0']
    #allocation3 [shape = 's32[2]{0}', space=sflag, size = 0x8, scoped, tag = 'scoped memory for conv_block_forward.4']
    #allocation4 [shape = 's32[2]{0}', space=sflag, size = 0x8, scoped, tag = 'scoped memory for conv_block_forward.4']
    #allocation5 [shape = 'u8[10240]{0}', space=vmem, size = 0x2800, scoped, tag = 'input window, operand 1, single buffered']
    #allocation6 [shape = 's32[1]{0}', space=sflag, size = 0x4, scoped, tag = 'scoped memory for conv_block_forward.4']
    #allocation7 [shape = 'u8[131072]{0}', space=vmem, size = 0x20000, scoped, tag = 'output window, operand 0']
    #allocation8 [shape = 'u8[2048]{0}', space=vmem, size = 0x800, scoped, tag = 'output window, operand 1']
    #allocation9 [shape = 's32[2]{0}', space=sflag, size = 0x8, scoped, tag = 'scoped memory for conv_block_forward.4']
    %9 = vsyncpa [#allocation3], 0
    %s10 = scalar_lea.sflag [#allocation3], 1
    %11 = vsyncpa %s10, 0
    %12 = vsyncpa [#allocation6], 0
    %13 = vsyncpa [#allocation4], 0
    %s14 = scalar_lea.sflag [#allocation4], 1
    %15 = vsyncpa %s14, 0
    %16 = vsyncpa [#allocation9], 0
    %s17 = scalar_lea.sflag [#allocation9], 1
    %18 = vsyncpa %s17, 0
    loop: start=0, step=1, limit=4
    $region2: #{conv_block_forward.4} parent=1 // loop_pre_header
      _
    $region3: #{conv_block_forward.4} parent=1 // loop_header
      %s20 = sphi 0, %s24
      %p21 = scmp.ge.s32.totalorder %s20, 4
      %s30 = sphi 0, %s32
      %s33 = sphi 0, %s30
      %s34 = sphi 0, %s33
      %s50 = sphi 0, %s34
      %s54 = sphi 0, %s54
      %s56 = sphi 0, %s54
      %s57 = sphi 0, %s56
      %s71 = sphi 0, %s57
      %s77 = sphi 0, %s79
      %s80 = sphi 0, %s77
      %s81 = sphi 0, %s80
      %s97 = sphi 0, %s81
      %s103 = sphi 0, %s105
      %s106 = sphi 0, %s103
      %s107 = sphi 0, %s106
      %s123 = sphi 0, %s107
    $region4: #{conv_block_forward.4} parent=1 // loop_header_branch
      %23 = sbr.rel (%p21) target = $region8
    $region5: #{conv_block_forward.4} parent=1 // loop_body
      %s25 = ssub.s32 %s20, 1
      %s26 = ssub.s32 %s20, 2
      %s27 = sadd.s32 %s20, 1
      %s28 = ssub.s32 %s20, %s27
      %p29 = scmp.eq.s32.totalorder %s28, 0
      %s31 = sadd.s32 %s30, 1
      %s32 = scalar_select %p29, %s30, %s31
      %p35 = pneg %p29
      %p36 = scmp.eq.s32.totalorder %s20, 1
      %p37 = por %p35, %p36
      %p38 = scmp.ne.s32.totalorder %s30, %s33
      %p39 = scmp.eq.s32.totalorder %s20, 0
      %p40 = por %p38, %p39
      %p41 = scmp.ne.s32.totalorder %s30, %s33
      %p42 = scmp.eq.s32.totalorder %s25, 1
      %p43 = por %p41, %p42
      %p44 = scmp.ne.s32.totalorder %s33, %s34
      %p45 = scmp.eq.s32.totalorder %s25, 0
      %p46 = por %p44, %p45
      %p47 = scmp.ne.s32.totalorder %s33, %s34
      %p48 = scmp.eq.s32.totalorder %s26, 1
      %p49 = por %p47, %p48
      %p51 = scmp.ne.s32.totalorder %s34, %s50
      %p52 = scmp.eq.s32.totalorder %s26, 0
      %p53 = por %p51, %p52
      %s55 = sadd.s32 %s54, 1
      %p58 = scmp.eq.s32.totalorder %s20, 1
      %p59 = scmp.ne.s32.totalorder %s54, %s56
      %p60 = scmp.eq.s32.totalorder %s20, 0
      %p61 = por %p59, %p60
      %p62 = scmp.ne.s32.totalorder %s54, %s56
      %p63 = scmp.eq.s32.totalorder %s25, 1
      %p64 = por %p62, %p63
      %p65 = scmp.ne.s32.totalorder %s56, %s57
      %p66 = scmp.eq.s32.totalorder %s25, 0
      %p67 = por %p65, %p66
      %p68 = scmp.ne.s32.totalorder %s56, %s57
      %p69 = scmp.eq.s32.totalorder %s26, 1
      %p70 = por %p68, %p69
      %p72 = scmp.ne.s32.totalorder %s57, %s71
      %p73 = scmp.eq.s32.totalorder %s26, 0
      %p74 = por %p72, %p73
      %s75 = ssub.s32 %s20, %s27
      %p76 = scmp.eq.s32.totalorder %s75, 0
      %s78 = sadd.s32 %s77, 1
      %s79 = scalar_select %p76, %s77, %s78
      %p82 = pneg %p76
      %p83 = scmp.eq.s32.totalorder %s20, 1
      %p84 = por %p82, %p83
      %p85 = scmp.ne.s32.totalorder %s77, %s80
      %p86 = scmp.eq.s32.totalorder %s20, 0
      %p87 = por %p85, %p86
      %p88 = scmp.ne.s32.totalorder %s77, %s80
      %p89 = scmp.eq.s32.totalorder %s25, 1
      %p90 = por %p88, %p89
      %p91 = scmp.ne.s32.totalorder %s80, %s81
      %p92 = scmp.eq.s32.totalorder %s25, 0
      %p93 = por %p91, %p92
      %p94 = scmp.ne.s32.totalorder %s80, %s81
      %p95 = scmp.eq.s32.totalorder %s26, 1
      %p96 = por %p94, %p95
      %p98 = scmp.ne.s32.totalorder %s81, %s97
      %p99 = scmp.eq.s32.totalorder %s26, 0
      %p100 = por %p98, %p99
      %s101 = ssub.s32 %s20, %s27
      %p102 = scmp.eq.s32.totalorder %s101, 0
      %s104 = sadd.s32 %s103, 1
      %s105 = scalar_select %p102, %s103, %s104
      %p108 = pneg %p102
      %p109 = scmp.eq.s32.totalorder %s20, 1
      %p110 = por %p108, %p109
      %p111 = scmp.ne.s32.totalorder %s103, %s106
      %p112 = scmp.eq.s32.totalorder %s20, 0
      %p113 = por %p111, %p112
      %p114 = scmp.ne.s32.totalorder %s103, %s106
      %p115 = scmp.eq.s32.totalorder %s25, 1
      %p116 = por %p114, %p115
      %p117 = scmp.ne.s32.totalorder %s106, %s107
      %p118 = scmp.eq.s32.totalorder %s25, 0
      %p119 = por %p117, %p118
      %p120 = scmp.ne.s32.totalorder %s106, %s107
      %p121 = scmp.eq.s32.totalorder %s26, 1
      %p122 = por %p120, %p121
      %p124 = scmp.ne.s32.totalorder %s107, %s123
      %p125 = scmp.eq.s32.totalorder %s26, 0
      %p126 = por %p124, %p125
      %p127 = scmp.le.s32.totalorder 1, %s20
      %p128 = scmp.lt.s32.totalorder %s20, 3
      %p129 = pnand %p127, %p128
      %p130 = pneg %p129
      // Predicated region
      $region9: #{conv_block_forward.4} parent=5 // pred_check
        _
      $region10: #{conv_block_forward.4} parent=5 // pred_check_branch
        %132 = sbr.rel (%p129) target = $region12
      $region11: #{conv_block_forward.4} parent=5 // pred_region
        %s133 = ssub.s32 %s20, 1
        // Predicated region
        $region13: #{conv_block_forward.4} parent=11 // pred_check
          %p134 = pneg %p67
        $region14: #{conv_block_forward.4} parent=11 // pred_check_branch
          %136 = sbr.rel (%p134) target = $region16
        $region15: #{conv_block_forward.4} parent=11 // pred_region
          %s138 = ssub.s32 320, 320
          %139 = vsyncadd [#allocation6], %s138
          %s140 = sshll.u32 [#allocation5], 4
          %s141 = int_to_ptr.vmem [resolvable:$true] %s140
          %146 = dma.hbm_to_vmem [thread:$0]  %s1, 320, %s141, [#allocation6], 64, 64, 4
        $region16: #{conv_block_forward.4} parent=11 // pred_fallthru
          _
      $region12: #{conv_block_forward.4} parent=5 // pred_fallthru
        _
      %p147 = scmp.lt.s32.totalorder %s20, 2
      // Predicated region
      $region17: #{conv_block_forward.4} parent=5 // pred_check
        %p148 = pneg %p147
      $region18: #{conv_block_forward.4} parent=5 // pred_check_branch
        %150 = sbr.rel (%p148) target = $region20
      $region19: #{conv_block_forward.4} parent=5 // pred_region
        // Predicated region
        $region21: #{conv_block_forward.4} parent=19 // pred_check
          %p151 = pneg %p40
        $region22: #{conv_block_forward.4} parent=19 // pred_check_branch
          %153 = sbr.rel (%p151) target = $region24
        $region23: #{conv_block_forward.4} parent=19 // pred_region
          %s154 = sand.u32 %s30, 1
          %s155 = scalar_lea.sflag [#allocation3], %s154
          %s156 = sand.u32 %s30, 1
          %s157 = smul.addr %s156, 216
          %s158 = scalar_lea.vmem [#allocation2], %s157
          %s160 = ssub.s32 3456, 3456
          %161 = vsyncadd %s155, %s160
          %s162 = smul.addr %s20, 54
          %s163 = smul.addr %s162, 64
          %s164 = scalar_lea.hbm %s0, %s163
          %s165 = sshll.u32 %s158, 4
          %s166 = int_to_ptr.vmem [resolvable:$true] %s165
          %171 = dma.hbm_to_vmem [thread:$0]  %s164, 3456, %s166, %s155, 64, 64, 4
        $region24: #{conv_block_forward.4} parent=19 // pred_fallthru
          _
      $region20: #{conv_block_forward.4} parent=5 // pred_fallthru
        _
      %p172 = scmp.le.s32.totalorder 1, %s20
      %p173 = scmp.lt.s32.totalorder %s20, 3
      %p174 = pnand %p172, %p173
      %p175 = pneg %p174
      // Predicated region
      $region25: #{conv_block_forward.4} parent=5 // pred_check
        _
      $region26: #{conv_block_forward.4} parent=5 // pred_check_branch
        %177 = sbr.rel (%p174) target = $region28
      $region27: #{conv_block_forward.4} parent=5 // pred_region
        %s178 = ssub.s32 %s20, 1
        %s179 = sand.u32 %s33, 1
        %s180 = scalar_lea.sflag [#allocation3], %s179
        %s181 = sand.u32 %s33, 1
        %s182 = smul.addr %s181, 216
        %s183 = scalar_lea.vmem [#allocation2], %s182
        // Predicated region
        $region29: #{conv_block_forward.4} parent=27 // pred_check
          %p184 = pneg %p46
        $region30: #{conv_block_forward.4} parent=27 // pred_check_branch
          %186 = sbr.rel (%p184) target = $region32
        $region31: #{conv_block_forward.4} parent=27 // pred_region
          %187 = dma.done %s180, 3456
        $region32: #{conv_block_forward.4} parent=27 // pred_fallthru
          _
        // Predicated region
        $region33: #{conv_block_forward.4} parent=27 // pred_check
          %p188 = pneg %p67
        $region34: #{conv_block_forward.4} parent=27 // pred_check_branch
          %190 = sbr.rel (%p188) target = $region36
        $region35: #{conv_block_forward.4} parent=27 // pred_region
          %191 = dma.done [#allocation6], 320
        $region36: #{conv_block_forward.4} parent=27 // pred_fallthru
          _
        %s192 = sand.u32 %s33, 1
        %s193 = scalar_lea.sflag [#allocation3], %s192
        %s194 = sand.u32 %s33, 1
        %s195 = smul.addr %s194, 216
        %s196 = scalar_lea.vmem [#allocation2], %s195
        %p197 = pneg %p46
        %p198 = pneg %p43
        %p199 = pneg %p67
        %p200 = pneg %p64
        %p201 = pneg %p93
        %p202 = pneg %p90
        %s203 = sand.u32 %s80, 1
        %s204 = scalar_lea.sflag [#allocation4], %s203
        %s205 = sand.u32 %s80, 1
        %s206 = smul.addr %s205, 128
        %s207 = scalar_lea.vmem [#allocation7], %s206
        %p208 = pneg %p119
        %p209 = pneg %p116
        %s210 = sand.u32 %s106, 1
        %s211 = scalar_lea.sflag [#allocation9], %s210
        %s212 = sand.u32 %s106, 1
        %s213 = smul.addr %s212, 2
        %s214 = scalar_lea.vmem [#allocation8], %s213
        %v216 = vld [vmem:[%s183] sm:$0xf]
        %v217 = vld [vmem:[%s183 + $0x4] sm:$0xf]
        %v218 = vld [vmem:[%s183 + $0x8] sm:$0x1]
        %v219 = vld [vmem:[%s183 + $0xc] sm:$0xf]
        %v220 = vld [vmem:[%s183 + $0x10] sm:$0xf]
        %v221 = vld [vmem:[%s183 + $0x14] sm:$0x1]
        %v222 = vld [vmem:[%s183 + $0x18] sm:$0xf]
        %v223 = vld [vmem:[%s183 + $0x1c] sm:$0xf]
        %v224 = vld [vmem:[%s183 + $0x20] sm:$0x1]
        %v225 = vld [vmem:[%s183 + $0x24] sm:$0xf]
        %v226 = vld [vmem:[%s183 + $0x28] sm:$0xf]
        %v227 = vld [vmem:[%s183 + $0x2c] sm:$0x1]
        %v228 = vld [vmem:[%s183 + $0x30] sm:$0xf]
        %v229 = vld [vmem:[%s183 + $0x34] sm:$0xf]
        %v230 = vld [vmem:[%s183 + $0x38] sm:$0x1]
        %v231 = vld [vmem:[%s183 + $0x3c] sm:$0xf]
        %v232 = vld [vmem:[%s183 + $0x40] sm:$0xf]
        %v233 = vld [vmem:[%s183 + $0x44] sm:$0x1]
        %v234 = vld [vmem:[%s183 + $0x48] sm:$0xf]
        %v235 = vld [vmem:[%s183 + $0x4c] sm:$0xf]
        %v236 = vld [vmem:[%s183 + $0x50] sm:$0x1]
        %v237 = vld [vmem:[%s183 + $0x54] sm:$0xf]
        %v238 = vld [vmem:[%s183 + $0x58] sm:$0xf]
        %v239 = vld [vmem:[%s183 + $0x5c] sm:$0x1]
        %v240 = vld [vmem:[%s183 + $0x60] sm:$0xf]
        %v241 = vld [vmem:[%s183 + $0x64] sm:$0xf]
        %v242 = vld [vmem:[%s183 + $0x68] sm:$0x1]
        %v243 = vld [vmem:[%s183 + $0x6c] sm:$0xf]
        %v244 = vld [vmem:[%s183 + $0x70] sm:$0xf]
        %v245 = vld [vmem:[%s183 + $0x74] sm:$0x1]
        %v246 = vld [vmem:[%s183 + $0x78] sm:$0xf]
        %v247 = vld [vmem:[%s183 + $0x7c] sm:$0xf]
        %v248 = vld [vmem:[%s183 + $0x80] sm:$0x1]
        %v249 = vld [vmem:[%s183 + $0x84] sm:$0xf]
        %v250 = vld [vmem:[%s183 + $0x88] sm:$0xf]
        %v251 = vld [vmem:[%s183 + $0x8c] sm:$0x1]
        %v252 = vld [vmem:[%s183 + $0x90] sm:$0xf]
        %v253 = vld [vmem:[%s183 + $0x94] sm:$0xf]
        %v254 = vld [vmem:[%s183 + $0x98] sm:$0x1]
        %v255 = vld [vmem:[%s183 + $0x9c] sm:$0xf]
        %v256 = vld [vmem:[%s183 + $0xa0] sm:$0xf]
        %v257 = vld [vmem:[%s183 + $0xa4] sm:$0x1]
        %v258 = vld [vmem:[%s183 + $0xa8] sm:$0xf]
        %v259 = vld [vmem:[%s183 + $0xac] sm:$0xf]
        %v260 = vld [vmem:[%s183 + $0xb0] sm:$0x1]
        %v261 = vld [vmem:[%s183 + $0xb4] sm:$0xf]
        %v262 = vld [vmem:[%s183 + $0xb8] sm:$0xf]
        %v263 = vld [vmem:[%s183 + $0xbc] sm:$0x1]
        %v264 = vld [vmem:[%s183 + $0xc0] sm:$0xf]
        %v265 = vld [vmem:[%s183 + $0xc4] sm:$0xf]
        %v266 = vld [vmem:[%s183 + $0xc8] sm:$0x1]
        %v267 = vld [vmem:[%s183 + $0xcc] sm:$0xf]
        %v268 = vld [vmem:[%s183 + $0xd0] sm:$0xf]
        %v269 = vld [vmem:[%s183 + $0xd4] sm:$0x1]
        %vm270 = vsmask.f32 3328
        %vm271 = vsmask.f32 7440
        %vm272 = vmor %vm270, %vm271
        %v274 = vshrl.u32 %v216, 16
        %v276 = vrot.slane %v274, 4
        %v277 = vshll.u32 %v216, 16
        %v279 = vrot.slane %v277, 5
        %v280 = vor.u32 %v276, %v279
        %v281 = vrot.slane %v280, 4
        %v283 = vshll.u32 %v217, 16
        %v285 = vrot.slane %v283, 5
        %v286 = vsel %vm272, %v281, %v285
        %v287 = vshrl.u32 %v217, 16
        %v289 = vrot.slane %v287, 4
        %v290 = vor.u32 %v289, %v285
        %v291 = vrot.slane %v290, 4
        %v293 = vshll.u32 %v218, 16
        %v295 = vrot.slane %v293, 5
        %v296 = vsel %vm272, %v291, %v295
        %v298 = vshrl.u32 %v219, 16
        %v300 = vrot.slane %v298, 4
        %v301 = vshll.u32 %v219, 16
        %v303 = vrot.slane %v301, 5
        %v304 = vor.u32 %v300, %v303
        %v305 = vrot.slane %v304, 4
        %v307 = vshll.u32 %v220, 16
        %v309 = vrot.slane %v307, 5
        %v310 = vsel %vm272, %v305, %v309
        %v311 = vshrl.u32 %v220, 16
        %v313 = vrot.slane %v311, 4
        %v314 = vor.u32 %v313, %v309
        %v315 = vrot.slane %v314, 4
        %v317 = vshll.u32 %v221, 16
        %v319 = vrot.slane %v317, 5
        %v320 = vsel %vm272, %v315, %v319
        %v322 = vshrl.u32 %v222, 16
        %v324 = vrot.slane %v322, 4
        %v325 = vshll.u32 %v222, 16
        %v327 = vrot.slane %v325, 5
        %v328 = vor.u32 %v324, %v327
        %v329 = vrot.slane %v328, 4
        %v331 = vshll.u32 %v223, 16
        %v333 = vrot.slane %v331, 5
        %v334 = vsel %vm272, %v329, %v333
        %v335 = vshrl.u32 %v223, 16
        %v337 = vrot.slane %v335, 4
        %v338 = vor.u32 %v337, %v333
        %v339 = vrot.slane %v338, 4
        %v341 = vshll.u32 %v224, 16
        %v343 = vrot.slane %v341, 5
        %v344 = vsel %vm272, %v339, %v343
        %v346 = vshrl.u32 %v225, 16
        %v348 = vrot.slane %v346, 4
        %v349 = vshll.u32 %v225, 16
        %v351 = vrot.slane %v349, 5
        %v352 = vor.u32 %v348, %v351
        %v353 = vrot.slane %v352, 4
        %v355 = vshll.u32 %v226, 16
        %v357 = vrot.slane %v355, 5
        %v358 = vsel %vm272, %v353, %v357
        %v359 = vshrl.u32 %v226, 16
        %v361 = vrot.slane %v359, 4
        %v362 = vor.u32 %v361, %v357
        %v363 = vrot.slane %v362, 4
        %v365 = vshll.u32 %v227, 16
        %v367 = vrot.slane %v365, 5
        %v368 = vsel %vm272, %v363, %v367
        %v370 = vshrl.u32 %v228, 16
        %v372 = vrot.slane %v370, 4
        %v373 = vshll.u32 %v228, 16
        %v375 = vrot.slane %v373, 5
        %v376 = vor.u32 %v372, %v375
        %v377 = vrot.slane %v376, 4
        %v379 = vshll.u32 %v229, 16
        %v381 = vrot.slane %v379, 5
        %v382 = vsel %vm272, %v377, %v381
        %v383 = vshrl.u32 %v229, 16
        %v385 = vrot.slane %v383, 4
        %v386 = vor.u32 %v385, %v381
        %v387 = vrot.slane %v386, 4
        %v389 = vshll.u32 %v230, 16
        %v391 = vrot.slane %v389, 5
        %v392 = vsel %vm272, %v387, %v391
        %v394 = vshrl.u32 %v231, 16
        %v396 = vrot.slane %v394, 4
        %v397 = vshll.u32 %v231, 16
        %v399 = vrot.slane %v397, 5
        %v400 = vor.u32 %v396, %v399
        %v401 = vrot.slane %v400, 4
        %v403 = vshll.u32 %v232, 16
        %v405 = vrot.slane %v403, 5
        %v406 = vsel %vm272, %v401, %v405
        %v407 = vshrl.u32 %v232, 16
        %v409 = vrot.slane %v407, 4
        %v410 = vor.u32 %v409, %v405
        %v411 = vrot.slane %v410, 4
        %v413 = vshll.u32 %v233, 16
        %v415 = vrot.slane %v413, 5
        %v416 = vsel %vm272, %v411, %v415
        %v418 = vshrl.u32 %v234, 16
        %v420 = vrot.slane %v418, 4
        %v421 = vshll.u32 %v234, 16
        %v423 = vrot.slane %v421, 5
        %v424 = vor.u32 %v420, %v423
        %v425 = vrot.slane %v424, 4
        %v427 = vshll.u32 %v235, 16
        %v429 = vrot.slane %v427, 5
        %v430 = vsel %vm272, %v425, %v429
        %v431 = vshrl.u32 %v235, 16
        %v433 = vrot.slane %v431, 4
        %v434 = vor.u32 %v433, %v429
        %v435 = vrot.slane %v434, 4
        %v437 = vshll.u32 %v236, 16
        %v439 = vrot.slane %v437, 5
        %v440 = vsel %vm272, %v435, %v439
        %v442 = vshrl.u32 %v237, 16
        %v444 = vrot.slane %v442, 4
        %v445 = vshll.u32 %v237, 16
        %v447 = vrot.slane %v445, 5
        %v448 = vor.u32 %v444, %v447
        %v449 = vrot.slane %v448, 4
        %v451 = vshll.u32 %v238, 16
        %v453 = vrot.slane %v451, 5
        %v454 = vsel %vm272, %v449, %v453
        %v455 = vshrl.u32 %v238, 16
        %v457 = vrot.slane %v455, 4
        %v458 = vor.u32 %v457, %v453
        %v459 = vrot.slane %v458, 4
        %v461 = vshll.u32 %v239, 16
        %v463 = vrot.slane %v461, 5
        %v464 = vsel %vm272, %v459, %v463
        %v466 = vshrl.u32 %v240, 16
        %v468 = vrot.slane %v466, 4
        %v469 = vshll.u32 %v240, 16
        %v471 = vrot.slane %v469, 5
        %v472 = vor.u32 %v468, %v471
        %v473 = vrot.slane %v472, 4
        %v475 = vshll.u32 %v241, 16
        %v477 = vrot.slane %v475, 5
        %v478 = vsel %vm272, %v473, %v477
        %v479 = vshrl.u32 %v241, 16
        %v481 = vrot.slane %v479, 4
        %v482 = vor.u32 %v481, %v477
        %v483 = vrot.slane %v482, 4
        %v485 = vshll.u32 %v242, 16
        %v487 = vrot.slane %v485, 5
        %v488 = vsel %vm272, %v483, %v487
        %v490 = vshrl.u32 %v243, 16
        %v492 = vrot.slane %v490, 4
        %v493 = vshll.u32 %v243, 16
        %v495 = vrot.slane %v493, 5
        %v496 = vor.u32 %v492, %v495
        %v497 = vrot.slane %v496, 4
        %v499 = vshll.u32 %v244, 16
        %v501 = vrot.slane %v499, 5
        %v502 = vsel %vm272, %v497, %v501
        %v503 = vshrl.u32 %v244, 16
        %v505 = vrot.slane %v503, 4
        %v506 = vor.u32 %v505, %v501
        %v507 = vrot.slane %v506, 4
        %v509 = vshll.u32 %v245, 16
        %v511 = vrot.slane %v509, 5
        %v512 = vsel %vm272, %v507, %v511
        %v514 = vshrl.u32 %v246, 16
        %v516 = vrot.slane %v514, 4
        %v517 = vshll.u32 %v246, 16
        %v519 = vrot.slane %v517, 5
        %v520 = vor.u32 %v516, %v519
        %v521 = vrot.slane %v520, 4
        %v523 = vshll.u32 %v247, 16
        %v525 = vrot.slane %v523, 5
        %v526 = vsel %vm272, %v521, %v525
        %v527 = vshrl.u32 %v247, 16
        %v529 = vrot.slane %v527, 4
        %v530 = vor.u32 %v529, %v525
        %v531 = vrot.slane %v530, 4
        %v533 = vshll.u32 %v248, 16
        %v535 = vrot.slane %v533, 5
        %v536 = vsel %vm272, %v531, %v535
        %v538 = vshrl.u32 %v249, 16
        %v540 = vrot.slane %v538, 4
        %v541 = vshll.u32 %v249, 16
        %v543 = vrot.slane %v541, 5
        %v544 = vor.u32 %v540, %v543
        %v545 = vrot.slane %v544, 4
        %v547 = vshll.u32 %v250, 16
        %v549 = vrot.slane %v547, 5
        %v550 = vsel %vm272, %v545, %v549
        %v551 = vshrl.u32 %v250, 16
        %v553 = vrot.slane %v551, 4
        %v554 = vor.u32 %v553, %v549
        %v555 = vrot.slane %v554, 4
        %v557 = vshll.u32 %v251, 16
        %v559 = vrot.slane %v557, 5
        %v560 = vsel %vm272, %v555, %v559
        %v562 = vshrl.u32 %v252, 16
        %v564 = vrot.slane %v562, 4
        %v565 = vshll.u32 %v252, 16
        %v567 = vrot.slane %v565, 5
        %v568 = vor.u32 %v564, %v567
        %v569 = vrot.slane %v568, 4
        %v571 = vshll.u32 %v253, 16
        %v573 = vrot.slane %v571, 5
        %v574 = vsel %vm272, %v569, %v573
        %v575 = vshrl.u32 %v253, 16
        %v577 = vrot.slane %v575, 4
        %v578 = vor.u32 %v577, %v573
        %v579 = vrot.slane %v578, 4
        %v581 = vshll.u32 %v254, 16
        %v583 = vrot.slane %v581, 5
        %v584 = vsel %vm272, %v579, %v583
        %v586 = vshrl.u32 %v255, 16
        %v588 = vrot.slane %v586, 4
        %v589 = vshll.u32 %v255, 16
        %v591 = vrot.slane %v589, 5
        %v592 = vor.u32 %v588, %v591
        %v593 = vrot.slane %v592, 4
        %v595 = vshll.u32 %v256, 16
        %v597 = vrot.slane %v595, 5
        %v598 = vsel %vm272, %v593, %v597
        %v599 = vshrl.u32 %v256, 16
        %v601 = vrot.slane %v599, 4
        %v602 = vor.u32 %v601, %v597
        %v603 = vrot.slane %v602, 4
        %v605 = vshll.u32 %v257, 16
        %v607 = vrot.slane %v605, 5
        %v608 = vsel %vm272, %v603, %v607
        %v610 = vshrl.u32 %v258, 16
        %v612 = vrot.slane %v610, 4
        %v613 = vshll.u32 %v258, 16
        %v615 = vrot.slane %v613, 5
        %v616 = vor.u32 %v612, %v615
        %v617 = vrot.slane %v616, 4
        %v619 = vshll.u32 %v259, 16
        %v621 = vrot.slane %v619, 5
        %v622 = vsel %vm272, %v617, %v621
        %v623 = vshrl.u32 %v259, 16
        %v625 = vrot.slane %v623, 4
        %v626 = vor.u32 %v625, %v621
        %v627 = vrot.slane %v626, 4
        %v629 = vshll.u32 %v260, 16
        %v631 = vrot.slane %v629, 5
        %v632 = vsel %vm272, %v627, %v631
        %v634 = vshrl.u32 %v261, 16
        %v636 = vrot.slane %v634, 4
        %v637 = vshll.u32 %v261, 16
        %v639 = vrot.slane %v637, 5
        %v640 = vor.u32 %v636, %v639
        %v641 = vrot.slane %v640, 4
        %v643 = vshll.u32 %v262, 16
        %v645 = vrot.slane %v643, 5
        %v646 = vsel %vm272, %v641, %v645
        %v647 = vshrl.u32 %v262, 16
        %v649 = vrot.slane %v647, 4
        %v650 = vor.u32 %v649, %v645
        %v651 = vrot.slane %v650, 4
        %v653 = vshll.u32 %v263, 16
        %v655 = vrot.slane %v653, 5
        %v656 = vsel %vm272, %v651, %v655
        %vm705 = vcmask 1042432
        %vm706 = vcmask 1046532
        %vm707 = vmor %vm705, %vm706
        %v708 = vrot.slane %v216, 5
        %v709 = vrot.slane %v708, 4
        %v710 = vrot.slane %v217, 5
        %v711 = vsel %vm707, %v709, %v710
        %v712 = vrot.slane %v710, 4
        %v713 = vrot.slane %v218, 5
        %v714 = vsel %vm707, %v712, %v713
        %v715 = vrot.slane %v219, 5
        %v716 = vrot.slane %v715, 4
        %v717 = vrot.slane %v220, 5
        %v718 = vsel %vm707, %v716, %v717
        %v719 = vrot.slane %v717, 4
        %v720 = vrot.slane %v221, 5
        %v721 = vsel %vm707, %v719, %v720
        %v722 = vrot.slane %v222, 5
        %v723 = vrot.slane %v722, 4
        %v724 = vrot.slane %v223, 5
        %v725 = vsel %vm707, %v723, %v724
        %v726 = vrot.slane %v724, 4
        %v727 = vrot.slane %v224, 5
        %v728 = vsel %vm707, %v726, %v727
        %v729 = vrot.slane %v225, 5
        %v730 = vrot.slane %v729, 4
        %v731 = vrot.slane %v226, 5
        %v732 = vsel %vm707, %v730, %v731
        %v733 = vrot.slane %v731, 4
        %v734 = vrot.slane %v227, 5
        %v735 = vsel %vm707, %v733, %v734
        %v736 = vrot.slane %v228, 5
        %v737 = vrot.slane %v736, 4
        %v738 = vrot.slane %v229, 5
        %v739 = vsel %vm707, %v737, %v738
        %v740 = vrot.slane %v738, 4
        %v741 = vrot.slane %v230, 5
        %v742 = vsel %vm707, %v740, %v741
        %v743 = vrot.slane %v231, 5
        %v744 = vrot.slane %v743, 4
        %v745 = vrot.slane %v232, 5
        %v746 = vsel %vm707, %v744, %v745
        %v747 = vrot.slane %v745, 4
        %v748 = vrot.slane %v233, 5
        %v749 = vsel %vm707, %v747, %v748
        %v750 = vrot.slane %v234, 5
        %v751 = vrot.slane %v750, 4
        %v752 = vrot.slane %v235, 5
        %v753 = vsel %vm707, %v751, %v752
        %v754 = vrot.slane %v752, 4
        %v755 = vrot.slane %v236, 5
        %v756 = vsel %vm707, %v754, %v755
        %v757 = vrot.slane %v237, 5
        %v758 = vrot.slane %v757, 4
        %v759 = vrot.slane %v238, 5
        %v760 = vsel %vm707, %v758, %v759
        %v761 = vrot.slane %v759, 4
        %v762 = vrot.slane %v239, 5
        %v763 = vsel %vm707, %v761, %v762
        %v764 = vrot.slane %v240, 5
        %v765 = vrot.slane %v764, 4
        %v766 = vrot.slane %v241, 5
        %v767 = vsel %vm707, %v765, %v766
        %v768 = vrot.slane %v766, 4
        %v769 = vrot.slane %v242, 5
        %v770 = vsel %vm707, %v768, %v769
        %v771 = vrot.slane %v243, 5
        %v772 = vrot.slane %v771, 4
        %v773 = vrot.slane %v244, 5
        %v774 = vsel %vm707, %v772, %v773
        %v775 = vrot.slane %v773, 4
        %v776 = vrot.slane %v245, 5
        %v777 = vsel %vm707, %v775, %v776
        %v778 = vrot.slane %v246, 5
        %v779 = vrot.slane %v778, 4
        %v780 = vrot.slane %v247, 5
        %v781 = vsel %vm707, %v779, %v780
        %v782 = vrot.slane %v780, 4
        %v783 = vrot.slane %v248, 5
        %v784 = vsel %vm707, %v782, %v783
        %v785 = vrot.slane %v249, 5
        %v786 = vrot.slane %v785, 4
        %v787 = vrot.slane %v250, 5
        %v788 = vsel %vm707, %v786, %v787
        %v789 = vrot.slane %v787, 4
        %v790 = vrot.slane %v251, 5
        %v791 = vsel %vm707, %v789, %v790
        %v792 = vrot.slane %v252, 5
        %v793 = vrot.slane %v792, 4
        %v794 = vrot.slane %v253, 5
        %v795 = vsel %vm707, %v793, %v794
        %v796 = vrot.slane %v794, 4
        %v797 = vrot.slane %v254, 5
        %v798 = vsel %vm707, %v796, %v797
        %v799 = vrot.slane %v255, 5
        %v800 = vrot.slane %v799, 4
        %v801 = vrot.slane %v256, 5
        %v802 = vsel %vm707, %v800, %v801
        %v803 = vrot.slane %v801, 4
        %v804 = vrot.slane %v257, 5
        %v805 = vsel %vm707, %v803, %v804
        %v806 = vrot.slane %v258, 5
        %v807 = vrot.slane %v806, 4
        %v808 = vrot.slane %v259, 5
        %v809 = vsel %vm707, %v807, %v808
        %v810 = vrot.slane %v808, 4
        %v811 = vrot.slane %v260, 5
        %v812 = vsel %vm707, %v810, %v811
        %v813 = vrot.slane %v261, 5
        %v814 = vrot.slane %v813, 4
        %v815 = vrot.slane %v262, 5
        %v816 = vsel %vm707, %v814, %v815
        %v817 = vrot.slane %v815, 4
        %v818 = vrot.slane %v263, 5
        %v819 = vsel %vm707, %v817, %v818
        %v821 = vshrl.u32 %v264, 16
        %v823 = vrot.slane %v821, 4
        %v824 = vshll.u32 %v264, 16
        %v826 = vrot.slane %v824, 5
        %v827 = vor.u32 %v823, %v826
        %v828 = vrot.slane %v827, 4
        %v830 = vshll.u32 %v265, 16
        %v832 = vrot.slane %v830, 5
        %v833 = vsel %vm272, %v828, %v832
        %v834 = vshrl.u32 %v265, 16
        %v836 = vrot.slane %v834, 4
        %v837 = vor.u32 %v836, %v832
        %v838 = vrot.slane %v837, 4
        %v840 = vshll.u32 %v266, 16
        %v842 = vrot.slane %v840, 5
        %v843 = vsel %vm272, %v838, %v842
        %v847 = vrot.slane %v264, 5
        %v848 = vrot.slane %v847, 4
        %v849 = vrot.slane %v265, 5
        %v850 = vsel %vm707, %v848, %v849
        %v851 = vrot.slane %v849, 4
        %v852 = vrot.slane %v266, 5
        %v853 = vsel %vm707, %v851, %v852
        %v855 = vshrl.u32 %v267, 16
        %v857 = vrot.slane %v855, 4
        %v858 = vshll.u32 %v267, 16
        %v860 = vrot.slane %v858, 5
        %v861 = vor.u32 %v857, %v860
        %v862 = vrot.slane %v861, 4
        %v864 = vshll.u32 %v268, 16
        %v866 = vrot.slane %v864, 5
        %v867 = vsel %vm272, %v862, %v866
        %v868 = vshrl.u32 %v268, 16
        %v870 = vrot.slane %v868, 4
        %v871 = vor.u32 %v870, %v866
        %v872 = vrot.slane %v871, 4
        %v874 = vshll.u32 %v269, 16
        %v876 = vrot.slane %v874, 5
        %v877 = vsel %vm272, %v872, %v876
        %v881 = vrot.slane %v267, 5
        %v882 = vrot.slane %v881, 4
        %v883 = vrot.slane %v268, 5
        %v884 = vsel %vm707, %v882, %v883
        %v885 = vrot.slane %v883, 4
        %v886 = vrot.slane %v269, 5
        %v887 = vsel %vm707, %v885, %v886
        %v888 = vunpack.c.l.b16 %v216
        %v889 = vunpack.c.l.b16 %v217
        %v890 = vunpack.c.l.b16 %v219
        %v891 = vunpack.c.l.b16 %v220
        %v892 = vunpack.c.l.b16 %v222
        %v893 = vunpack.c.l.b16 %v223
        %v894 = vunpack.c.l.b16 %v225
        %v895 = vunpack.c.l.b16 %v226
        %v896 = vunpack.c.l.b16 %v228
        %v897 = vunpack.c.l.b16 %v229
        %v898 = vunpack.c.l.b16 %v231
        %v899 = vunpack.c.l.b16 %v232
        %v900 = vunpack.c.l.b16 %v234
        %v901 = vunpack.c.l.b16 %v235
        %v902 = vunpack.c.l.b16 %v237
        %v903 = vunpack.c.l.b16 %v238
        %v904 = vunpack.c.l.b16 %v240
        %v905 = vunpack.c.l.b16 %v241
        %v906 = vunpack.c.l.b16 %v243
        %v907 = vunpack.c.l.b16 %v244
        %v908 = vunpack.c.l.b16 %v246
        %v909 = vunpack.c.l.b16 %v247
        %v910 = vunpack.c.l.b16 %v249
        %v911 = vunpack.c.l.b16 %v250
        %v912 = vunpack.c.l.b16 %v252
        %v913 = vunpack.c.l.b16 %v253
        %v914 = vunpack.c.l.b16 %v255
        %v915 = vunpack.c.l.b16 %v256
        %v916 = vunpack.c.l.b16 %v258
        %v917 = vunpack.c.l.b16 %v259
        %v918 = vunpack.c.l.b16 %v261
        %v919 = vunpack.c.l.b16 %v262
        %v920 = vpack.c.b16 %v889, %v888
        %v921 = vpack.c.b16 %v891, %v890
        %v922 = vpack.c.b16 %v893, %v892
        %v923 = vpack.c.b16 %v895, %v894
        %v924 = vpack.c.b16 %v897, %v896
        %v925 = vpack.c.b16 %v899, %v898
        %v926 = vpack.c.b16 %v901, %v900
        %v927 = vpack.c.b16 %v903, %v902
        %v928 = vpack.c.b16 %v905, %v904
        %v929 = vpack.c.b16 %v907, %v906
        %v930 = vpack.c.b16 %v909, %v908
        %v931 = vpack.c.b16 %v911, %v910
        %v932 = vpack.c.b16 %v913, %v912
        %v933 = vpack.c.b16 %v915, %v914
        %v934 = vpack.c.b16 %v917, %v916
        %v935 = vpack.c.b16 %v919, %v918
        %v936 = vunpack.c.l.b16 %v286
        %v937 = vunpack.c.l.b16 %v296
        %v938 = vunpack.c.l.b16 %v310
        %v939 = vunpack.c.l.b16 %v320
        %v940 = vunpack.c.l.b16 %v334
        %v941 = vunpack.c.l.b16 %v344
        %v942 = vunpack.c.l.b16 %v358
        %v943 = vunpack.c.l.b16 %v368
        %v944 = vunpack.c.l.b16 %v382
        %v945 = vunpack.c.l.b16 %v392
        %v946 = vunpack.c.l.b16 %v406
        %v947 = vunpack.c.l.b16 %v416
        %v948 = vunpack.c.l.b16 %v430
        %v949 = vunpack.c.l.b16 %v440
        %v950 = vunpack.c.l.b16 %v454
        %v951 = vunpack.c.l.b16 %v464
        %v952 = vunpack.c.l.b16 %v478
        %v953 = vunpack.c.l.b16 %v488
        %v954 = vunpack.c.l.b16 %v502
        %v955 = vunpack.c.l.b16 %v512
        %v956 = vunpack.c.l.b16 %v526
        %v957 = vunpack.c.l.b16 %v536
        %v958 = vunpack.c.l.b16 %v550
        %v959 = vunpack.c.l.b16 %v560
        %v960 = vunpack.c.l.b16 %v574
        %v961 = vunpack.c.l.b16 %v584
        %v962 = vunpack.c.l.b16 %v598
        %v963 = vunpack.c.l.b16 %v608
        %v964 = vunpack.c.l.b16 %v622
        %v965 = vunpack.c.l.b16 %v632
        %v966 = vunpack.c.l.b16 %v646
        %v967 = vunpack.c.l.b16 %v656
        %v968 = vpack.c.b16 %v937, %v936
        %v969 = vpack.c.b16 %v939, %v938
        %v970 = vpack.c.b16 %v941, %v940
        %v971 = vpack.c.b16 %v943, %v942
        %v972 = vpack.c.b16 %v945, %v944
        %v973 = vpack.c.b16 %v947, %v946
        %v974 = vpack.c.b16 %v949, %v948
        %v975 = vpack.c.b16 %v951, %v950
        %v976 = vpack.c.b16 %v953, %v952
        %v977 = vpack.c.b16 %v955, %v954
        %v978 = vpack.c.b16 %v957, %v956
        %v979 = vpack.c.b16 %v959, %v958
        %v980 = vpack.c.b16 %v961, %v960
        %v981 = vpack.c.b16 %v963, %v962
        %v982 = vpack.c.b16 %v965, %v964
        %v983 = vpack.c.b16 %v967, %v966
        %984 = vrot.lane.b32.xlu0 %v968, 4
        %v985 = vpop.permute.xlu0 %984
        %986 = vrot.lane.b32.xlu0 %v969, 4
        %v987 = vpop.permute.xlu0 %986
        %988 = vrot.lane.b32.xlu0 %v970, 4
        %v989 = vpop.permute.xlu0 %988
        %990 = vrot.lane.b32.xlu0 %v971, 4
        %v991 = vpop.permute.xlu0 %990
        %992 = vrot.lane.b32.xlu0 %v972, 4
        %v993 = vpop.permute.xlu0 %992
        %994 = vrot.lane.b32.xlu0 %v973, 4
        %v995 = vpop.permute.xlu0 %994
        %996 = vrot.lane.b32.xlu0 %v974, 4
        %v997 = vpop.permute.xlu0 %996
        %998 = vrot.lane.b32.xlu0 %v975, 4
        %v999 = vpop.permute.xlu0 %998
        %1000 = vrot.lane.b32.xlu0 %v976, 4
        %v1001 = vpop.permute.xlu0 %1000
        %1002 = vrot.lane.b32.xlu0 %v977, 4
        %v1003 = vpop.permute.xlu0 %1002
        %1004 = vrot.lane.b32.xlu0 %v978, 4
        %v1005 = vpop.permute.xlu0 %1004
        %1006 = vrot.lane.b32.xlu0 %v979, 4
        %v1007 = vpop.permute.xlu0 %1006
        %1008 = vrot.lane.b32.xlu0 %v980, 4
        %v1009 = vpop.permute.xlu0 %1008
        %1010 = vrot.lane.b32.xlu0 %v981, 4
        %v1011 = vpop.permute.xlu0 %1010
        %1012 = vrot.lane.b32.xlu0 %v982, 4
        %v1013 = vpop.permute.xlu0 %1012
        %1014 = vrot.lane.b32.xlu0 %v983, 4
        %v1015 = vpop.permute.xlu0 %1014
        %v1016 = vunpack.c.l.b16 %v711
        %v1017 = vunpack.c.l.b16 %v714
        %v1018 = vunpack.c.l.b16 %v718
        %v1019 = vunpack.c.l.b16 %v721
        %v1020 = vunpack.c.l.b16 %v725
        %v1021 = vunpack.c.l.b16 %v728
        %v1022 = vunpack.c.l.b16 %v732
        %v1023 = vunpack.c.l.b16 %v735
        %v1024 = vunpack.c.l.b16 %v739
        %v1025 = vunpack.c.l.b16 %v742
        %v1026 = vunpack.c.l.b16 %v746
        %v1027 = vunpack.c.l.b16 %v749
        %v1028 = vunpack.c.l.b16 %v753
        %v1029 = vunpack.c.l.b16 %v756
        %v1030 = vunpack.c.l.b16 %v760
        %v1031 = vunpack.c.l.b16 %v763
        %v1032 = vunpack.c.l.b16 %v767
        %v1033 = vunpack.c.l.b16 %v770
        %v1034 = vunpack.c.l.b16 %v774
        %v1035 = vunpack.c.l.b16 %v777
        %v1036 = vunpack.c.l.b16 %v781
        %v1037 = vunpack.c.l.b16 %v784
        %v1038 = vunpack.c.l.b16 %v788
        %v1039 = vunpack.c.l.b16 %v791
        %v1040 = vunpack.c.l.b16 %v795
        %v1041 = vunpack.c.l.b16 %v798
        %v1042 = vunpack.c.l.b16 %v802
        %v1043 = vunpack.c.l.b16 %v805
        %v1044 = vunpack.c.l.b16 %v809
        %v1045 = vunpack.c.l.b16 %v812
        %v1046 = vunpack.c.l.b16 %v816
        %v1047 = vunpack.c.l.b16 %v819
        %v1048 = vpack.c.b16 %v1017, %v1016
        %v1049 = vpack.c.b16 %v1019, %v1018
        %v1050 = vpack.c.b16 %v1021, %v1020
        %v1051 = vpack.c.b16 %v1023, %v1022
        %v1052 = vpack.c.b16 %v1025, %v1024
        %v1053 = vpack.c.b16 %v1027, %v1026
        %v1054 = vpack.c.b16 %v1029, %v1028
        %v1055 = vpack.c.b16 %v1031, %v1030
        %v1056 = vpack.c.b16 %v1033, %v1032
        %v1057 = vpack.c.b16 %v1035, %v1034
        %v1058 = vpack.c.b16 %v1037, %v1036
        %v1059 = vpack.c.b16 %v1039, %v1038
        %v1060 = vpack.c.b16 %v1041, %v1040
        %v1061 = vpack.c.b16 %v1043, %v1042
        %v1062 = vpack.c.b16 %v1045, %v1044
        %v1063 = vpack.c.b16 %v1047, %v1046
        %1064 = vrot.lane.b32.xlu0 %v1048, 8
        %v1065 = vpop.permute.xlu0 %1064
        %1066 = vrot.lane.b32.xlu0 %v1049, 8
        %v1067 = vpop.permute.xlu0 %1066
        %1068 = vrot.lane.b32.xlu0 %v1050, 8
        %v1069 = vpop.permute.xlu0 %1068
        %1070 = vrot.lane.b32.xlu0 %v1051, 8
        %v1071 = vpop.permute.xlu0 %1070
        %1072 = vrot.lane.b32.xlu0 %v1052, 8
        %v1073 = vpop.permute.xlu0 %1072
        %1074 = vrot.lane.b32.xlu0 %v1053, 8
        %v1075 = vpop.permute.xlu0 %1074
        %1076 = vrot.lane.b32.xlu0 %v1054, 8
        %v1077 = vpop.permute.xlu0 %1076
        %1078 = vrot.lane.b32.xlu0 %v1055, 8
        %v1079 = vpop.permute.xlu0 %1078
        %1080 = vrot.lane.b32.xlu0 %v1056, 8
        %v1081 = vpop.permute.xlu0 %1080
        %1082 = vrot.lane.b32.xlu0 %v1057, 8
        %v1083 = vpop.permute.xlu0 %1082
        %1084 = vrot.lane.b32.xlu0 %v1058, 8
        %v1085 = vpop.permute.xlu0 %1084
        %1086 = vrot.lane.b32.xlu0 %v1059, 8
        %v1087 = vpop.permute.xlu0 %1086
        %1088 = vrot.lane.b32.xlu0 %v1060, 8
        %v1089 = vpop.permute.xlu0 %1088
        %1090 = vrot.lane.b32.xlu0 %v1061, 8
        %v1091 = vpop.permute.xlu0 %1090
        %1092 = vrot.lane.b32.xlu0 %v1062, 8
        %v1093 = vpop.permute.xlu0 %1092
        %1094 = vrot.lane.b32.xlu0 %v1063, 8
        %v1095 = vpop.permute.xlu0 %1094
        %v1096 = vunpack.c.l.b16 %v264
        %v1097 = vunpack.c.l.b16 %v265
        %v1098 = vpack.c.b16 %v1097, %v1096
        %1099 = vrot.lane.b32.xlu0 %v921, 12
        %v1100 = vpop.permute.xlu0 %1099
        %1101 = vrot.lane.b32.xlu0 %v922, 12
        %v1102 = vpop.permute.xlu0 %1101
        %1103 = vrot.lane.b32.xlu0 %v923, 12
        %v1104 = vpop.permute.xlu0 %1103
        %1105 = vrot.lane.b32.xlu0 %v924, 12
        %v1106 = vpop.permute.xlu0 %1105
        %1107 = vrot.lane.b32.xlu0 %v925, 12
        %v1108 = vpop.permute.xlu0 %1107
        %1109 = vrot.lane.b32.xlu0 %v926, 12
        %v1110 = vpop.permute.xlu0 %1109
        %1111 = vrot.lane.b32.xlu0 %v927, 12
        %v1112 = vpop.permute.xlu0 %1111
        %1113 = vrot.lane.b32.xlu0 %v928, 12
        %v1114 = vpop.permute.xlu0 %1113
        %1115 = vrot.lane.b32.xlu0 %v929, 12
        %v1116 = vpop.permute.xlu0 %1115
        %1117 = vrot.lane.b32.xlu0 %v930, 12
        %v1118 = vpop.permute.xlu0 %1117
        %1119 = vrot.lane.b32.xlu0 %v931, 12
        %v1120 = vpop.permute.xlu0 %1119
        %1121 = vrot.lane.b32.xlu0 %v932, 12
        %v1122 = vpop.permute.xlu0 %1121
        %1123 = vrot.lane.b32.xlu0 %v933, 12
        %v1124 = vpop.permute.xlu0 %1123
        %1125 = vrot.lane.b32.xlu0 %v934, 12
        %v1126 = vpop.permute.xlu0 %1125
        %1127 = vrot.lane.b32.xlu0 %v935, 12
        %v1128 = vpop.permute.xlu0 %1127
        %1129 = vrot.lane.b32.xlu0 %v1098, 12
        %v1130 = vpop.permute.xlu0 %1129
        %v1131 = vunpack.c.l.b16 %v833
        %v1132 = vunpack.c.l.b16 %v843
        %v1133 = vpack.c.b16 %v1132, %v1131
        %1134 = vrot.lane.b32.xlu0 %v969, 16
        %v1135 = vpop.permute.xlu0 %1134
        %1136 = vrot.lane.b32.xlu0 %v970, 16
        %v1137 = vpop.permute.xlu0 %1136
        %1138 = vrot.lane.b32.xlu0 %v971, 16
        %v1139 = vpop.permute.xlu0 %1138
        %1140 = vrot.lane.b32.xlu0 %v972, 16
        %v1141 = vpop.permute.xlu0 %1140
        %1142 = vrot.lane.b32.xlu0 %v973, 16
        %v1143 = vpop.permute.xlu0 %1142
        %1144 = vrot.lane.b32.xlu0 %v974, 16
        %v1145 = vpop.permute.xlu0 %1144
        %1146 = vrot.lane.b32.xlu0 %v975, 16
        %v1147 = vpop.permute.xlu0 %1146
        %1148 = vrot.lane.b32.xlu0 %v976, 16
        %v1149 = vpop.permute.xlu0 %1148
        %1150 = vrot.lane.b32.xlu0 %v977, 16
        %v1151 = vpop.permute.xlu0 %1150
        %1152 = vrot.lane.b32.xlu0 %v978, 16
        %v1153 = vpop.permute.xlu0 %1152
        %1154 = vrot.lane.b32.xlu0 %v979, 16
        %v1155 = vpop.permute.xlu0 %1154
        %1156 = vrot.lane.b32.xlu0 %v980, 16
        %v1157 = vpop.permute.xlu0 %1156
        %1158 = vrot.lane.b32.xlu0 %v981, 16
        %v1159 = vpop.permute.xlu0 %1158
        %1160 = vrot.lane.b32.xlu0 %v982, 16
        %v1161 = vpop.permute.xlu0 %1160
        %1162 = vrot.lane.b32.xlu0 %v983, 16
        %v1163 = vpop.permute.xlu0 %1162
        %1164 = vrot.lane.b32.xlu0 %v1133, 16
        %v1165 = vpop.permute.xlu0 %1164
        %v1166 = vunpack.c.l.b16 %v850
        %v1167 = vunpack.c.l.b16 %v853
        %v1168 = vpack.c.b16 %v1167, %v1166
        %1169 = vrot.lane.b32.xlu0 %v1049, 20
        %v1170 = vpop.permute.xlu0 %1169
        %1171 = vrot.lane.b32.xlu0 %v1050, 20
        %v1172 = vpop.permute.xlu0 %1171
        %1173 = vrot.lane.b32.xlu0 %v1051, 20
        %v1174 = vpop.permute.xlu0 %1173
        %1175 = vrot.lane.b32.xlu0 %v1052, 20
        %v1176 = vpop.permute.xlu0 %1175
        %1177 = vrot.lane.b32.xlu0 %v1053, 20
        %v1178 = vpop.permute.xlu0 %1177
        %1179 = vrot.lane.b32.xlu0 %v1054, 20
        %v1180 = vpop.permute.xlu0 %1179
        %1181 = vrot.lane.b32.xlu0 %v1055, 20
        %v1182 = vpop.permute.xlu0 %1181
        %1183 = vrot.lane.b32.xlu0 %v1056, 20
        %v1184 = vpop.permute.xlu0 %1183
        %1185 = vrot.lane.b32.xlu0 %v1057, 20
        %v1186 = vpop.permute.xlu0 %1185
        %1187 = vrot.lane.b32.xlu0 %v1058, 20
        %v1188 = vpop.permute.xlu0 %1187
        %1189 = vrot.lane.b32.xlu0 %v1059, 20
        %v1190 = vpop.permute.xlu0 %1189
        %1191 = vrot.lane.b32.xlu0 %v1060, 20
        %v1192 = vpop.permute.xlu0 %1191
        %1193 = vrot.lane.b32.xlu0 %v1061, 20
        %v1194 = vpop.permute.xlu0 %1193
        %1195 = vrot.lane.b32.xlu0 %v1062, 20
        %v1196 = vpop.permute.xlu0 %1195
        %1197 = vrot.lane.b32.xlu0 %v1063, 20
        %v1198 = vpop.permute.xlu0 %1197
        %1199 = vrot.lane.b32.xlu0 %v1168, 20
        %v1200 = vpop.permute.xlu0 %1199
        %v1201 = vunpack.c.l.b16 %v267
        %v1202 = vunpack.c.l.b16 %v268
        %v1203 = vpack.c.b16 %v1202, %v1201
        %1204 = vrot.lane.b32.xlu0 %v922, 24
        %v1205 = vpop.permute.xlu0 %1204
        %1206 = vrot.lane.b32.xlu0 %v923, 24
        %v1207 = vpop.permute.xlu0 %1206
        %1208 = vrot.lane.b32.xlu0 %v924, 24
        %v1209 = vpop.permute.xlu0 %1208
        %1210 = vrot.lane.b32.xlu0 %v925, 24
        %v1211 = vpop.permute.xlu0 %1210
        %1212 = vrot.lane.b32.xlu0 %v926, 24
        %v1213 = vpop.permute.xlu0 %1212
        %1214 = vrot.lane.b32.xlu0 %v927, 24
        %v1215 = vpop.permute.xlu0 %1214
        %1216 = vrot.lane.b32.xlu0 %v928, 24
        %v1217 = vpop.permute.xlu0 %1216
        %1218 = vrot.lane.b32.xlu0 %v929, 24
        %v1219 = vpop.permute.xlu0 %1218
        %1220 = vrot.lane.b32.xlu0 %v930, 24
        %v1221 = vpop.permute.xlu0 %1220
        %1222 = vrot.lane.b32.xlu0 %v931, 24
        %v1223 = vpop.permute.xlu0 %1222
        %1224 = vrot.lane.b32.xlu0 %v932, 24
        %v1225 = vpop.permute.xlu0 %1224
        %1226 = vrot.lane.b32.xlu0 %v933, 24
        %v1227 = vpop.permute.xlu0 %1226
        %1228 = vrot.lane.b32.xlu0 %v934, 24
        %v1229 = vpop.permute.xlu0 %1228
        %1230 = vrot.lane.b32.xlu0 %v935, 24
        %v1231 = vpop.permute.xlu0 %1230
        %1232 = vrot.lane.b32.xlu0 %v1098, 24
        %v1233 = vpop.permute.xlu0 %1232
        %1234 = vrot.lane.b32.xlu0 %v1203, 24
        %v1235 = vpop.permute.xlu0 %1234
        %v1236 = vunpack.c.l.b16 %v867
        %v1237 = vunpack.c.l.b16 %v877
        %v1238 = vpack.c.b16 %v1237, %v1236
        %1239 = vrot.lane.b32.xlu0 %v970, 28
        %v1240 = vpop.permute.xlu0 %1239
        %1241 = vrot.lane.b32.xlu0 %v971, 28
        %v1242 = vpop.permute.xlu0 %1241
        %1243 = vrot.lane.b32.xlu0 %v972, 28
        %v1244 = vpop.permute.xlu0 %1243
        %1245 = vrot.lane.b32.xlu0 %v973, 28
        %v1246 = vpop.permute.xlu0 %1245
        %1247 = vrot.lane.b32.xlu0 %v974, 28
        %v1248 = vpop.permute.xlu0 %1247
        %1249 = vrot.lane.b32.xlu0 %v975, 28
        %v1250 = vpop.permute.xlu0 %1249
        %1251 = vrot.lane.b32.xlu0 %v976, 28
        %v1252 = vpop.permute.xlu0 %1251
        %1253 = vrot.lane.b32.xlu0 %v977, 28
        %v1254 = vpop.permute.xlu0 %1253
        %1255 = vrot.lane.b32.xlu0 %v978, 28
        %v1256 = vpop.permute.xlu0 %1255
        %1257 = vrot.lane.b32.xlu0 %v979, 28
        %v1258 = vpop.permute.xlu0 %1257
        %1259 = vrot.lane.b32.xlu0 %v980, 28
        %v1260 = vpop.permute.xlu0 %1259
        %1261 = vrot.lane.b32.xlu0 %v981, 28
        %v1262 = vpop.permute.xlu0 %1261
        %1263 = vrot.lane.b32.xlu0 %v982, 28
        %v1264 = vpop.permute.xlu0 %1263
        %1265 = vrot.lane.b32.xlu0 %v983, 28
        %v1266 = vpop.permute.xlu0 %1265
        %1267 = vrot.lane.b32.xlu0 %v1133, 28
        %v1268 = vpop.permute.xlu0 %1267
        %1269 = vrot.lane.b32.xlu0 %v1238, 28
        %v1270 = vpop.permute.xlu0 %1269
        %v1271 = vunpack.c.l.b16 %v884
        %v1272 = vunpack.c.l.b16 %v887
        %v1273 = vpack.c.b16 %v1272, %v1271
        %1274 = vrot.lane.b32.xlu0 %v1050, 32
        %v1275 = vpop.permute.xlu0 %1274
        %1276 = vrot.lane.b32.xlu0 %v1051, 32
        %v1277 = vpop.permute.xlu0 %1276
        %1278 = vrot.lane.b32.xlu0 %v1052, 32
        %v1279 = vpop.permute.xlu0 %1278
        %1280 = vrot.lane.b32.xlu0 %v1053, 32
        %v1281 = vpop.permute.xlu0 %1280
        %1282 = vrot.lane.b32.xlu0 %v1054, 32
        %v1283 = vpop.permute.xlu0 %1282
        %1284 = vrot.lane.b32.xlu0 %v1055, 32
        %v1285 = vpop.permute.xlu0 %1284
        %1286 = vrot.lane.b32.xlu0 %v1056, 32
        %v1287 = vpop.permute.xlu0 %1286
        %1288 = vrot.lane.b32.xlu0 %v1057, 32
        %v1289 = vpop.permute.xlu0 %1288
        %1290 = vrot.lane.b32.xlu0 %v1058, 32
        %v1291 = vpop.permute.xlu0 %1290
        %1292 = vrot.lane.b32.xlu0 %v1059, 32
        %v1293 = vpop.permute.xlu0 %1292
        %1294 = vrot.lane.b32.xlu0 %v1060, 32
        %v1295 = vpop.permute.xlu0 %1294
        %1296 = vrot.lane.b32.xlu0 %v1061, 32
        %v1297 = vpop.permute.xlu0 %1296
        %1298 = vrot.lane.b32.xlu0 %v1062, 32
        %v1299 = vpop.permute.xlu0 %1298
        %1300 = vrot.lane.b32.xlu0 %v1063, 32
        %v1301 = vpop.permute.xlu0 %1300
        %1302 = vrot.lane.b32.xlu0 %v1168, 32
        %v1303 = vpop.permute.xlu0 %1302
        %1304 = vrot.lane.b32.xlu0 %v1273, 32
        %v1305 = vpop.permute.xlu0 %1304
        %vm1306 = vcmask 31744
        %v1309 = vsel %vm1306, %v920, %v985
        %v1312 = vsel %vm1306, %v921, %v987
        %v1315 = vsel %vm1306, %v922, %v989
        %v1318 = vsel %vm1306, %v923, %v991
        %v1321 = vsel %vm1306, %v924, %v993
        %v1324 = vsel %vm1306, %v925, %v995
        %v1327 = vsel %vm1306, %v926, %v997
        %v1330 = vsel %vm1306, %v927, %v999
        %v1333 = vsel %vm1306, %v928, %v1001
        %v1336 = vsel %vm1306, %v929, %v1003
        %v1339 = vsel %vm1306, %v930, %v1005
        %v1342 = vsel %vm1306, %v931, %v1007
        %v1345 = vsel %vm1306, %v932, %v1009
        %v1348 = vsel %vm1306, %v933, %v1011
        %v1351 = vsel %vm1306, %v934, %v1013
        %v1354 = vsel %vm1306, %v935, %v1015
        %vm1355 = vcmask 64512
        %v1357 = vsel %vm1355, %v1309, %v1065
        %v1359 = vsel %vm1355, %v1312, %v1067
        %v1361 = vsel %vm1355, %v1315, %v1069
        %v1363 = vsel %vm1355, %v1318, %v1071
        %v1365 = vsel %vm1355, %v1321, %v1073
        %v1367 = vsel %vm1355, %v1324, %v1075
        %v1369 = vsel %vm1355, %v1327, %v1077
        %v1371 = vsel %vm1355, %v1330, %v1079
        %v1373 = vsel %vm1355, %v1333, %v1081
        %v1375 = vsel %vm1355, %v1336, %v1083
        %v1377 = vsel %vm1355, %v1339, %v1085
        %v1379 = vsel %vm1355, %v1342, %v1087
        %v1381 = vsel %vm1355, %v1345, %v1089
        %v1383 = vsel %vm1355, %v1348, %v1091
        %v1385 = vsel %vm1355, %v1351, %v1093
        %v1387 = vsel %vm1355, %v1354, %v1095
        %vm1388 = vcmask 97280
        %v1390 = vsel %vm1388, %v1357, %v1100
        %v1392 = vsel %vm1388, %v1359, %v1102
        %v1394 = vsel %vm1388, %v1361, %v1104
        %v1396 = vsel %vm1388, %v1363, %v1106
        %v1398 = vsel %vm1388, %v1365, %v1108
        %v1400 = vsel %vm1388, %v1367, %v1110
        %v1402 = vsel %vm1388, %v1369, %v1112
        %v1404 = vsel %vm1388, %v1371, %v1114
        %v1406 = vsel %vm1388, %v1373, %v1116
        %v1408 = vsel %vm1388, %v1375, %v1118
        %v1410 = vsel %vm1388, %v1377, %v1120
        %v1412 = vsel %vm1388, %v1379, %v1122
        %v1414 = vsel %vm1388, %v1381, %v1124
        %v1416 = vsel %vm1388, %v1383, %v1126
        %v1418 = vsel %vm1388, %v1385, %v1128
        %v1420 = vsel %vm1388, %v1387, %v1130
        %vm1421 = vcmask 130048
        %v1423 = vsel %vm1421, %v1390, %v1135
        %v1425 = vsel %vm1421, %v1392, %v1137
        %v1427 = vsel %vm1421, %v1394, %v1139
        %v1429 = vsel %vm1421, %v1396, %v1141
        %v1431 = vsel %vm1421, %v1398, %v1143
        %v1433 = vsel %vm1421, %v1400, %v1145
        %v1435 = vsel %vm1421, %v1402, %v1147
        %v1437 = vsel %vm1421, %v1404, %v1149
        %v1439 = vsel %vm1421, %v1406, %v1151
        %v1441 = vsel %vm1421, %v1408, %v1153
        %v1443 = vsel %vm1421, %v1410, %v1155
        %v1445 = vsel %vm1421, %v1412, %v1157
        %v1447 = vsel %vm1421, %v1414, %v1159
        %v1449 = vsel %vm1421, %v1416, %v1161
        %v1451 = vsel %vm1421, %v1418, %v1163
        %v1453 = vsel %vm1421, %v1420, %v1165
        %vm1454 = vcmask 162816
        %v1456 = vsel %vm1454, %v1423, %v1170
        %v1458 = vsel %vm1454, %v1425, %v1172
        %v1460 = vsel %vm1454, %v1427, %v1174
        %v1462 = vsel %vm1454, %v1429, %v1176
        %v1464 = vsel %vm1454, %v1431, %v1178
        %v1466 = vsel %vm1454, %v1433, %v1180
        %v1468 = vsel %vm1454, %v1435, %v1182
        %v1470 = vsel %vm1454, %v1437, %v1184
        %v1472 = vsel %vm1454, %v1439, %v1186
        %v1474 = vsel %vm1454, %v1441, %v1188
        %v1476 = vsel %vm1454, %v1443, %v1190
        %v1478 = vsel %vm1454, %v1445, %v1192
        %v1480 = vsel %vm1454, %v1447, %v1194
        %v1482 = vsel %vm1454, %v1449, %v1196
        %v1484 = vsel %vm1454, %v1451, %v1198
        %v1486 = vsel %vm1454, %v1453, %v1200
        %vm1487 = vcmask 195584
        %v1489 = vsel %vm1487, %v1456, %v1205
        %v1491 = vsel %vm1487, %v1458, %v1207
        %v1493 = vsel %vm1487, %v1460, %v1209
        %v1495 = vsel %vm1487, %v1462, %v1211
        %v1497 = vsel %vm1487, %v1464, %v1213
        %v1499 = vsel %vm1487, %v1466, %v1215
        %v1501 = vsel %vm1487, %v1468, %v1217
        %v1503 = vsel %vm1487, %v1470, %v1219
        %v1505 = vsel %vm1487, %v1472, %v1221
        %v1507 = vsel %vm1487, %v1474, %v1223
        %v1509 = vsel %vm1487, %v1476, %v1225
        %v1511 = vsel %vm1487, %v1478, %v1227
        %v1513 = vsel %vm1487, %v1480, %v1229
        %v1515 = vsel %vm1487, %v1482, %v1231
        %v1517 = vsel %vm1487, %v1484, %v1233
        %v1519 = vsel %vm1487, %v1486, %v1235
        %vm1520 = vcmask 228352
        %v1522 = vsel %vm1520, %v1489, %v1240
        %v1524 = vsel %vm1520, %v1491, %v1242
        %v1526 = vsel %vm1520, %v1493, %v1244
        %v1528 = vsel %vm1520, %v1495, %v1246
        %v1530 = vsel %vm1520, %v1497, %v1248
        %v1532 = vsel %vm1520, %v1499, %v1250
        %v1534 = vsel %vm1520, %v1501, %v1252
        %v1536 = vsel %vm1520, %v1503, %v1254
        %v1538 = vsel %vm1520, %v1505, %v1256
        %v1540 = vsel %vm1520, %v1507, %v1258
        %v1542 = vsel %vm1520, %v1509, %v1260
        %v1544 = vsel %vm1520, %v1511, %v1262
        %v1546 = vsel %vm1520, %v1513, %v1264
        %v1548 = vsel %vm1520, %v1515, %v1266
        %v1550 = vsel %vm1520, %v1517, %v1268
        %v1552 = vsel %vm1520, %v1519, %v1270
        %vm1553 = vcmask 261120
        %v1555 = vsel %vm1553, %v1522, %v1275
        %v1557 = vsel %vm1553, %v1524, %v1277
        %v1559 = vsel %vm1553, %v1526, %v1279
        %v1561 = vsel %vm1553, %v1528, %v1281
        %v1563 = vsel %vm1553, %v1530, %v1283
        %v1565 = vsel %vm1553, %v1532, %v1285
        %v1567 = vsel %vm1553, %v1534, %v1287
        %v1569 = vsel %vm1553, %v1536, %v1289
        %v1571 = vsel %vm1553, %v1538, %v1291
        %v1573 = vsel %vm1553, %v1540, %v1293
        %v1575 = vsel %vm1553, %v1542, %v1295
        %v1577 = vsel %vm1553, %v1544, %v1297
        %v1579 = vsel %vm1553, %v1546, %v1299
        %v1581 = vsel %vm1553, %v1548, %v1301
        %v1583 = vsel %vm1553, %v1550, %v1303
        %v1585 = vsel %vm1553, %v1552, %v1305
        %v1586 = vld [vmem:[#allocation5] sm:$0xf]
        %v1587 = vld [vmem:[#allocation5 + $0x4] sm:$0xf]
        %v1588 = vld [vmem:[#allocation5 + $0x8] sm:$0xf]
        %v1589 = vld [vmem:[#allocation5 + $0xc] sm:$0xf]
        %v1590 = vld [vmem:[#allocation5 + $0x10] sm:$0x3]
        %v1596 = vunpack.c.l.b16 %v1586
        %v1597 = vunpack.c.l.b16 %v1587
        %v1598 = vunpack.c.l.b16 %v1588
        %v1599 = vunpack.c.l.b16 %v1589
        %v1600 = vunpack.c.l.b16 %v1590
        %v1601 = vpack.c.b16 %v1597, %v1596
        %v1602 = vpack.c.b16 %v1599, %v1598
        %v1603 = vpack.c.b16 %v1600, %v1600
        %vm1606 = vcmask 293888
        %v1607 = vsel %vm1606, %v1555, 0
        %v1609 = vsel %vm1606, %v1557, 0
        %v1611 = vsel %vm1606, %v1559, 0
        %v1613 = vsel %vm1606, %v1561, 0
        %v1615 = vsel %vm1606, %v1563, 0
        %v1617 = vsel %vm1606, %v1565, 0
        %v1619 = vsel %vm1606, %v1567, 0
        %v1621 = vsel %vm1606, %v1569, 0
        %v1623 = vsel %vm1606, %v1571, 0
        %v1625 = vsel %vm1606, %v1573, 0
        %v1627 = vsel %vm1606, %v1575, 0
        %v1629 = vsel %vm1606, %v1577, 0
        %v1631 = vsel %vm1606, %v1579, 0
        %v1633 = vsel %vm1606, %v1581, 0
        %v1635 = vsel %vm1606, %v1583, 0
        %v1637 = vsel %vm1606, %v1585, 0
        %vm1639 = vcmask 1041408
        %v1641 = vsel %vm1639, %v1603, 0
        %1643 = vmatprep.subr.bf16.mxu0 0
        %1644 = vmatpush1.bf16.msra.mxu0 %v1601
        %1645 = vmatprep.subr.bf16.mxu0 0
        %1646 = vmatpush1.bf16.msra.mxu0 %v1602
        %1647 = vmatprep.subr.bf16.mxu0 0
        %1648 = vmatpush1.bf16.msra.mxu0 %v1641
        %1649 = vmatprep.subr.bf16.mxu0 0
        %1650 = vmatpush1.bf16.msra.mxu0 0
        %1651 = vmatprep.subr.bf16.mxu0 0
        %1652 = vmatpush1.bf16.msra.mxu0 0
        %1653 = vmatprep.subr.bf16.mxu0 0
        %1654 = vmatpush1.bf16.msra.mxu0 0
        %1655 = vmatprep.subr.bf16.mxu0 0
        %1656 = vmatpush1.bf16.msra.mxu0 0
        %1657 = vmatprep.subr.bf16.mxu0 0
        %1658 = vmatpush1.bf16.msra.mxu0 0
        %1659 = vmatprep.subr.bf16.mxu0 0
        %1660 = vmatpush1.bf16.msra.mxu0 0
        %1661 = vmatprep.subr.bf16.mxu0 0
        %1662 = vmatpush1.bf16.msra.mxu0 0
        %1663 = vmatprep.subr.bf16.mxu0 0
        %1664 = vmatpush1.bf16.msra.mxu0 0
        %1665 = vmatprep.subr.bf16.mxu0 0
        %1666 = vmatpush1.bf16.msra.mxu0 0
        %1667 = vmatprep.subr.bf16.mxu0 0
        %1668 = vmatpush1.bf16.msra.mxu0 0
        %1669 = vmatprep.subr.bf16.mxu0 0
        %1670 = vmatpush1.bf16.msra.mxu0 0
        %1671 = vmatprep.subr.bf16.mxu0 0
        %1672 = vmatpush1.bf16.msra.mxu0 0
        %1673 = vmatprep.subr.bf16.mxu0 0
        %1674 = vmatpush1.bf16.msra.mxu0 0
        %1675 = vmatprep.mubr.bf16.mxu0 0
        %1676 = vmatmul.mubr.bf16.gmra.mrb[0].mxu0 %v1607
        %v1677 = vpop.f32.mrb[0].mxu0
        %v1678 = vadd.f32 0.0, %v1677
        %v1679 = vpop.f32.mrb[0].mxu0
        %v1680 = vpop.f32.mrb[0].mxu0
        %v1681 = vadd.f32 0.0, %v1680
        %v1682 = vpop.f32.mrb[0].mxu0
        %1683 = vmatprep.mubr.bf16.mxu0 0
        %1684 = vmatmul.mubr.bf16.gmra.mrb[0].mxu0 %v1609
        %v1685 = vpop.f32.mrb[0].mxu0
        %v1686 = vadd.f32 0.0, %v1685
        %v1687 = vpop.f32.mrb[0].mxu0
        %v1688 = vpop.f32.mrb[0].mxu0
        %v1689 = vadd.f32 0.0, %v1688
        %v1690 = vpop.f32.mrb[0].mxu0
        %1691 = vmatprep.mubr.bf16.mxu0 0
        %1692 = vmatmul.mubr.bf16.gmra.mrb[0].mxu0 %v1611
        %v1693 = vpop.f32.mrb[0].mxu0
        %v1694 = vadd.f32 0.0, %v1693
        %v1695 = vpop.f32.mrb[0].mxu0
        %v1696 = vpop.f32.mrb[0].mxu0
        %v1697 = vadd.f32 0.0, %v1696
        %v1698 = vpop.f32.mrb[0].mxu0
        %1699 = vmatprep.mubr.bf16.mxu0 0
        %1700 = vmatmul.mubr.bf16.gmra.mrb[0].mxu0 %v1613
        %v1701 = vpop.f32.mrb[0].mxu0
        %v1702 = vadd.f32 0.0, %v1701
        %v1703 = vpop.f32.mrb[0].mxu0
        %v1704 = vpop.f32.mrb[0].mxu0
        %v1705 = vadd.f32 0.0, %v1704
        %v1706 = vpop.f32.mrb[0].mxu0
        %1707 = vmatprep.mubr.bf16.mxu0 0
        %1708 = vmatmul.mubr.bf16.gmra.mrb[0].mxu0 %v1615
        %v1709 = vpop.f32.mrb[0].mxu0
        %v1710 = vadd.f32 0.0, %v1709
        %v1711 = vpop.f32.mrb[0].mxu0
        %v1712 = vpop.f32.mrb[0].mxu0
        %v1713 = vadd.f32 0.0, %v1712
        %v1714 = vpop.f32.mrb[0].mxu0
        %1715 = vmatprep.mubr.bf16.mxu0 0
        %1716 = vmatmul.mubr.bf16.gmra.mrb[0].mxu0 %v1617
        %v1717 = vpop.f32.mrb[0].mxu0
        %v1718 = vadd.f32 0.0, %v1717
        %v1719 = vpop.f32.mrb[0].mxu0
        %v1720 = vpop.f32.mrb[0].mxu0
        %v1721 = vadd.f32 0.0, %v1720
        %v1722 = vpop.f32.mrb[0].mxu0
        %1723 = vmatprep.mubr.bf16.mxu0 0
        %1724 = vmatmul.mubr.bf16.gmra.mrb[0].mxu0 %v1619
        %v1725 = vpop.f32.mrb[0].mxu0
        %v1726 = vadd.f32 0.0, %v1725
        %v1727 = vpop.f32.mrb[0].mxu0
        %v1728 = vpop.f32.mrb[0].mxu0
        %v1729 = vadd.f32 0.0, %v1728
        %v1730 = vpop.f32.mrb[0].mxu0
        %1731 = vmatprep.mubr.bf16.mxu0 0
        %1732 = vmatmul.mubr.bf16.gmra.mrb[0].mxu0 %v1621
        %v1733 = vpop.f32.mrb[0].mxu0
        %v1734 = vadd.f32 0.0, %v1733
        %v1735 = vpop.f32.mrb[0].mxu0
        %v1736 = vpop.f32.mrb[0].mxu0
        %v1737 = vadd.f32 0.0, %v1736
        %v1738 = vpop.f32.mrb[0].mxu0
        %1739 = vmatprep.mubr.bf16.mxu0 0
        %1740 = vmatmul.mubr.bf16.gmra.mrb[0].mxu0 %v1623
        %v1741 = vpop.f32.mrb[0].mxu0
        %v1742 = vadd.f32 0.0, %v1741
        %v1743 = vpop.f32.mrb[0].mxu0
        %v1744 = vpop.f32.mrb[0].mxu0
        %v1745 = vadd.f32 0.0, %v1744
        %v1746 = vpop.f32.mrb[0].mxu0
        %1747 = vmatprep.mubr.bf16.mxu0 0
        %1748 = vmatmul.mubr.bf16.gmra.mrb[0].mxu0 %v1625
        %v1749 = vpop.f32.mrb[0].mxu0
        %v1750 = vadd.f32 0.0, %v1749
        %v1751 = vpop.f32.mrb[0].mxu0
        %v1752 = vpop.f32.mrb[0].mxu0
        %v1753 = vadd.f32 0.0, %v1752
        %v1754 = vpop.f32.mrb[0].mxu0
        %1755 = vmatprep.mubr.bf16.mxu0 0
        %1756 = vmatmul.mubr.bf16.gmra.mrb[0].mxu0 %v1627
        %v1757 = vpop.f32.mrb[0].mxu0
        %v1758 = vadd.f32 0.0, %v1757
        %v1759 = vpop.f32.mrb[0].mxu0
        %v1760 = vpop.f32.mrb[0].mxu0
        %v1761 = vadd.f32 0.0, %v1760
        %v1762 = vpop.f32.mrb[0].mxu0
        %1763 = vmatprep.mubr.bf16.mxu0 0
        %1764 = vmatmul.mubr.bf16.gmra.mrb[0].mxu0 %v1629
        %v1765 = vpop.f32.mrb[0].mxu0
        %v1766 = vadd.f32 0.0, %v1765
        %v1767 = vpop.f32.mrb[0].mxu0
        %v1768 = vpop.f32.mrb[0].mxu0
        %v1769 = vadd.f32 0.0, %v1768
        %v1770 = vpop.f32.mrb[0].mxu0
        %1771 = vmatprep.mubr.bf16.mxu0 0
        %1772 = vmatmul.mubr.bf16.gmra.mrb[0].mxu0 %v1631
        %v1773 = vpop.f32.mrb[0].mxu0
        %v1774 = vadd.f32 0.0, %v1773
        %v1775 = vpop.f32.mrb[0].mxu0
        %v1776 = vpop.f32.mrb[0].mxu0
        %v1777 = vadd.f32 0.0, %v1776
        %v1778 = vpop.f32.mrb[0].mxu0
        %1779 = vmatprep.mubr.bf16.mxu0 0
        %1780 = vmatmul.mubr.bf16.gmra.mrb[0].mxu0 %v1633
        %v1781 = vpop.f32.mrb[0].mxu0
        %v1782 = vadd.f32 0.0, %v1781
        %v1783 = vpop.f32.mrb[0].mxu0
        %v1784 = vpop.f32.mrb[0].mxu0
        %v1785 = vadd.f32 0.0, %v1784
        %v1786 = vpop.f32.mrb[0].mxu0
        %1787 = vmatprep.mubr.bf16.mxu0 0
        %1788 = vmatmul.mubr.bf16.gmra.mrb[0].mxu0 %v1635
        %v1789 = vpop.f32.mrb[0].mxu0
        %v1790 = vadd.f32 0.0, %v1789
        %v1791 = vpop.f32.mrb[0].mxu0
        %v1792 = vpop.f32.mrb[0].mxu0
        %v1793 = vadd.f32 0.0, %v1792
        %v1794 = vpop.f32.mrb[0].mxu0
        %1795 = vmatprep.mubr.bf16.mxu0 0
        %1796 = vmatmul.mubr.bf16.gmra.mrb[0].mxu0 %v1637
        %v1797 = vpop.f32.mrb[0].mxu0
        %v1798 = vadd.f32 0.0, %v1797
        %v1799 = vpop.f32.mrb[0].mxu0
        %v1800 = vpop.f32.mrb[0].mxu0
        %v1801 = vadd.f32 0.0, %v1800
        %v1802 = vpop.f32.mrb[0].mxu0
        %1803 = vdwg.mxu0
        %v1804 = vadd.f32 %v1678, %v1681
        %v1805 = vadd.f32 %v1804, %v1686
        %v1806 = vadd.f32 %v1805, %v1689
        %v1807 = vadd.f32 %v1806, %v1694
        %v1808 = vadd.f32 %v1807, %v1697
        %v1809 = vadd.f32 %v1808, %v1702
        %v1810 = vadd.f32 %v1809, %v1705
        %v1811 = vadd.f32 %v1810, %v1710
        %v1812 = vadd.f32 %v1811, %v1713
        %v1813 = vadd.f32 %v1812, %v1718
        %v1814 = vadd.f32 %v1813, %v1721
        %v1815 = vadd.f32 %v1814, %v1726
        %v1816 = vadd.f32 %v1815, %v1729
        %v1817 = vadd.f32 %v1816, %v1734
        %v1818 = vadd.f32 %v1817, %v1737
        %v1819 = vadd.f32 %v1818, %v1742
        %v1820 = vadd.f32 %v1819, %v1745
        %v1821 = vadd.f32 %v1820, %v1750
        %v1822 = vadd.f32 %v1821, %v1753
        %v1823 = vadd.f32 %v1822, %v1758
        %v1824 = vadd.f32 %v1823, %v1761
        %v1825 = vadd.f32 %v1824, %v1766
        %v1826 = vadd.f32 %v1825, %v1769
        %v1827 = vadd.f32 %v1826, %v1774
        %v1828 = vadd.f32 %v1827, %v1777
        %v1829 = vadd.f32 %v1828, %v1782
        %v1830 = vadd.f32 %v1829, %v1785
        %v1831 = vadd.f32 %v1830, %v1790
        %v1832 = vadd.f32 %v1831, %v1793
        %v1833 = vadd.f32 %v1832, %v1798
        %v1834 = vadd.f32 %v1833, %v1801
        %v1835 = vrot.slane %v1834, 4
        %v1836 = vadd.f32 %v1834, %v1835
        %v1837 = vrot.slane %v1836, 2
        %v1838 = vadd.f32 %v1836, %v1837
        %v1839 = vrot.slane %v1838, 1
        %v1840 = vadd.f32 %v1838, %v1839
        %1841 = vst [vmem:[%s214] sm:$0x1] %v1840
        %v1842 = vmul.f32 %v1678, %v1678
        %v1843 = vmul.f32 %v1681, %v1681
        %v1844 = vmul.f32 %v1686, %v1686
        %v1845 = vmul.f32 %v1689, %v1689
        %v1846 = vmul.f32 %v1694, %v1694
        %v1847 = vmul.f32 %v1697, %v1697
        %v1848 = vmul.f32 %v1702, %v1702
        %v1849 = vmul.f32 %v1705, %v1705
        %v1850 = vmul.f32 %v1710, %v1710
        %v1851 = vmul.f32 %v1713, %v1713
        %v1852 = vmul.f32 %v1718, %v1718
        %v1853 = vmul.f32 %v1721, %v1721
        %v1854 = vmul.f32 %v1726, %v1726
        %v1855 = vmul.f32 %v1729, %v1729
        %v1856 = vmul.f32 %v1734, %v1734
        %v1857 = vmul.f32 %v1737, %v1737
        %v1858 = vmul.f32 %v1742, %v1742
        %v1859 = vmul.f32 %v1745, %v1745
        %v1860 = vmul.f32 %v1750, %v1750
        %v1861 = vmul.f32 %v1753, %v1753
        %v1862 = vmul.f32 %v1758, %v1758
        %v1863 = vmul.f32 %v1761, %v1761
        %v1864 = vmul.f32 %v1766, %v1766
        %v1865 = vmul.f32 %v1769, %v1769
        %v1866 = vmul.f32 %v1774, %v1774
        %v1867 = vmul.f32 %v1777, %v1777
        %v1868 = vmul.f32 %v1782, %v1782
        %v1869 = vmul.f32 %v1785, %v1785
        %v1870 = vmul.f32 %v1790, %v1790
        %v1871 = vmul.f32 %v1793, %v1793
        %v1872 = vmul.f32 %v1798, %v1798
        %v1873 = vmul.f32 %v1801, %v1801
        %v1874 = vadd.f32 %v1842, %v1843
        %v1875 = vadd.f32 %v1874, %v1844
        %v1876 = vadd.f32 %v1875, %v1845
        %v1877 = vadd.f32 %v1876, %v1846
        %v1878 = vadd.f32 %v1877, %v1847
        %v1879 = vadd.f32 %v1878, %v1848
        %v1880 = vadd.f32 %v1879, %v1849
        %v1881 = vadd.f32 %v1880, %v1850
        %v1882 = vadd.f32 %v1881, %v1851
        %v1883 = vadd.f32 %v1882, %v1852
        %v1884 = vadd.f32 %v1883, %v1853
        %v1885 = vadd.f32 %v1884, %v1854
        %v1886 = vadd.f32 %v1885, %v1855
        %v1887 = vadd.f32 %v1886, %v1856
        %v1888 = vadd.f32 %v1887, %v1857
        %v1889 = vadd.f32 %v1888, %v1858
        %v1890 = vadd.f32 %v1889, %v1859
        %v1891 = vadd.f32 %v1890, %v1860
        %v1892 = vadd.f32 %v1891, %v1861
        %v1893 = vadd.f32 %v1892, %v1862
        %v1894 = vadd.f32 %v1893, %v1863
        %v1895 = vadd.f32 %v1894, %v1864
        %v1896 = vadd.f32 %v1895, %v1865
        %v1897 = vadd.f32 %v1896, %v1866
        %v1898 = vadd.f32 %v1897, %v1867
        %v1899 = vadd.f32 %v1898, %v1868
        %v1900 = vadd.f32 %v1899, %v1869
        %v1901 = vadd.f32 %v1900, %v1870
        %v1902 = vadd.f32 %v1901, %v1871
        %v1903 = vadd.f32 %v1902, %v1872
        %v1904 = vadd.f32 %v1903, %v1873
        %v1905 = vrot.slane %v1904, 4
        %v1906 = vadd.f32 %v1904, %v1905
        %v1907 = vrot.slane %v1906, 2
        %v1908 = vadd.f32 %v1906, %v1907
        %v1909 = vrot.slane %v1908, 1
        %v1910 = vadd.f32 %v1908, %v1909
        %1911 = vst [vmem:[%s214 + $0x1] sm:$0x1] %v1910
        %v1912 = vpack.c.bf16 %v1681, %v1678
        %v1913 = vpack.c.bf16 %v1689, %v1686
        %v1914 = vpack.c.bf16 %v1697, %v1694
        %v1915 = vpack.c.bf16 %v1705, %v1702
        %v1916 = vpack.c.bf16 %v1713, %v1710
        %v1917 = vpack.c.bf16 %v1721, %v1718
        %v1918 = vpack.c.bf16 %v1729, %v1726
        %v1919 = vpack.c.bf16 %v1737, %v1734
        %v1920 = vpack.c.bf16 %v1745, %v1742
        %v1921 = vpack.c.bf16 %v1753, %v1750
        %v1922 = vpack.c.bf16 %v1761, %v1758
        %v1923 = vpack.c.bf16 %v1769, %v1766
        %v1924 = vpack.c.bf16 %v1777, %v1774
        %v1925 = vpack.c.bf16 %v1785, %v1782
        %v1926 = vpack.c.bf16 %v1793, %v1790
        %v1927 = vpack.c.bf16 %v1801, %v1798
        %v1944 = vunpack.c.l.b16 %v1912
        %v1945 = vunpack.c.h.b16 %v1912
        %v1946 = vunpack.c.l.b16 %v1913
        %v1947 = vunpack.c.h.b16 %v1913
        %v1948 = vunpack.c.l.b16 %v1914
        %v1949 = vunpack.c.h.b16 %v1914
        %v1950 = vunpack.c.l.b16 %v1915
        %v1951 = vunpack.c.h.b16 %v1915
        %v1952 = vunpack.c.l.b16 %v1916
        %v1953 = vunpack.c.h.b16 %v1916
        %v1954 = vunpack.c.l.b16 %v1917
        %v1955 = vunpack.c.h.b16 %v1917
        %v1956 = vunpack.c.l.b16 %v1918
        %v1957 = vunpack.c.h.b16 %v1918
        %v1958 = vunpack.c.l.b16 %v1919
        %v1959 = vunpack.c.h.b16 %v1919
        %v1960 = vunpack.c.l.b16 %v1920
        %v1961 = vunpack.c.h.b16 %v1920
        %v1962 = vunpack.c.l.b16 %v1921
        %v1963 = vunpack.c.h.b16 %v1921
        %v1964 = vunpack.c.l.b16 %v1922
        %v1965 = vunpack.c.h.b16 %v1922
        %v1966 = vunpack.c.l.b16 %v1923
        %v1967 = vunpack.c.h.b16 %v1923
        %v1968 = vunpack.c.l.b16 %v1924
        %v1969 = vunpack.c.h.b16 %v1924
        %v1970 = vunpack.c.l.b16 %v1925
        %v1971 = vunpack.c.h.b16 %v1925
        %v1972 = vunpack.c.l.b16 %v1926
        %v1973 = vunpack.c.h.b16 %v1926
        %v1974 = vunpack.c.l.b16 %v1927
        %v1975 = vunpack.c.h.b16 %v1927
        %v1976 = vpack.c.b16 %v1944, %v1944
        %v1977 = vpack.c.b16 %v1945, %v1945
        %v1978 = vpack.c.b16 %v1946, %v1946
        %v1979 = vpack.c.b16 %v1947, %v1947
        %v1980 = vpack.c.b16 %v1948, %v1948
        %v1981 = vpack.c.b16 %v1949, %v1949
        %v1982 = vpack.c.b16 %v1950, %v1950
        %v1983 = vpack.c.b16 %v1951, %v1951
        %v1984 = vpack.c.b16 %v1952, %v1952
        %v1985 = vpack.c.b16 %v1953, %v1953
        %v1986 = vpack.c.b16 %v1954, %v1954
        %v1987 = vpack.c.b16 %v1955, %v1955
        %v1988 = vpack.c.b16 %v1956, %v1956
        %v1989 = vpack.c.b16 %v1957, %v1957
        %v1990 = vpack.c.b16 %v1958, %v1958
        %v1991 = vpack.c.b16 %v1959, %v1959
        %v1992 = vpack.c.b16 %v1960, %v1960
        %v1993 = vpack.c.b16 %v1961, %v1961
        %v1994 = vpack.c.b16 %v1962, %v1962
        %v1995 = vpack.c.b16 %v1963, %v1963
        %v1996 = vpack.c.b16 %v1964, %v1964
        %v1997 = vpack.c.b16 %v1965, %v1965
        %v1998 = vpack.c.b16 %v1966, %v1966
        %v1999 = vpack.c.b16 %v1967, %v1967
        %v2000 = vpack.c.b16 %v1968, %v1968
        %v2001 = vpack.c.b16 %v1969, %v1969
        %v2002 = vpack.c.b16 %v1970, %v1970
        %v2003 = vpack.c.b16 %v1971, %v1971
        %v2004 = vpack.c.b16 %v1972, %v1972
        %v2005 = vpack.c.b16 %v1973, %v1973
        %v2006 = vpack.c.b16 %v1974, %v1974
        %v2007 = vpack.c.b16 %v1975, %v1975
        %2040 = vst [vmem:[%s207] sm:$0xf] %v1976
        %2041 = vst [vmem:[%s207 + $0x4] sm:$0xf] %v1977
        %2042 = vst [vmem:[%s207 + $0x8] sm:$0xf] %v1978
        %2043 = vst [vmem:[%s207 + $0xc] sm:$0xf] %v1979
        %2044 = vst [vmem:[%s207 + $0x10] sm:$0xf] %v1980
        %2045 = vst [vmem:[%s207 + $0x14] sm:$0xf] %v1981
        %2046 = vst [vmem:[%s207 + $0x18] sm:$0xf] %v1982
        %2047 = vst [vmem:[%s207 + $0x1c] sm:$0xf] %v1983
        %2048 = vst [vmem:[%s207 + $0x20] sm:$0xf] %v1984
        %2049 = vst [vmem:[%s207 + $0x24] sm:$0xf] %v1985
        %2050 = vst [vmem:[%s207 + $0x28] sm:$0xf] %v1986
        %2051 = vst [vmem:[%s207 + $0x2c] sm:$0xf] %v1987
        %2052 = vst [vmem:[%s207 + $0x30] sm:$0xf] %v1988
        %2053 = vst [vmem:[%s207 + $0x34] sm:$0xf] %v1989
        %2054 = vst [vmem:[%s207 + $0x38] sm:$0xf] %v1990
        %2055 = vst [vmem:[%s207 + $0x3c] sm:$0xf] %v1991
        %2056 = vst [vmem:[%s207 + $0x40] sm:$0xf] %v1992
        %2057 = vst [vmem:[%s207 + $0x44] sm:$0xf] %v1993
        %2058 = vst [vmem:[%s207 + $0x48] sm:$0xf] %v1994
        %2059 = vst [vmem:[%s207 + $0x4c] sm:$0xf] %v1995
        %2060 = vst [vmem:[%s207 + $0x50] sm:$0xf] %v1996
        %2061 = vst [vmem:[%s207 + $0x54] sm:$0xf] %v1997
        %2062 = vst [vmem:[%s207 + $0x58] sm:$0xf] %v1998
        %2063 = vst [vmem:[%s207 + $0x5c] sm:$0xf] %v1999
        %2064 = vst [vmem:[%s207 + $0x60] sm:$0xf] %v2000
        %2065 = vst [vmem:[%s207 + $0x64] sm:$0xf] %v2001
        %2066 = vst [vmem:[%s207 + $0x68] sm:$0xf] %v2002
        %2067 = vst [vmem:[%s207 + $0x6c] sm:$0xf] %v2003
        %2068 = vst [vmem:[%s207 + $0x70] sm:$0xf] %v2004
        %2069 = vst [vmem:[%s207 + $0x74] sm:$0xf] %v2005
        %2070 = vst [vmem:[%s207 + $0x78] sm:$0xf] %v2006
        %2071 = vst [vmem:[%s207 + $0x7c] sm:$0xf] %v2007
        %s2072 = sand.u32 %s80, 1
        %s2073 = scalar_lea.sflag [#allocation4], %s2072
        %s2074 = sand.u32 %s80, 1
        %s2075 = smul.addr %s2074, 128
        %s2076 = scalar_lea.vmem [#allocation7], %s2075
        %s2077 = sand.u32 %s106, 1
        %s2078 = scalar_lea.sflag [#allocation9], %s2077
        %s2079 = sand.u32 %s106, 1
        %s2080 = smul.addr %s2079, 2
        %s2081 = scalar_lea.vmem [#allocation8], %s2080
        // Predicated region
        $region37: #{conv_block_forward.4} parent=27 // pred_check
          %p2082 = pneg %p90
        $region38: #{conv_block_forward.4} parent=27 // pred_check_branch
          %2084 = sbr.rel (%p2082) target = $region40
        $region39: #{conv_block_forward.4} parent=27 // pred_region
          %s2086 = ssub.s32 2048, 2048
          %2087 = vsyncadd %s2073, %s2086
          %s2088 = smul.addr %s25, 32
          %s2089 = smul.addr %s2088, 64
          %s2090 = scalar_lea.hbm %s2, %s2089
          %s2091 = sshll.u32 %s2076, 4
          %s2092 = int_to_ptr.vmem [resolvable:$true] %s2091
          %2097 = dma.vmem_to_hbm [thread:$0]  %s2092, 2048, %s2090, %s2073, 64, 64, 4
        $region40: #{conv_block_forward.4} parent=27 // pred_fallthru
          _
        // Predicated region
        $region41: #{conv_block_forward.4} parent=27 // pred_check
          %p2098 = pneg %p116
        $region42: #{conv_block_forward.4} parent=27 // pred_check_branch
          %2100 = sbr.rel (%p2098) target = $region44
        $region43: #{conv_block_forward.4} parent=27 // pred_region
          %s2102 = ssub.s32 32, 32
          %2103 = vsyncadd %s2078, %s2102
          %s2104 = smul.addr %s25, 32
          %s2105 = scalar_lea.hbm %s3, %s2104
          %s2107 = sshll.u32 %s2081, 4
          %s2108 = int_to_ptr.vmem [resolvable:$true] %s2107
          %2110 = dma.vmem_to_hbm [thread:$0]  %s2108, 32, %s2105, %s2078
        $region44: #{conv_block_forward.4} parent=27 // pred_fallthru
          _
      $region28: #{conv_block_forward.4} parent=5 // pred_fallthru
        _
      %p2111 = scmp.le.s32.totalorder 2, %s20
      // Predicated region
      $region45: #{conv_block_forward.4} parent=5 // pred_check
        %p2112 = pneg %p2111
      $region46: #{conv_block_forward.4} parent=5 // pred_check_branch
        %2114 = sbr.rel (%p2112) target = $region48
      $region47: #{conv_block_forward.4} parent=5 // pred_region
        %s2115 = ssub.s32 %s20, 2
        // Predicated region
        $region49: #{conv_block_forward.4} parent=47 // pred_check
          %p2116 = pneg %p96
        $region50: #{conv_block_forward.4} parent=47 // pred_check_branch
          %2118 = sbr.rel (%p2116) target = $region52
        $region51: #{conv_block_forward.4} parent=47 // pred_region
          %s2119 = sand.u32 %s81, 1
          %s2120 = scalar_lea.sflag [#allocation4], %s2119
          %s2121 = sand.u32 %s81, 1
          %s2122 = smul.addr %s2121, 128
          %s2123 = scalar_lea.vmem [#allocation7], %s2122
          %2124 = dma.done %s2120, 2048
        $region52: #{conv_block_forward.4} parent=47 // pred_fallthru
          _
        // Predicated region
        $region53: #{conv_block_forward.4} parent=47 // pred_check
          %p2125 = pneg %p122
        $region54: #{conv_block_forward.4} parent=47 // pred_check_branch
          %2127 = sbr.rel (%p2125) target = $region56
        $region55: #{conv_block_forward.4} parent=47 // pred_region
          %s2128 = sand.u32 %s107, 1
          %s2129 = scalar_lea.sflag [#allocation9], %s2128
          %s2130 = sand.u32 %s107, 1
          %s2131 = smul.addr %s2130, 2
          %s2132 = scalar_lea.vmem [#allocation8], %s2131
          %2133 = dma.done %s2129, 32
        $region56: #{conv_block_forward.4} parent=47 // pred_fallthru
          _
      $region48: #{conv_block_forward.4} parent=5 // pred_fallthru
        _
    $region6: #{conv_block_forward.4} parent=1 // loop_footer
      %s24 = sadd.s32 1, %s20
    $region7: #{conv_block_forward.4} parent=1 // loop_footer_branch
      %19 = sbr.rel target = $region3
    $region8: #{conv_block_forward.4} parent=1 // loop_exit
      _
    %2134 = vsyncpa [#allocation3], 1
    %s2135 = scalar_lea.sflag [#allocation3], 1
    %2136 = vsyncpa %s2135, 1
    %2137 = vsyncpa [#allocation6], 1
    %2138 = vsyncpa [#allocation4], 1
    %s2139 = scalar_lea.sflag [#allocation4], 1
    %2140 = vsyncpa %s2139, 1
    %2141 = vsyncpa [#allocation9], 1
    %s2142 = scalar_lea.sflag [#allocation9], 1
    %2143 = vsyncpa %s2142, 1

// kernel: conv_block_forward.7
$region0: #{conv_block_forward.7}
  #allocation0 [shape = 'u32[]', space=smem, size = 0x4, offset = 0x4, fixed_abs, tag = 'smem constant byte address 0x4 - core index']
  #allocation1 [shape = 'u32[144,128]{1,0:T(1,128)}', space=vmem, size = 0x12000, scoped, tag = 'internal scratch']
  %s0 = inlined_call_operand.hbm [shape: bf16[2,256,128], index: 0, kind: input, shape index: {}]
  %s1 = inlined_call_operand.hbm [shape: f32[1,128], index: 1, kind: input, shape index: {}]
  %s2 = inlined_call_operand.hbm [shape: f32[1,128], index: 2, kind: input, shape index: {}]
  %s3 = inlined_call_operand.hbm [shape: f32[2,256,128], index: 3, kind: output, shape index: {}]
  %s4 = sld [smem:[#allocation0]]
  $region34: #{conv_block_forward.7} parent=0
    _
  %s6 = ssub.s32 1, %s4
  %s7 = scalar_select 0, %s6, %s4
  $region1: #{conv_block_forward.7} parent=0
    #allocation2 [shape = 'u8[131072]{0}', space=vmem, size = 0x20000, scoped, tag = 'input window, operand 0, single buffered']
    #allocation3 [shape = 's32[1]{0}', space=sflag, size = 0x4, scoped, tag = 'scoped memory for conv_block_forward.7']
    #allocation4 [shape = 's32[1]{0}', space=sflag, size = 0x4, scoped, tag = 'scoped memory for conv_block_forward.7']
    #allocation5 [shape = 'u8[512]{0}', space=vmem, size = 0x400, scoped, tag = 'input window, operand 1, single buffered']
    #allocation6 [shape = 's32[1]{0}', space=sflag, size = 0x4, scoped, tag = 'scoped memory for conv_block_forward.7']
    #allocation7 [shape = 'u8[512]{0}', space=vmem, size = 0x400, scoped, tag = 'input window, operand 2, single buffered']
    #allocation8 [shape = 'u8[262144]{0}', space=vmem, size = 0x40000, scoped, tag = 'output window, operand 0, single buffered']
    %8 = vsyncpa [#allocation3], 0
    %9 = vsyncpa [#allocation6], 0
    %10 = vsyncpa [#allocation4], 0
    // Predicated region
    $region2: #{conv_block_forward.7} parent=1 // pred_check
      _
    $region3: #{conv_block_forward.7} parent=1 // pred_check_branch
      %12 = sbr.rel (0) target = $region5
    $region4: #{conv_block_forward.7} parent=1 // pred_region
      %s14 = ssub.s32 4096, 4096
      %15 = vsyncadd [#allocation3], %s14
      %s16 = sshll.u32 [#allocation2], 4
      %s17 = int_to_ptr.vmem [resolvable:$true] %s16
      %22 = dma.hbm_to_vmem [thread:$0]  %s0, 4096, %s17, [#allocation3], 64, 64, 4
    $region5: #{conv_block_forward.7} parent=1 // pred_fallthru
      _
    // Predicated region
    $region6: #{conv_block_forward.7} parent=1 // pred_check
      _
    $region7: #{conv_block_forward.7} parent=1 // pred_check_branch
      %24 = sbr.rel (0) target = $region9
    $region8: #{conv_block_forward.7} parent=1 // pred_region
      %s26 = ssub.s32 16, 16
      %27 = vsyncadd [#allocation6], %s26
      %s29 = sshll.u32 [#allocation5], 4
      %s30 = int_to_ptr.vmem [resolvable:$true] %s29
      %32 = dma.hbm_to_vmem [thread:$0]  %s1, 16, %s30, [#allocation6]
    $region9: #{conv_block_forward.7} parent=1 // pred_fallthru
      _
    // Predicated region
    $region10: #{conv_block_forward.7} parent=1 // pred_check
      _
    $region11: #{conv_block_forward.7} parent=1 // pred_check_branch
      %34 = sbr.rel (0) target = $region13
    $region12: #{conv_block_forward.7} parent=1 // pred_region
      %s36 = ssub.s32 16, 16
      %37 = vsyncadd [#allocation6], %s36
      %s39 = sshll.u32 [#allocation7], 4
      %s40 = int_to_ptr.vmem [resolvable:$true] %s39
      %42 = dma.hbm_to_vmem [thread:$0]  %s2, 16, %s40, [#allocation6]
    $region13: #{conv_block_forward.7} parent=1 // pred_fallthru
      _
    // Predicated region
    $region14: #{conv_block_forward.7} parent=1 // pred_check
      _
    $region15: #{conv_block_forward.7} parent=1 // pred_check_branch
      %44 = sbr.rel (0) target = $region17
    $region16: #{conv_block_forward.7} parent=1 // pred_region
      %45 = dma.done [#allocation3], 4096
    $region17: #{conv_block_forward.7} parent=1 // pred_fallthru
      _
    // Predicated region
    $region18: #{conv_block_forward.7} parent=1 // pred_check
      _
    $region19: #{conv_block_forward.7} parent=1 // pred_check_branch
      %47 = sbr.rel (0) target = $region21
    $region20: #{conv_block_forward.7} parent=1 // pred_region
      %48 = dma.done [#allocation6], 16
    $region21: #{conv_block_forward.7} parent=1 // pred_fallthru
      _
    // Predicated region
    $region22: #{conv_block_forward.7} parent=1 // pred_check
      _
    $region23: #{conv_block_forward.7} parent=1 // pred_check_branch
      %50 = sbr.rel (0) target = $region25
    $region24: #{conv_block_forward.7} parent=1 // pred_region
      %51 = dma.done [#allocation6], 16
    $region25: #{conv_block_forward.7} parent=1 // pred_fallthru
      _
    %v52 = vld [vmem:[#allocation2] sm:$0xf]
    %v53 = vld [vmem:[#allocation2 + $0x4] sm:$0xf]
    %v54 = vld [vmem:[#allocation2 + $0x8] sm:$0xf]
    %v55 = vld [vmem:[#allocation2 + $0xc] sm:$0xf]
    %v56 = vld [vmem:[#allocation2 + $0x10] sm:$0xf]
    %v57 = vld [vmem:[#allocation2 + $0x14] sm:$0xf]
    %v58 = vld [vmem:[#allocation2 + $0x18] sm:$0xf]
    %v59 = vld [vmem:[#allocation2 + $0x1c] sm:$0xf]
    %v60 = vld [vmem:[#allocation2 + $0x20] sm:$0xf]
    %v61 = vld [vmem:[#allocation2 + $0x24] sm:$0xf]
    %v62 = vld [vmem:[#allocation2 + $0x28] sm:$0xf]
    %v63 = vld [vmem:[#allocation2 + $0x2c] sm:$0xf]
    %v64 = vld [vmem:[#allocation2 + $0x30] sm:$0xf]
    %v65 = vld [vmem:[#allocation2 + $0x34] sm:$0xf]
    %v66 = vld [vmem:[#allocation2 + $0x38] sm:$0xf]
    %v67 = vld [vmem:[#allocation2 + $0x3c] sm:$0xf]
    %v68 = vld [vmem:[#allocation2 + $0x40] sm:$0xf]
    %v69 = vld [vmem:[#allocation2 + $0x44] sm:$0xf]
    %v70 = vld [vmem:[#allocation2 + $0x48] sm:$0xf]
    %v71 = vld [vmem:[#allocation2 + $0x4c] sm:$0xf]
    %v72 = vld [vmem:[#allocation2 + $0x50] sm:$0xf]
    %v73 = vld [vmem:[#allocation2 + $0x54] sm:$0xf]
    %v74 = vld [vmem:[#allocation2 + $0x58] sm:$0xf]
    %v75 = vld [vmem:[#allocation2 + $0x5c] sm:$0xf]
    %v76 = vld [vmem:[#allocation2 + $0x60] sm:$0xf]
    %v77 = vld [vmem:[#allocation2 + $0x64] sm:$0xf]
    %v78 = vld [vmem:[#allocation2 + $0x68] sm:$0xf]
    %v79 = vld [vmem:[#allocation2 + $0x6c] sm:$0xf]
    %v80 = vld [vmem:[#allocation2 + $0x70] sm:$0xf]
    %v81 = vld [vmem:[#allocation2 + $0x74] sm:$0xf]
    %v82 = vld [vmem:[#allocation2 + $0x78] sm:$0xf]
    %v83 = vld [vmem:[#allocation2 + $0x7c] sm:$0xf]
    %v84 = vld [vmem:[#allocation2 + $0x80] sm:$0xf]
    %v85 = vld [vmem:[#allocation2 + $0x84] sm:$0xf]
    %v86 = vld [vmem:[#allocation2 + $0x88] sm:$0xf]
    %v87 = vld [vmem:[#allocation2 + $0x8c] sm:$0xf]
    %v88 = vld [vmem:[#allocation2 + $0x90] sm:$0xf]
    %v89 = vld [vmem:[#allocation2 + $0x94] sm:$0xf]
    %v90 = vld [vmem:[#allocation2 + $0x98] sm:$0xf]
    %v91 = vld [vmem:[#allocation2 + $0x9c] sm:$0xf]
    %v92 = vld [vmem:[#allocation2 + $0xa0] sm:$0xf]
    %v93 = vld [vmem:[#allocation2 + $0xa4] sm:$0xf]
    %v94 = vld [vmem:[#allocation2 + $0xa8] sm:$0xf]
    %v95 = vld [vmem:[#allocation2 + $0xac] sm:$0xf]
    %v96 = vld [vmem:[#allocation2 + $0xb0] sm:$0xf]
    %v97 = vld [vmem:[#allocation2 + $0xb4] sm:$0xf]
    %v98 = vld [vmem:[#allocation2 + $0xb8] sm:$0xf]
    %v99 = vld [vmem:[#allocation2 + $0xbc] sm:$0xf]
    %v100 = vld [vmem:[#allocation2 + $0xc0] sm:$0xf]
    %v101 = vld [vmem:[#allocation2 + $0xc4] sm:$0xf]
    %v102 = vld [vmem:[#allocation2 + $0xc8] sm:$0xf]
    %v103 = vld [vmem:[#allocation2 + $0xcc] sm:$0xf]
    %v104 = vld [vmem:[#allocation2 + $0xd0] sm:$0xf]
    %v105 = vld [vmem:[#allocation2 + $0xd4] sm:$0xf]
    %v106 = vld [vmem:[#allocation2 + $0xd8] sm:$0xf]
    %v107 = vld [vmem:[#allocation2 + $0xdc] sm:$0xf]
    %v108 = vld [vmem:[#allocation2 + $0xe0] sm:$0xf]
    %v109 = vld [vmem:[#allocation2 + $0xe4] sm:$0xf]
    %v110 = vld [vmem:[#allocation2 + $0xe8] sm:$0xf]
    %v111 = vld [vmem:[#allocation2 + $0xec] sm:$0xf]
    %v112 = vld [vmem:[#allocation2 + $0xf0] sm:$0xf]
    %v113 = vld [vmem:[#allocation2 + $0xf4] sm:$0xf]
    %v114 = vld [vmem:[#allocation2 + $0xf8] sm:$0xf]
    %v115 = vld [vmem:[#allocation2 + $0xfc] sm:$0xf]
    %v116 = vunpack.c.l.bf16 %v52
    %v117 = vunpack.c.l.bf16 %v53
    %v118 = vunpack.c.l.bf16 %v54
    %v119 = vunpack.c.l.bf16 %v55
    %v120 = vunpack.c.l.bf16 %v56
    %v121 = vunpack.c.l.bf16 %v57
    %v122 = vunpack.c.l.bf16 %v58
    %v123 = vunpack.c.l.bf16 %v59
    %v124 = vunpack.c.l.bf16 %v60
    %v125 = vunpack.c.l.bf16 %v61
    %v126 = vunpack.c.l.bf16 %v62
    %v127 = vunpack.c.l.bf16 %v63
    %v128 = vunpack.c.l.bf16 %v64
    %v129 = vunpack.c.l.bf16 %v65
    %v130 = vunpack.c.l.bf16 %v66
    %v131 = vunpack.c.l.bf16 %v67
    %v132 = vunpack.c.l.bf16 %v68
    %v133 = vunpack.c.l.bf16 %v69
    %v134 = vunpack.c.l.bf16 %v70
    %v135 = vunpack.c.l.bf16 %v71
    %v136 = vunpack.c.l.bf16 %v72
    %v137 = vunpack.c.l.bf16 %v73
    %v138 = vunpack.c.l.bf16 %v74
    %v139 = vunpack.c.l.bf16 %v75
    %v140 = vunpack.c.l.bf16 %v76
    %v141 = vunpack.c.l.bf16 %v77
    %v142 = vunpack.c.l.bf16 %v78
    %v143 = vunpack.c.l.bf16 %v79
    %v144 = vunpack.c.l.bf16 %v80
    %v145 = vunpack.c.l.bf16 %v81
    %v146 = vunpack.c.l.bf16 %v82
    %v147 = vunpack.c.l.bf16 %v83
    %v148 = vunpack.c.l.bf16 %v84
    %v149 = vunpack.c.l.bf16 %v85
    %v150 = vunpack.c.l.bf16 %v86
    %v151 = vunpack.c.l.bf16 %v87
    %v152 = vunpack.c.l.bf16 %v88
    %v153 = vunpack.c.l.bf16 %v89
    %v154 = vunpack.c.l.bf16 %v90
    %v155 = vunpack.c.l.bf16 %v91
    %v156 = vunpack.c.l.bf16 %v92
    %v157 = vunpack.c.l.bf16 %v93
    %v158 = vunpack.c.l.bf16 %v94
    %v159 = vunpack.c.l.bf16 %v95
    %v160 = vunpack.c.l.bf16 %v96
    %v161 = vunpack.c.l.bf16 %v97
    %v162 = vunpack.c.l.bf16 %v98
    %v163 = vunpack.c.l.bf16 %v99
    %v164 = vunpack.c.l.bf16 %v100
    %v165 = vunpack.c.l.bf16 %v101
    %v166 = vunpack.c.l.bf16 %v102
    %v167 = vunpack.c.l.bf16 %v103
    %v168 = vunpack.c.l.bf16 %v104
    %v169 = vunpack.c.l.bf16 %v105
    %v170 = vunpack.c.l.bf16 %v106
    %v171 = vunpack.c.l.bf16 %v107
    %v172 = vunpack.c.l.bf16 %v108
    %v173 = vunpack.c.l.bf16 %v109
    %v174 = vunpack.c.l.bf16 %v110
    %v175 = vunpack.c.l.bf16 %v111
    %v176 = vunpack.c.l.bf16 %v112
    %v177 = vunpack.c.l.bf16 %v113
    %v178 = vunpack.c.l.bf16 %v114
    %v179 = vunpack.c.l.bf16 %v115
    %v180 = vld [vmem:[#allocation5] sm:$0x1]
    %v182 = vlaneseq
    %v183 = vshrl.u32 %v182, 7
    %v184 = vsub.s32 0, %v183
    %v185 = vrot.slane %v180, %v184
    %v187 = vmul.f32 %v116, %v185
    %v188 = vmul.f32 %v117, %v185
    %v189 = vmul.f32 %v118, %v185
    %v190 = vmul.f32 %v119, %v185
    %v191 = vmul.f32 %v120, %v185
    %v192 = vmul.f32 %v121, %v185
    %v193 = vmul.f32 %v122, %v185
    %v194 = vmul.f32 %v123, %v185
    %v195 = vmul.f32 %v124, %v185
    %v196 = vmul.f32 %v125, %v185
    %v197 = vmul.f32 %v126, %v185
    %v198 = vmul.f32 %v127, %v185
    %v199 = vmul.f32 %v128, %v185
    %v200 = vmul.f32 %v129, %v185
    %v201 = vmul.f32 %v130, %v185
    %v202 = vmul.f32 %v131, %v185
    %v203 = vmul.f32 %v132, %v185
    %v204 = vmul.f32 %v133, %v185
    %v205 = vmul.f32 %v134, %v185
    %v206 = vmul.f32 %v135, %v185
    %v207 = vmul.f32 %v136, %v185
    %v208 = vmul.f32 %v137, %v185
    %v209 = vmul.f32 %v138, %v185
    %v210 = vmul.f32 %v139, %v185
    %v211 = vmul.f32 %v140, %v185
    %v212 = vmul.f32 %v141, %v185
    %v213 = vmul.f32 %v142, %v185
    %v214 = vmul.f32 %v143, %v185
    %v215 = vmul.f32 %v144, %v185
    %v216 = vmul.f32 %v145, %v185
    %v217 = vmul.f32 %v146, %v185
    %v218 = vmul.f32 %v147, %v185
    %v219 = vmul.f32 %v148, %v185
    %v220 = vmul.f32 %v149, %v185
    %v221 = vmul.f32 %v150, %v185
    %v222 = vmul.f32 %v151, %v185
    %v223 = vmul.f32 %v152, %v185
    %v224 = vmul.f32 %v153, %v185
    %v225 = vmul.f32 %v154, %v185
    %v226 = vmul.f32 %v155, %v185
    %v227 = vmul.f32 %v156, %v185
    %v228 = vmul.f32 %v157, %v185
    %v229 = vmul.f32 %v158, %v185
    %v230 = vmul.f32 %v159, %v185
    %v231 = vmul.f32 %v160, %v185
    %v232 = vmul.f32 %v161, %v185
    %v233 = vmul.f32 %v162, %v185
    %v234 = vmul.f32 %v163, %v185
    %v235 = vmul.f32 %v164, %v185
    %v236 = vmul.f32 %v165, %v185
    %v237 = vmul.f32 %v166, %v185
    %v238 = vmul.f32 %v167, %v185
    %v239 = vmul.f32 %v168, %v185
    %v240 = vmul.f32 %v169, %v185
    %v241 = vmul.f32 %v170, %v185
    %v242 = vmul.f32 %v171, %v185
    %v243 = vmul.f32 %v172, %v185
    %v244 = vmul.f32 %v173, %v185
    %v245 = vmul.f32 %v174, %v185
    %v246 = vmul.f32 %v175, %v185
    %v247 = vmul.f32 %v176, %v185
    %v248 = vmul.f32 %v177, %v185
    %v249 = vmul.f32 %v178, %v185
    %v250 = vmul.f32 %v179, %v185
    %v251 = vld [vmem:[#allocation7] sm:$0x1]
    %v253 = vlaneseq
    %v254 = vshrl.u32 %v253, 7
    %v255 = vsub.s32 0, %v254
    %v256 = vrot.slane %v251, %v255
    %v258 = vadd.f32 %v187, %v256
    %v259 = vadd.f32 %v188, %v256
    %v260 = vadd.f32 %v189, %v256
    %v261 = vadd.f32 %v190, %v256
    %v262 = vadd.f32 %v191, %v256
    %v263 = vadd.f32 %v192, %v256
    %v264 = vadd.f32 %v193, %v256
    %v265 = vadd.f32 %v194, %v256
    %v266 = vadd.f32 %v195, %v256
    %v267 = vadd.f32 %v196, %v256
    %v268 = vadd.f32 %v197, %v256
    %v269 = vadd.f32 %v198, %v256
    %v270 = vadd.f32 %v199, %v256
    %v271 = vadd.f32 %v200, %v256
    %v272 = vadd.f32 %v201, %v256
    %v273 = vadd.f32 %v202, %v256
    %v274 = vadd.f32 %v203, %v256
    %v275 = vadd.f32 %v204, %v256
    %v276 = vadd.f32 %v205, %v256
    %v277 = vadd.f32 %v206, %v256
    %v278 = vadd.f32 %v207, %v256
    %v279 = vadd.f32 %v208, %v256
    %v280 = vadd.f32 %v209, %v256
    %v281 = vadd.f32 %v210, %v256
    %v282 = vadd.f32 %v211, %v256
    %v283 = vadd.f32 %v212, %v256
    %v284 = vadd.f32 %v213, %v256
    %v285 = vadd.f32 %v214, %v256
    %v286 = vadd.f32 %v215, %v256
    %v287 = vadd.f32 %v216, %v256
    %v288 = vadd.f32 %v217, %v256
    %v289 = vadd.f32 %v218, %v256
    %v290 = vadd.f32 %v219, %v256
    %v291 = vadd.f32 %v220, %v256
    %v292 = vadd.f32 %v221, %v256
    %v293 = vadd.f32 %v222, %v256
    %v294 = vadd.f32 %v223, %v256
    %v295 = vadd.f32 %v224, %v256
    %v296 = vadd.f32 %v225, %v256
    %v297 = vadd.f32 %v226, %v256
    %v298 = vadd.f32 %v227, %v256
    %v299 = vadd.f32 %v228, %v256
    %v300 = vadd.f32 %v229, %v256
    %v301 = vadd.f32 %v230, %v256
    %v302 = vadd.f32 %v231, %v256
    %v303 = vadd.f32 %v232, %v256
    %v304 = vadd.f32 %v233, %v256
    %v305 = vadd.f32 %v234, %v256
    %v306 = vadd.f32 %v235, %v256
    %v307 = vadd.f32 %v236, %v256
    %v308 = vadd.f32 %v237, %v256
    %v309 = vadd.f32 %v238, %v256
    %v310 = vadd.f32 %v239, %v256
    %v311 = vadd.f32 %v240, %v256
    %v312 = vadd.f32 %v241, %v256
    %v313 = vadd.f32 %v242, %v256
    %v314 = vadd.f32 %v243, %v256
    %v315 = vadd.f32 %v244, %v256
    %v316 = vadd.f32 %v245, %v256
    %v317 = vadd.f32 %v246, %v256
    %v318 = vadd.f32 %v247, %v256
    %v319 = vadd.f32 %v248, %v256
    %v320 = vadd.f32 %v249, %v256
    %v321 = vadd.f32 %v250, %v256
    %vm322 = vcmp.ge.f32.partialorder %v258, 0.0
    %vm323 = vcmp.ge.f32.partialorder %v259, 0.0
    %vm324 = vcmp.ge.f32.partialorder %v260, 0.0
    %vm325 = vcmp.ge.f32.partialorder %v261, 0.0
    %vm326 = vcmp.ge.f32.partialorder %v262, 0.0
    %vm327 = vcmp.ge.f32.partialorder %v263, 0.0
    %vm328 = vcmp.ge.f32.partialorder %v264, 0.0
    %vm329 = vcmp.ge.f32.partialorder %v265, 0.0
    %vm330 = vcmp.ge.f32.partialorder %v266, 0.0
    %vm331 = vcmp.ge.f32.partialorder %v267, 0.0
    %vm332 = vcmp.ge.f32.partialorder %v268, 0.0
    %vm333 = vcmp.ge.f32.partialorder %v269, 0.0
    %vm334 = vcmp.ge.f32.partialorder %v270, 0.0
    %vm335 = vcmp.ge.f32.partialorder %v271, 0.0
    %vm336 = vcmp.ge.f32.partialorder %v272, 0.0
    %vm337 = vcmp.ge.f32.partialorder %v273, 0.0
    %vm338 = vcmp.ge.f32.partialorder %v274, 0.0
    %vm339 = vcmp.ge.f32.partialorder %v275, 0.0
    %vm340 = vcmp.ge.f32.partialorder %v276, 0.0
    %vm341 = vcmp.ge.f32.partialorder %v277, 0.0
    %vm342 = vcmp.ge.f32.partialorder %v278, 0.0
    %vm343 = vcmp.ge.f32.partialorder %v279, 0.0
    %vm344 = vcmp.ge.f32.partialorder %v280, 0.0
    %vm345 = vcmp.ge.f32.partialorder %v281, 0.0
    %vm346 = vcmp.ge.f32.partialorder %v282, 0.0
    %vm347 = vcmp.ge.f32.partialorder %v283, 0.0
    %vm348 = vcmp.ge.f32.partialorder %v284, 0.0
    %vm349 = vcmp.ge.f32.partialorder %v285, 0.0
    %vm350 = vcmp.ge.f32.partialorder %v286, 0.0
    %vm351 = vcmp.ge.f32.partialorder %v287, 0.0
    %vm352 = vcmp.ge.f32.partialorder %v288, 0.0
    %vm353 = vcmp.ge.f32.partialorder %v289, 0.0
    %vm354 = vcmp.ge.f32.partialorder %v290, 0.0
    %vm355 = vcmp.ge.f32.partialorder %v291, 0.0
    %vm356 = vcmp.ge.f32.partialorder %v292, 0.0
    %vm357 = vcmp.ge.f32.partialorder %v293, 0.0
    %vm358 = vcmp.ge.f32.partialorder %v294, 0.0
    %vm359 = vcmp.ge.f32.partialorder %v295, 0.0
    %vm360 = vcmp.ge.f32.partialorder %v296, 0.0
    %vm361 = vcmp.ge.f32.partialorder %v297, 0.0
    %vm362 = vcmp.ge.f32.partialorder %v298, 0.0
    %vm363 = vcmp.ge.f32.partialorder %v299, 0.0
    %vm364 = vcmp.ge.f32.partialorder %v300, 0.0
    %vm365 = vcmp.ge.f32.partialorder %v301, 0.0
    %vm366 = vcmp.ge.f32.partialorder %v302, 0.0
    %vm367 = vcmp.ge.f32.partialorder %v303, 0.0
    %vm368 = vcmp.ge.f32.partialorder %v304, 0.0
    %vm369 = vcmp.ge.f32.partialorder %v305, 0.0
    %vm370 = vcmp.ge.f32.partialorder %v306, 0.0
    %vm371 = vcmp.ge.f32.partialorder %v307, 0.0
    %vm372 = vcmp.ge.f32.partialorder %v308, 0.0
    %vm373 = vcmp.ge.f32.partialorder %v309, 0.0
    %vm374 = vcmp.ge.f32.partialorder %v310, 0.0
    %vm375 = vcmp.ge.f32.partialorder %v311, 0.0
    %vm376 = vcmp.ge.f32.partialorder %v312, 0.0
    %vm377 = vcmp.ge.f32.partialorder %v313, 0.0
    %vm378 = vcmp.ge.f32.partialorder %v314, 0.0
    %vm379 = vcmp.ge.f32.partialorder %v315, 0.0
    %vm380 = vcmp.ge.f32.partialorder %v316, 0.0
    %vm381 = vcmp.ge.f32.partialorder %v317, 0.0
    %vm382 = vcmp.ge.f32.partialorder %v318, 0.0
    %vm383 = vcmp.ge.f32.partialorder %v319, 0.0
    %vm384 = vcmp.ge.f32.partialorder %v320, 0.0
    %vm385 = vcmp.ge.f32.partialorder %v321, 0.0
    %v386 = vmul.f32 %v258, 0.01
    %v387 = vmul.f32 %v259, 0.01
    %v388 = vmul.f32 %v260, 0.01
    %v389 = vmul.f32 %v261, 0.01
    %v390 = vmul.f32 %v262, 0.01
    %v391 = vmul.f32 %v263, 0.01
    %v392 = vmul.f32 %v264, 0.01
    %v393 = vmul.f32 %v265, 0.01
    %v394 = vmul.f32 %v266, 0.01
    %v395 = vmul.f32 %v267, 0.01
    %v396 = vmul.f32 %v268, 0.01
    %v397 = vmul.f32 %v269, 0.01
    %v398 = vmul.f32 %v270, 0.01
    %v399 = vmul.f32 %v271, 0.01
    %v400 = vmul.f32 %v272, 0.01
    %v401 = vmul.f32 %v273, 0.01
    %v402 = vmul.f32 %v274, 0.01
    %v403 = vmul.f32 %v275, 0.01
    %v404 = vmul.f32 %v276, 0.01
    %v405 = vmul.f32 %v277, 0.01
    %v406 = vmul.f32 %v278, 0.01
    %v407 = vmul.f32 %v279, 0.01
    %v408 = vmul.f32 %v280, 0.01
    %v409 = vmul.f32 %v281, 0.01
    %v410 = vmul.f32 %v282, 0.01
    %v411 = vmul.f32 %v283, 0.01
    %v412 = vmul.f32 %v284, 0.01
    %v413 = vmul.f32 %v285, 0.01
    %v414 = vmul.f32 %v286, 0.01
    %v415 = vmul.f32 %v287, 0.01
    %v416 = vmul.f32 %v288, 0.01
    %v417 = vmul.f32 %v289, 0.01
    %v418 = vmul.f32 %v290, 0.01
    %v419 = vmul.f32 %v291, 0.01
    %v420 = vmul.f32 %v292, 0.01
    %v421 = vmul.f32 %v293, 0.01
    %v422 = vmul.f32 %v294, 0.01
    %v423 = vmul.f32 %v295, 0.01
    %v424 = vmul.f32 %v296, 0.01
    %v425 = vmul.f32 %v297, 0.01
    %v426 = vmul.f32 %v298, 0.01
    %v427 = vmul.f32 %v299, 0.01
    %v428 = vmul.f32 %v300, 0.01
    %v429 = vmul.f32 %v301, 0.01
    %v430 = vmul.f32 %v302, 0.01
    %v431 = vmul.f32 %v303, 0.01
    %v432 = vmul.f32 %v304, 0.01
    %v433 = vmul.f32 %v305, 0.01
    %v434 = vmul.f32 %v306, 0.01
    %v435 = vmul.f32 %v307, 0.01
    %v436 = vmul.f32 %v308, 0.01
    %v437 = vmul.f32 %v309, 0.01
    %v438 = vmul.f32 %v310, 0.01
    %v439 = vmul.f32 %v311, 0.01
    %v440 = vmul.f32 %v312, 0.01
    %v441 = vmul.f32 %v313, 0.01
    %v442 = vmul.f32 %v314, 0.01
    %v443 = vmul.f32 %v315, 0.01
    %v444 = vmul.f32 %v316, 0.01
    %v445 = vmul.f32 %v317, 0.01
    %v446 = vmul.f32 %v318, 0.01
    %v447 = vmul.f32 %v319, 0.01
    %v448 = vmul.f32 %v320, 0.01
    %v449 = vmul.f32 %v321, 0.01
    %v450 = vsel %vm322, %v258, %v386
    %v451 = vsel %vm323, %v259, %v387
    %v452 = vsel %vm324, %v260, %v388
    %v453 = vsel %vm325, %v261, %v389
    %v454 = vsel %vm326, %v262, %v390
    %v455 = vsel %vm327, %v263, %v391
    %v456 = vsel %vm328, %v264, %v392
    %v457 = vsel %vm329, %v265, %v393
    %v458 = vsel %vm330, %v266, %v394
    %v459 = vsel %vm331, %v267, %v395
    %v460 = vsel %vm332, %v268, %v396
    %v461 = vsel %vm333, %v269, %v397
    %v462 = vsel %vm334, %v270, %v398
    %v463 = vsel %vm335, %v271, %v399
    %v464 = vsel %vm336, %v272, %v400
    %v465 = vsel %vm337, %v273, %v401
    %v466 = vsel %vm338, %v274, %v402
    %v467 = vsel %vm339, %v275, %v403
    %v468 = vsel %vm340, %v276, %v404
    %v469 = vsel %vm341, %v277, %v405
    %v470 = vsel %vm342, %v278, %v406
    %v471 = vsel %vm343, %v279, %v407
    %v472 = vsel %vm344, %v280, %v408
    %v473 = vsel %vm345, %v281, %v409
    %v474 = vsel %vm346, %v282, %v410
    %v475 = vsel %vm347, %v283, %v411
    %v476 = vsel %vm348, %v284, %v412
    %v477 = vsel %vm349, %v285, %v413
    %v478 = vsel %vm350, %v286, %v414
    %v479 = vsel %vm351, %v287, %v415
    %v480 = vsel %vm352, %v288, %v416
    %v481 = vsel %vm353, %v289, %v417
    %v482 = vsel %vm354, %v290, %v418
    %v483 = vsel %vm355, %v291, %v419
    %v484 = vsel %vm356, %v292, %v420
    %v485 = vsel %vm357, %v293, %v421
    %v486 = vsel %vm358, %v294, %v422
    %v487 = vsel %vm359, %v295, %v423
    %v488 = vsel %vm360, %v296, %v424
    %v489 = vsel %vm361, %v297, %v425
    %v490 = vsel %vm362, %v298, %v426
    %v491 = vsel %vm363, %v299, %v427
    %v492 = vsel %vm364, %v300, %v428
    %v493 = vsel %vm365, %v301, %v429
    %v494 = vsel %vm366, %v302, %v430
    %v495 = vsel %vm367, %v303, %v431
    %v496 = vsel %vm368, %v304, %v432
    %v497 = vsel %vm369, %v305, %v433
    %v498 = vsel %vm370, %v306, %v434
    %v499 = vsel %vm371, %v307, %v435
    %v500 = vsel %vm372, %v308, %v436
    %v501 = vsel %vm373, %v309, %v437
    %v502 = vsel %vm374, %v310, %v438
    %v503 = vsel %vm375, %v311, %v439
    %v504 = vsel %vm376, %v312, %v440
    %v505 = vsel %vm377, %v313, %v441
    %v506 = vsel %vm378, %v314, %v442
    %v507 = vsel %vm379, %v315, %v443
    %v508 = vsel %vm380, %v316, %v444
    %v509 = vsel %vm381, %v317, %v445
    %v510 = vsel %vm382, %v318, %v446
    %v511 = vsel %vm383, %v319, %v447
    %v512 = vsel %vm384, %v320, %v448
    %v513 = vsel %vm385, %v321, %v449
    %514 = vst [vmem:[#allocation8] sm:$0xff] %v450
    %515 = vst [vmem:[#allocation8 + $0x8] sm:$0xff] %v451
    %516 = vst [vmem:[#allocation8 + $0x10] sm:$0xff] %v452
    %517 = vst [vmem:[#allocation8 + $0x18] sm:$0xff] %v453
    %518 = vst [vmem:[#allocation8 + $0x20] sm:$0xff] %v454
    %519 = vst [vmem:[#allocation8 + $0x28] sm:$0xff] %v455
    %520 = vst [vmem:[#allocation8 + $0x30] sm:$0xff] %v456
    %521 = vst [vmem:[#allocation8 + $0x38] sm:$0xff] %v457
    %522 = vst [vmem:[#allocation8 + $0x40] sm:$0xff] %v458
    %523 = vst [vmem:[#allocation8 + $0x48] sm:$0xff] %v459
    %524 = vst [vmem:[#allocation8 + $0x50] sm:$0xff] %v460
    %525 = vst [vmem:[#allocation8 + $0x58] sm:$0xff] %v461
    %526 = vst [vmem:[#allocation8 + $0x60] sm:$0xff] %v462
    %527 = vst [vmem:[#allocation8 + $0x68] sm:$0xff] %v463
    %528 = vst [vmem:[#allocation8 + $0x70] sm:$0xff] %v464
    %529 = vst [vmem:[#allocation8 + $0x78] sm:$0xff] %v465
    %530 = vst [vmem:[#allocation8 + $0x80] sm:$0xff] %v466
    %531 = vst [vmem:[#allocation8 + $0x88] sm:$0xff] %v467
    %532 = vst [vmem:[#allocation8 + $0x90] sm:$0xff] %v468
    %533 = vst [vmem:[#allocation8 + $0x98] sm:$0xff] %v469
    %534 = vst [vmem:[#allocation8 + $0xa0] sm:$0xff] %v470
    %535 = vst [vmem:[#allocation8 + $0xa8] sm:$0xff] %v471
    %536 = vst [vmem:[#allocation8 + $0xb0] sm:$0xff] %v472
    %537 = vst [vmem:[#allocation8 + $0xb8] sm:$0xff] %v473
    %538 = vst [vmem:[#allocation8 + $0xc0] sm:$0xff] %v474
    %539 = vst [vmem:[#allocation8 + $0xc8] sm:$0xff] %v475
    %540 = vst [vmem:[#allocation8 + $0xd0] sm:$0xff] %v476
    %541 = vst [vmem:[#allocation8 + $0xd8] sm:$0xff] %v477
    %542 = vst [vmem:[#allocation8 + $0xe0] sm:$0xff] %v478
    %543 = vst [vmem:[#allocation8 + $0xe8] sm:$0xff] %v479
    %544 = vst [vmem:[#allocation8 + $0xf0] sm:$0xff] %v480
    %545 = vst [vmem:[#allocation8 + $0xf8] sm:$0xff] %v481
    %546 = vst [vmem:[#allocation8 + $0x100] sm:$0xff] %v482
    %547 = vst [vmem:[#allocation8 + $0x108] sm:$0xff] %v483
    %548 = vst [vmem:[#allocation8 + $0x110] sm:$0xff] %v484
    %549 = vst [vmem:[#allocation8 + $0x118] sm:$0xff] %v485
    %550 = vst [vmem:[#allocation8 + $0x120] sm:$0xff] %v486
    %551 = vst [vmem:[#allocation8 + $0x128] sm:$0xff] %v487
    %552 = vst [vmem:[#allocation8 + $0x130] sm:$0xff] %v488
    %553 = vst [vmem:[#allocation8 + $0x138] sm:$0xff] %v489
    %554 = vst [vmem:[#allocation8 + $0x140] sm:$0xff] %v490
    %555 = vst [vmem:[#allocation8 + $0x148] sm:$0xff] %v491
    %556 = vst [vmem:[#allocation8 + $0x150] sm:$0xff] %v492
    %557 = vst [vmem:[#allocation8 + $0x158] sm:$0xff] %v493
    %558 = vst [vmem:[#allocation8 + $0x160] sm:$0xff] %v494
    %559 = vst [vmem:[#allocation8 + $0x168] sm:$0xff] %v495
    %560 = vst [vmem:[#allocation8 + $0x170] sm:$0xff] %v496
    %561 = vst [vmem:[#allocation8 + $0x178] sm:$0xff] %v497
    %562 = vst [vmem:[#allocation8 + $0x180] sm:$0xff] %v498
    %563 = vst [vmem:[#allocation8 + $0x188] sm:$0xff] %v499
    %564 = vst [vmem:[#allocation8 + $0x190] sm:$0xff] %v500
    %565 = vst [vmem:[#allocation8 + $0x198] sm:$0xff] %v501
    %566 = vst [vmem:[#allocation8 + $0x1a0] sm:$0xff] %v502
    %567 = vst [vmem:[#allocation8 + $0x1a8] sm:$0xff] %v503
    %568 = vst [vmem:[#allocation8 + $0x1b0] sm:$0xff] %v504
    %569 = vst [vmem:[#allocation8 + $0x1b8] sm:$0xff] %v505
    %570 = vst [vmem:[#allocation8 + $0x1c0] sm:$0xff] %v506
    %571 = vst [vmem:[#allocation8 + $0x1c8] sm:$0xff] %v507
    %572 = vst [vmem:[#allocation8 + $0x1d0] sm:$0xff] %v508
    %573 = vst [vmem:[#allocation8 + $0x1d8] sm:$0xff] %v509
    %574 = vst [vmem:[#allocation8 + $0x1e0] sm:$0xff] %v510
    %575 = vst [vmem:[#allocation8 + $0x1e8] sm:$0xff] %v511
    %576 = vst [vmem:[#allocation8 + $0x1f0] sm:$0xff] %v512
    %577 = vst [vmem:[#allocation8 + $0x1f8] sm:$0xff] %v513
    // Predicated region
    $region26: #{conv_block_forward.7} parent=1 // pred_check
      _
    $region27: #{conv_block_forward.7} parent=1 // pred_check_branch
      %579 = sbr.rel (0) target = $region29
    $region28: #{conv_block_forward.7} parent=1 // pred_region
      %s581 = ssub.s32 8192, 8192
      %582 = vsyncadd [#allocation4], %s581
      %s583 = sshll.u32 [#allocation8], 4
      %s584 = int_to_ptr.vmem [resolvable:$true] %s583
      %589 = dma.vmem_to_hbm [thread:$0]  %s584, 8192, %s3, [#allocation4], 128, 128, 8
    $region29: #{conv_block_forward.7} parent=1 // pred_fallthru
      _
    // Predicated region
    $region30: #{conv_block_forward.7} parent=1 // pred_check
      _
    $region31: #{conv_block_forward.7} parent=1 // pred_check_branch
      %591 = sbr.rel (0) target = $region33
    $region32: #{conv_block_forward.7} parent=1 // pred_region
      %592 = dma.done [#allocation4], 8192
    $region33: #{conv_block_forward.7} parent=1 // pred_fallthru
      _
    %593 = vsyncpa [#allocation3], 1
    %594 = vsyncpa [#allocation6], 1
    %595 = vsyncpa [#allocation4], 1

// kernel: conv_block_forward.6
$region0: #{conv_block_forward.6}
  #allocation0 [shape = 'u32[]', space=smem, size = 0x4, offset = 0x4, fixed_abs, tag = 'smem constant byte address 0x4 - core index']
  #allocation1 [shape = 'u32[144,128]{1,0:T(1,128)}', space=vmem, size = 0x12000, scoped, tag = 'internal scratch']
  %s0 = inlined_call_operand.hbm [shape: bf16[2,18,18,8], index: 0, kind: input, shape index: {}]
  %s1 = inlined_call_operand.hbm [shape: bf16[72,128], index: 1, kind: input, shape index: {}]
  %s2 = inlined_call_operand.hbm [shape: bf16[2,256,128], index: 2, kind: output, shape index: {0}]
  %s3 = inlined_call_operand.hbm [shape: f32[2,2,128], index: 3, kind: output, shape index: {1}]
  %4 = xla_tuple %s2, %s3
  %s5 = sld [smem:[#allocation0]]
  $region57: #{conv_block_forward.6} parent=0
    _
  %s7 = ssub.s32 1, %s5
  %s8 = scalar_select 0, %s7, %s5
  $region1: #{conv_block_forward.6} parent=0
    #allocation2 [shape = 'u8[221184]{0}', space=vmem, size = 0x36000, scoped, tag = 'input window, operand 0']
    #allocation3 [shape = 's32[2]{0}', space=sflag, size = 0x8, scoped, tag = 'scoped memory for conv_block_forward.6']
    #allocation4 [shape = 's32[2]{0}', space=sflag, size = 0x8, scoped, tag = 'scoped memory for conv_block_forward.6']
    #allocation5 [shape = 'u8[18432]{0}', space=vmem, size = 0x4800, scoped, tag = 'input window, operand 1, single buffered']
    #allocation6 [shape = 's32[1]{0}', space=sflag, size = 0x4, scoped, tag = 'scoped memory for conv_block_forward.6']
    #allocation7 [shape = 'u8[131072]{0}', space=vmem, size = 0x20000, scoped, tag = 'output window, operand 0']
    #allocation8 [shape = 'u8[2048]{0}', space=vmem, size = 0x800, scoped, tag = 'output window, operand 1']
    #allocation9 [shape = 's32[2]{0}', space=sflag, size = 0x8, scoped, tag = 'scoped memory for conv_block_forward.6']
    %9 = vsyncpa [#allocation3], 0
    %s10 = scalar_lea.sflag [#allocation3], 1
    %11 = vsyncpa %s10, 0
    %12 = vsyncpa [#allocation6], 0
    %13 = vsyncpa [#allocation4], 0
    %s14 = scalar_lea.sflag [#allocation4], 1
    %15 = vsyncpa %s14, 0
    %16 = vsyncpa [#allocation9], 0
    %s17 = scalar_lea.sflag [#allocation9], 1
    %18 = vsyncpa %s17, 0
    loop: start=0, step=1, limit=4
    $region2: #{conv_block_forward.6} parent=1 // loop_pre_header
      _
    $region3: #{conv_block_forward.6} parent=1 // loop_header
      %s20 = sphi 0, %s24
      %p21 = scmp.ge.s32.totalorder %s20, 4
      %s30 = sphi 0, %s32
      %s33 = sphi 0, %s30
      %s34 = sphi 0, %s33
      %s50 = sphi 0, %s34
      %s54 = sphi 0, %s54
      %s56 = sphi 0, %s54
      %s57 = sphi 0, %s56
      %s71 = sphi 0, %s57
      %s77 = sphi 0, %s79
      %s80 = sphi 0, %s77
      %s81 = sphi 0, %s80
      %s97 = sphi 0, %s81
      %s103 = sphi 0, %s105
      %s106 = sphi 0, %s103
      %s107 = sphi 0, %s106
      %s123 = sphi 0, %s107
    $region4: #{conv_block_forward.6} parent=1 // loop_header_branch
      %23 = sbr.rel (%p21) target = $region8
    $region5: #{conv_block_forward.6} parent=1 // loop_body
      %s25 = ssub.s32 %s20, 1
      %s26 = ssub.s32 %s20, 2
      %s27 = sadd.s32 %s20, 1
      %s28 = ssub.s32 %s20, %s27
      %p29 = scmp.eq.s32.totalorder %s28, 0
      %s31 = sadd.s32 %s30, 1
      %s32 = scalar_select %p29, %s30, %s31
      %p35 = pneg %p29
      %p36 = scmp.eq.s32.totalorder %s20, 1
      %p37 = por %p35, %p36
      %p38 = scmp.ne.s32.totalorder %s30, %s33
      %p39 = scmp.eq.s32.totalorder %s20, 0
      %p40 = por %p38, %p39
      %p41 = scmp.ne.s32.totalorder %s30, %s33
      %p42 = scmp.eq.s32.totalorder %s25, 1
      %p43 = por %p41, %p42
      %p44 = scmp.ne.s32.totalorder %s33, %s34
      %p45 = scmp.eq.s32.totalorder %s25, 0
      %p46 = por %p44, %p45
      %p47 = scmp.ne.s32.totalorder %s33, %s34
      %p48 = scmp.eq.s32.totalorder %s26, 1
      %p49 = por %p47, %p48
      %p51 = scmp.ne.s32.totalorder %s34, %s50
      %p52 = scmp.eq.s32.totalorder %s26, 0
      %p53 = por %p51, %p52
      %s55 = sadd.s32 %s54, 1
      %p58 = scmp.eq.s32.totalorder %s20, 1
      %p59 = scmp.ne.s32.totalorder %s54, %s56
      %p60 = scmp.eq.s32.totalorder %s20, 0
      %p61 = por %p59, %p60
      %p62 = scmp.ne.s32.totalorder %s54, %s56
      %p63 = scmp.eq.s32.totalorder %s25, 1
      %p64 = por %p62, %p63
      %p65 = scmp.ne.s32.totalorder %s56, %s57
      %p66 = scmp.eq.s32.totalorder %s25, 0
      %p67 = por %p65, %p66
      %p68 = scmp.ne.s32.totalorder %s56, %s57
      %p69 = scmp.eq.s32.totalorder %s26, 1
      %p70 = por %p68, %p69
      %p72 = scmp.ne.s32.totalorder %s57, %s71
      %p73 = scmp.eq.s32.totalorder %s26, 0
      %p74 = por %p72, %p73
      %s75 = ssub.s32 %s20, %s27
      %p76 = scmp.eq.s32.totalorder %s75, 0
      %s78 = sadd.s32 %s77, 1
      %s79 = scalar_select %p76, %s77, %s78
      %p82 = pneg %p76
      %p83 = scmp.eq.s32.totalorder %s20, 1
      %p84 = por %p82, %p83
      %p85 = scmp.ne.s32.totalorder %s77, %s80
      %p86 = scmp.eq.s32.totalorder %s20, 0
      %p87 = por %p85, %p86
      %p88 = scmp.ne.s32.totalorder %s77, %s80
      %p89 = scmp.eq.s32.totalorder %s25, 1
      %p90 = por %p88, %p89
      %p91 = scmp.ne.s32.totalorder %s80, %s81
      %p92 = scmp.eq.s32.totalorder %s25, 0
      %p93 = por %p91, %p92
      %p94 = scmp.ne.s32.totalorder %s80, %s81
      %p95 = scmp.eq.s32.totalorder %s26, 1
      %p96 = por %p94, %p95
      %p98 = scmp.ne.s32.totalorder %s81, %s97
      %p99 = scmp.eq.s32.totalorder %s26, 0
      %p100 = por %p98, %p99
      %s101 = ssub.s32 %s20, %s27
      %p102 = scmp.eq.s32.totalorder %s101, 0
      %s104 = sadd.s32 %s103, 1
      %s105 = scalar_select %p102, %s103, %s104
      %p108 = pneg %p102
      %p109 = scmp.eq.s32.totalorder %s20, 1
      %p110 = por %p108, %p109
      %p111 = scmp.ne.s32.totalorder %s103, %s106
      %p112 = scmp.eq.s32.totalorder %s20, 0
      %p113 = por %p111, %p112
      %p114 = scmp.ne.s32.totalorder %s103, %s106
      %p115 = scmp.eq.s32.totalorder %s25, 1
      %p116 = por %p114, %p115
      %p117 = scmp.ne.s32.totalorder %s106, %s107
      %p118 = scmp.eq.s32.totalorder %s25, 0
      %p119 = por %p117, %p118
      %p120 = scmp.ne.s32.totalorder %s106, %s107
      %p121 = scmp.eq.s32.totalorder %s26, 1
      %p122 = por %p120, %p121
      %p124 = scmp.ne.s32.totalorder %s107, %s123
      %p125 = scmp.eq.s32.totalorder %s26, 0
      %p126 = por %p124, %p125
      %p127 = scmp.le.s32.totalorder 1, %s20
      %p128 = scmp.lt.s32.totalorder %s20, 3
      %p129 = pnand %p127, %p128
      %p130 = pneg %p129
      // Predicated region
      $region9: #{conv_block_forward.6} parent=5 // pred_check
        _
      $region10: #{conv_block_forward.6} parent=5 // pred_check_branch
        %132 = sbr.rel (%p129) target = $region12
      $region11: #{conv_block_forward.6} parent=5 // pred_region
        %s133 = ssub.s32 %s20, 1
        // Predicated region
        $region13: #{conv_block_forward.6} parent=11 // pred_check
          %p134 = pneg %p67
        $region14: #{conv_block_forward.6} parent=11 // pred_check_branch
          %136 = sbr.rel (%p134) target = $region16
        $region15: #{conv_block_forward.6} parent=11 // pred_region
          %s138 = ssub.s32 576, 576
          %139 = vsyncadd [#allocation6], %s138
          %s140 = sshll.u32 [#allocation5], 4
          %s141 = int_to_ptr.vmem [resolvable:$true] %s140
          %146 = dma.hbm_to_vmem [thread:$0]  %s1, 576, %s141, [#allocation6], 64, 64, 4
        $region16: #{conv_block_forward.6} parent=11 // pred_fallthru
          _
      $region12: #{conv_block_forward.6} parent=5 // pred_fallthru
        _
      %p147 = scmp.lt.s32.totalorder %s20, 2
      // Predicated region
      $region17: #{conv_block_forward.6} parent=5 // pred_check
        %p148 = pneg %p147
      $region18: #{conv_block_forward.6} parent=5 // pred_check_branch
        %150 = sbr.rel (%p148) target = $region20
      $region19: #{conv_block_forward.6} parent=5 // pred_region
        // Predicated region
        $region21: #{conv_block_forward.6} parent=19 // pred_check
          %p151 = pneg %p40
        $region22: #{conv_block_forward.6} parent=19 // pred_check_branch
          %153 = sbr.rel (%p151) target = $region24
        $region23: #{conv_block_forward.6} parent=19 // pred_region
          %s154 = sand.u32 %s30, 1
          %s155 = scalar_lea.sflag [#allocation3], %s154
          %s156 = sand.u32 %s30, 1
          %s157 = smul.addr %s156, 216
          %s158 = scalar_lea.vmem [#allocation2], %s157
          %s160 = ssub.s32 3456, 3456
          %161 = vsyncadd %s155, %s160
          %s162 = smul.addr %s20, 54
          %s163 = smul.addr %s162, 64
          %s164 = scalar_lea.hbm %s0, %s163
          %s165 = sshll.u32 %s158, 4
          %s166 = int_to_ptr.vmem [resolvable:$true] %s165
          %171 = dma.hbm_to_vmem [thread:$0]  %s164, 3456, %s166, %s155, 64, 64, 4
        $region24: #{conv_block_forward.6} parent=19 // pred_fallthru
          _
      $region20: #{conv_block_forward.6} parent=5 // pred_fallthru
        _
      %p172 = scmp.le.s32.totalorder 1, %s20
      %p173 = scmp.lt.s32.totalorder %s20, 3
      %p174 = pnand %p172, %p173
      %p175 = pneg %p174
      // Predicated region
      $region25: #{conv_block_forward.6} parent=5 // pred_check
        _
      $region26: #{conv_block_forward.6} parent=5 // pred_check_branch
        %177 = sbr.rel (%p174) target = $region28
      $region27: #{conv_block_forward.6} parent=5 // pred_region
        %s178 = ssub.s32 %s20, 1
        %s179 = sand.u32 %s33, 1
        %s180 = scalar_lea.sflag [#allocation3], %s179
        %s181 = sand.u32 %s33, 1
        %s182 = smul.addr %s181, 216
        %s183 = scalar_lea.vmem [#allocation2], %s182
        // Predicated region
        $region29: #{conv_block_forward.6} parent=27 // pred_check
          %p184 = pneg %p46
        $region30: #{conv_block_forward.6} parent=27 // pred_check_branch
          %186 = sbr.rel (%p184) target = $region32
        $region31: #{conv_block_forward.6} parent=27 // pred_region
          %187 = dma.done %s180, 3456
        $region32: #{conv_block_forward.6} parent=27 // pred_fallthru
          _
        // Predicated region
        $region33: #{conv_block_forward.6} parent=27 // pred_check
          %p188 = pneg %p67
        $region34: #{conv_block_forward.6} parent=27 // pred_check_branch
          %190 = sbr.rel (%p188) target = $region36
        $region35: #{conv_block_forward.6} parent=27 // pred_region
          %191 = dma.done [#allocation6], 576
        $region36: #{conv_block_forward.6} parent=27 // pred_fallthru
          _
        %s192 = sand.u32 %s33, 1
        %s193 = scalar_lea.sflag [#allocation3], %s192
        %s194 = sand.u32 %s33, 1
        %s195 = smul.addr %s194, 216
        %s196 = scalar_lea.vmem [#allocation2], %s195
        %p197 = pneg %p46
        %p198 = pneg %p43
        %p199 = pneg %p67
        %p200 = pneg %p64
        %p201 = pneg %p93
        %p202 = pneg %p90
        %s203 = sand.u32 %s80, 1
        %s204 = scalar_lea.sflag [#allocation4], %s203
        %s205 = sand.u32 %s80, 1
        %s206 = smul.addr %s205, 128
        %s207 = scalar_lea.vmem [#allocation7], %s206
        %p208 = pneg %p119
        %p209 = pneg %p116
        %s210 = sand.u32 %s106, 1
        %s211 = scalar_lea.sflag [#allocation9], %s210
        %s212 = sand.u32 %s106, 1
        %s213 = smul.addr %s212, 2
        %s214 = scalar_lea.vmem [#allocation8], %s213
        %v216 = vld [vmem:[%s183] sm:$0xf]
        %v217 = vld [vmem:[%s183 + $0x4] sm:$0xf]
        %v218 = vld [vmem:[%s183 + $0x8] sm:$0x1]
        %v219 = vld [vmem:[%s183 + $0xc] sm:$0xf]
        %v220 = vld [vmem:[%s183 + $0x10] sm:$0xf]
        %v221 = vld [vmem:[%s183 + $0x14] sm:$0x1]
        %v222 = vld [vmem:[%s183 + $0x18] sm:$0xf]
        %v223 = vld [vmem:[%s183 + $0x1c] sm:$0xf]
        %v224 = vld [vmem:[%s183 + $0x20] sm:$0x1]
        %v225 = vld [vmem:[%s183 + $0x24] sm:$0xf]
        %v226 = vld [vmem:[%s183 + $0x28] sm:$0xf]
        %v227 = vld [vmem:[%s183 + $0x2c] sm:$0x1]
        %v228 = vld [vmem:[%s183 + $0x30] sm:$0xf]
        %v229 = vld [vmem:[%s183 + $0x34] sm:$0xf]
        %v230 = vld [vmem:[%s183 + $0x38] sm:$0x1]
        %v231 = vld [vmem:[%s183 + $0x3c] sm:$0xf]
        %v232 = vld [vmem:[%s183 + $0x40] sm:$0xf]
        %v233 = vld [vmem:[%s183 + $0x44] sm:$0x1]
        %v234 = vld [vmem:[%s183 + $0x48] sm:$0xf]
        %v235 = vld [vmem:[%s183 + $0x4c] sm:$0xf]
        %v236 = vld [vmem:[%s183 + $0x50] sm:$0x1]
        %v237 = vld [vmem:[%s183 + $0x54] sm:$0xf]
        %v238 = vld [vmem:[%s183 + $0x58] sm:$0xf]
        %v239 = vld [vmem:[%s183 + $0x5c] sm:$0x1]
        %v240 = vld [vmem:[%s183 + $0x60] sm:$0xf]
        %v241 = vld [vmem:[%s183 + $0x64] sm:$0xf]
        %v242 = vld [vmem:[%s183 + $0x68] sm:$0x1]
        %v243 = vld [vmem:[%s183 + $0x6c] sm:$0xf]
        %v244 = vld [vmem:[%s183 + $0x70] sm:$0xf]
        %v245 = vld [vmem:[%s183 + $0x74] sm:$0x1]
        %v246 = vld [vmem:[%s183 + $0x78] sm:$0xf]
        %v247 = vld [vmem:[%s183 + $0x7c] sm:$0xf]
        %v248 = vld [vmem:[%s183 + $0x80] sm:$0x1]
        %v249 = vld [vmem:[%s183 + $0x84] sm:$0xf]
        %v250 = vld [vmem:[%s183 + $0x88] sm:$0xf]
        %v251 = vld [vmem:[%s183 + $0x8c] sm:$0x1]
        %v252 = vld [vmem:[%s183 + $0x90] sm:$0xf]
        %v253 = vld [vmem:[%s183 + $0x94] sm:$0xf]
        %v254 = vld [vmem:[%s183 + $0x98] sm:$0x1]
        %v255 = vld [vmem:[%s183 + $0x9c] sm:$0xf]
        %v256 = vld [vmem:[%s183 + $0xa0] sm:$0xf]
        %v257 = vld [vmem:[%s183 + $0xa4] sm:$0x1]
        %v258 = vld [vmem:[%s183 + $0xa8] sm:$0xf]
        %v259 = vld [vmem:[%s183 + $0xac] sm:$0xf]
        %v260 = vld [vmem:[%s183 + $0xb0] sm:$0x1]
        %v261 = vld [vmem:[%s183 + $0xb4] sm:$0xf]
        %v262 = vld [vmem:[%s183 + $0xb8] sm:$0xf]
        %v263 = vld [vmem:[%s183 + $0xbc] sm:$0x1]
        %v264 = vld [vmem:[%s183 + $0xc0] sm:$0xf]
        %v265 = vld [vmem:[%s183 + $0xc4] sm:$0xf]
        %v266 = vld [vmem:[%s183 + $0xc8] sm:$0x1]
        %v267 = vld [vmem:[%s183 + $0xcc] sm:$0xf]
        %v268 = vld [vmem:[%s183 + $0xd0] sm:$0xf]
        %v269 = vld [vmem:[%s183 + $0xd4] sm:$0x1]
        %vm270 = vsmask.f32 3328
        %vm271 = vsmask.f32 7440
        %vm272 = vmor %vm270, %vm271
        %v274 = vshrl.u32 %v216, 16
        %v276 = vrot.slane %v274, 4
        %v277 = vshll.u32 %v216, 16
        %v279 = vrot.slane %v277, 5
        %v280 = vor.u32 %v276, %v279
        %v281 = vrot.slane %v280, 4
        %v283 = vshll.u32 %v217, 16
        %v285 = vrot.slane %v283, 5
        %v286 = vsel %vm272, %v281, %v285
        %v287 = vshrl.u32 %v217, 16
        %v289 = vrot.slane %v287, 4
        %v290 = vor.u32 %v289, %v285
        %v291 = vrot.slane %v290, 4
        %v293 = vshll.u32 %v218, 16
        %v295 = vrot.slane %v293, 5
        %v296 = vsel %vm272, %v291, %v295
        %v298 = vshrl.u32 %v219, 16
        %v300 = vrot.slane %v298, 4
        %v301 = vshll.u32 %v219, 16
        %v303 = vrot.slane %v301, 5
        %v304 = vor.u32 %v300, %v303
        %v305 = vrot.slane %v304, 4
        %v307 = vshll.u32 %v220, 16
        %v309 = vrot.slane %v307, 5
        %v310 = vsel %vm272, %v305, %v309
        %v311 = vshrl.u32 %v220, 16
        %v313 = vrot.slane %v311, 4
        %v314 = vor.u32 %v313, %v309
        %v315 = vrot.slane %v314, 4
        %v317 = vshll.u32 %v221, 16
        %v319 = vrot.slane %v317, 5
        %v320 = vsel %vm272, %v315, %v319
        %v322 = vshrl.u32 %v222, 16
        %v324 = vrot.slane %v322, 4
        %v325 = vshll.u32 %v222, 16
        %v327 = vrot.slane %v325, 5
        %v328 = vor.u32 %v324, %v327
        %v329 = vrot.slane %v328, 4
        %v331 = vshll.u32 %v223, 16
        %v333 = vrot.slane %v331, 5
        %v334 = vsel %vm272, %v329, %v333
        %v335 = vshrl.u32 %v223, 16
        %v337 = vrot.slane %v335, 4
        %v338 = vor.u32 %v337, %v333
        %v339 = vrot.slane %v338, 4
        %v341 = vshll.u32 %v224, 16
        %v343 = vrot.slane %v341, 5
        %v344 = vsel %vm272, %v339, %v343
        %v346 = vshrl.u32 %v225, 16
        %v348 = vrot.slane %v346, 4
        %v349 = vshll.u32 %v225, 16
        %v351 = vrot.slane %v349, 5
        %v352 = vor.u32 %v348, %v351
        %v353 = vrot.slane %v352, 4
        %v355 = vshll.u32 %v226, 16
        %v357 = vrot.slane %v355, 5
        %v358 = vsel %vm272, %v353, %v357
        %v359 = vshrl.u32 %v226, 16
        %v361 = vrot.slane %v359, 4
        %v362 = vor.u32 %v361, %v357
        %v363 = vrot.slane %v362, 4
        %v365 = vshll.u32 %v227, 16
        %v367 = vrot.slane %v365, 5
        %v368 = vsel %vm272, %v363, %v367
        %v370 = vshrl.u32 %v228, 16
        %v372 = vrot.slane %v370, 4
        %v373 = vshll.u32 %v228, 16
        %v375 = vrot.slane %v373, 5
        %v376 = vor.u32 %v372, %v375
        %v377 = vrot.slane %v376, 4
        %v379 = vshll.u32 %v229, 16
        %v381 = vrot.slane %v379, 5
        %v382 = vsel %vm272, %v377, %v381
        %v383 = vshrl.u32 %v229, 16
        %v385 = vrot.slane %v383, 4
        %v386 = vor.u32 %v385, %v381
        %v387 = vrot.slane %v386, 4
        %v389 = vshll.u32 %v230, 16
        %v391 = vrot.slane %v389, 5
        %v392 = vsel %vm272, %v387, %v391
        %v394 = vshrl.u32 %v231, 16
        %v396 = vrot.slane %v394, 4
        %v397 = vshll.u32 %v231, 16
        %v399 = vrot.slane %v397, 5
        %v400 = vor.u32 %v396, %v399
        %v401 = vrot.slane %v400, 4
        %v403 = vshll.u32 %v232, 16
        %v405 = vrot.slane %v403, 5
        %v406 = vsel %vm272, %v401, %v405
        %v407 = vshrl.u32 %v232, 16
        %v409 = vrot.slane %v407, 4
        %v410 = vor.u32 %v409, %v405
        %v411 = vrot.slane %v410, 4
        %v413 = vshll.u32 %v233, 16
        %v415 = vrot.slane %v413, 5
        %v416 = vsel %vm272, %v411, %v415
        %v418 = vshrl.u32 %v234, 16
        %v420 = vrot.slane %v418, 4
        %v421 = vshll.u32 %v234, 16
        %v423 = vrot.slane %v421, 5
        %v424 = vor.u32 %v420, %v423
        %v425 = vrot.slane %v424, 4
        %v427 = vshll.u32 %v235, 16
        %v429 = vrot.slane %v427, 5
        %v430 = vsel %vm272, %v425, %v429
        %v431 = vshrl.u32 %v235, 16
        %v433 = vrot.slane %v431, 4
        %v434 = vor.u32 %v433, %v429
        %v435 = vrot.slane %v434, 4
        %v437 = vshll.u32 %v236, 16
        %v439 = vrot.slane %v437, 5
        %v440 = vsel %vm272, %v435, %v439
        %v442 = vshrl.u32 %v237, 16
        %v444 = vrot.slane %v442, 4
        %v445 = vshll.u32 %v237, 16
        %v447 = vrot.slane %v445, 5
        %v448 = vor.u32 %v444, %v447
        %v449 = vrot.slane %v448, 4
        %v451 = vshll.u32 %v238, 16
        %v453 = vrot.slane %v451, 5
        %v454 = vsel %vm272, %v449, %v453
        %v455 = vshrl.u32 %v238, 16
        %v457 = vrot.slane %v455, 4
        %v458 = vor.u32 %v457, %v453
        %v459 = vrot.slane %v458, 4
        %v461 = vshll.u32 %v239, 16
        %v463 = vrot.slane %v461, 5
        %v464 = vsel %vm272, %v459, %v463
        %v466 = vshrl.u32 %v240, 16
        %v468 = vrot.slane %v466, 4
        %v469 = vshll.u32 %v240, 16
        %v471 = vrot.slane %v469, 5
        %v472 = vor.u32 %v468, %v471
        %v473 = vrot.slane %v472, 4
        %v475 = vshll.u32 %v241, 16
        %v477 = vrot.slane %v475, 5
        %v478 = vsel %vm272, %v473, %v477
        %v479 = vshrl.u32 %v241, 16
        %v481 = vrot.slane %v479, 4
        %v482 = vor.u32 %v481, %v477
        %v483 = vrot.slane %v482, 4
        %v485 = vshll.u32 %v242, 16
        %v487 = vrot.slane %v485, 5
        %v488 = vsel %vm272, %v483, %v487
        %v490 = vshrl.u32 %v243, 16
        %v492 = vrot.slane %v490, 4
        %v493 = vshll.u32 %v243, 16
        %v495 = vrot.slane %v493, 5
        %v496 = vor.u32 %v492, %v495
        %v497 = vrot.slane %v496, 4
        %v499 = vshll.u32 %v244, 16
        %v501 = vrot.slane %v499, 5
        %v502 = vsel %vm272, %v497, %v501
        %v503 = vshrl.u32 %v244, 16
        %v505 = vrot.slane %v503, 4
        %v506 = vor.u32 %v505, %v501
        %v507 = vrot.slane %v506, 4
        %v509 = vshll.u32 %v245, 16
        %v511 = vrot.slane %v509, 5
        %v512 = vsel %vm272, %v507, %v511
        %v514 = vshrl.u32 %v246, 16
        %v516 = vrot.slane %v514, 4
        %v517 = vshll.u32 %v246, 16
        %v519 = vrot.slane %v517, 5
        %v520 = vor.u32 %v516, %v519
        %v521 = vrot.slane %v520, 4
        %v523 = vshll.u32 %v247, 16
        %v525 = vrot.slane %v523, 5
        %v526 = vsel %vm272, %v521, %v525
        %v527 = vshrl.u32 %v247, 16
        %v529 = vrot.slane %v527, 4
        %v530 = vor.u32 %v529, %v525
        %v531 = vrot.slane %v530, 4
        %v533 = vshll.u32 %v248, 16
        %v535 = vrot.slane %v533, 5
        %v536 = vsel %vm272, %v531, %v535
        %v538 = vshrl.u32 %v249, 16
        %v540 = vrot.slane %v538, 4
        %v541 = vshll.u32 %v249, 16
        %v543 = vrot.slane %v541, 5
        %v544 = vor.u32 %v540, %v543
        %v545 = vrot.slane %v544, 4
        %v547 = vshll.u32 %v250, 16
        %v549 = vrot.slane %v547, 5
        %v550 = vsel %vm272, %v545, %v549
        %v551 = vshrl.u32 %v250, 16
        %v553 = vrot.slane %v551, 4
        %v554 = vor.u32 %v553, %v549
        %v555 = vrot.slane %v554, 4
        %v557 = vshll.u32 %v251, 16
        %v559 = vrot.slane %v557, 5
        %v560 = vsel %vm272, %v555, %v559
        %v562 = vshrl.u32 %v252, 16
        %v564 = vrot.slane %v562, 4
        %v565 = vshll.u32 %v252, 16
        %v567 = vrot.slane %v565, 5
        %v568 = vor.u32 %v564, %v567
        %v569 = vrot.slane %v568, 4
        %v571 = vshll.u32 %v253, 16
        %v573 = vrot.slane %v571, 5
        %v574 = vsel %vm272, %v569, %v573
        %v575 = vshrl.u32 %v253, 16
        %v577 = vrot.slane %v575, 4
        %v578 = vor.u32 %v577, %v573
        %v579 = vrot.slane %v578, 4
        %v581 = vshll.u32 %v254, 16
        %v583 = vrot.slane %v581, 5
        %v584 = vsel %vm272, %v579, %v583
        %v586 = vshrl.u32 %v255, 16
        %v588 = vrot.slane %v586, 4
        %v589 = vshll.u32 %v255, 16
        %v591 = vrot.slane %v589, 5
        %v592 = vor.u32 %v588, %v591
        %v593 = vrot.slane %v592, 4
        %v595 = vshll.u32 %v256, 16
        %v597 = vrot.slane %v595, 5
        %v598 = vsel %vm272, %v593, %v597
        %v599 = vshrl.u32 %v256, 16
        %v601 = vrot.slane %v599, 4
        %v602 = vor.u32 %v601, %v597
        %v603 = vrot.slane %v602, 4
        %v605 = vshll.u32 %v257, 16
        %v607 = vrot.slane %v605, 5
        %v608 = vsel %vm272, %v603, %v607
        %v610 = vshrl.u32 %v258, 16
        %v612 = vrot.slane %v610, 4
        %v613 = vshll.u32 %v258, 16
        %v615 = vrot.slane %v613, 5
        %v616 = vor.u32 %v612, %v615
        %v617 = vrot.slane %v616, 4
        %v619 = vshll.u32 %v259, 16
        %v621 = vrot.slane %v619, 5
        %v622 = vsel %vm272, %v617, %v621
        %v623 = vshrl.u32 %v259, 16
        %v625 = vrot.slane %v623, 4
        %v626 = vor.u32 %v625, %v621
        %v627 = vrot.slane %v626, 4
        %v629 = vshll.u32 %v260, 16
        %v631 = vrot.slane %v629, 5
        %v632 = vsel %vm272, %v627, %v631
        %v634 = vshrl.u32 %v261, 16
        %v636 = vrot.slane %v634, 4
        %v637 = vshll.u32 %v261, 16
        %v639 = vrot.slane %v637, 5
        %v640 = vor.u32 %v636, %v639
        %v641 = vrot.slane %v640, 4
        %v643 = vshll.u32 %v262, 16
        %v645 = vrot.slane %v643, 5
        %v646 = vsel %vm272, %v641, %v645
        %v647 = vshrl.u32 %v262, 16
        %v649 = vrot.slane %v647, 4
        %v650 = vor.u32 %v649, %v645
        %v651 = vrot.slane %v650, 4
        %v653 = vshll.u32 %v263, 16
        %v655 = vrot.slane %v653, 5
        %v656 = vsel %vm272, %v651, %v655
        %vm705 = vcmask 1042432
        %vm706 = vcmask 1046532
        %vm707 = vmor %vm705, %vm706
        %v708 = vrot.slane %v216, 5
        %v709 = vrot.slane %v708, 4
        %v710 = vrot.slane %v217, 5
        %v711 = vsel %vm707, %v709, %v710
        %v712 = vrot.slane %v710, 4
        %v713 = vrot.slane %v218, 5
        %v714 = vsel %vm707, %v712, %v713
        %v715 = vrot.slane %v219, 5
        %v716 = vrot.slane %v715, 4
        %v717 = vrot.slane %v220, 5
        %v718 = vsel %vm707, %v716, %v717
        %v719 = vrot.slane %v717, 4
        %v720 = vrot.slane %v221, 5
        %v721 = vsel %vm707, %v719, %v720
        %v722 = vrot.slane %v222, 5
        %v723 = vrot.slane %v722, 4
        %v724 = vrot.slane %v223, 5
        %v725 = vsel %vm707, %v723, %v724
        %v726 = vrot.slane %v724, 4
        %v727 = vrot.slane %v224, 5
        %v728 = vsel %vm707, %v726, %v727
        %v729 = vrot.slane %v225, 5
        %v730 = vrot.slane %v729, 4
        %v731 = vrot.slane %v226, 5
        %v732 = vsel %vm707, %v730, %v731
        %v733 = vrot.slane %v731, 4
        %v734 = vrot.slane %v227, 5
        %v735 = vsel %vm707, %v733, %v734
        %v736 = vrot.slane %v228, 5
        %v737 = vrot.slane %v736, 4
        %v738 = vrot.slane %v229, 5
        %v739 = vsel %vm707, %v737, %v738
        %v740 = vrot.slane %v738, 4
        %v741 = vrot.slane %v230, 5
        %v742 = vsel %vm707, %v740, %v741
        %v743 = vrot.slane %v231, 5
        %v744 = vrot.slane %v743, 4
        %v745 = vrot.slane %v232, 5
        %v746 = vsel %vm707, %v744, %v745
        %v747 = vrot.slane %v745, 4
        %v748 = vrot.slane %v233, 5
        %v749 = vsel %vm707, %v747, %v748
        %v750 = vrot.slane %v234, 5
        %v751 = vrot.slane %v750, 4
        %v752 = vrot.slane %v235, 5
        %v753 = vsel %vm707, %v751, %v752
        %v754 = vrot.slane %v752, 4
        %v755 = vrot.slane %v236, 5
        %v756 = vsel %vm707, %v754, %v755
        %v757 = vrot.slane %v237, 5
        %v758 = vrot.slane %v757, 4
        %v759 = vrot.slane %v238, 5
        %v760 = vsel %vm707, %v758, %v759
        %v761 = vrot.slane %v759, 4
        %v762 = vrot.slane %v239, 5
        %v763 = vsel %vm707, %v761, %v762
        %v764 = vrot.slane %v240, 5
        %v765 = vrot.slane %v764, 4
        %v766 = vrot.slane %v241, 5
        %v767 = vsel %vm707, %v765, %v766
        %v768 = vrot.slane %v766, 4
        %v769 = vrot.slane %v242, 5
        %v770 = vsel %vm707, %v768, %v769
        %v771 = vrot.slane %v243, 5
        %v772 = vrot.slane %v771, 4
        %v773 = vrot.slane %v244, 5
        %v774 = vsel %vm707, %v772, %v773
        %v775 = vrot.slane %v773, 4
        %v776 = vrot.slane %v245, 5
        %v777 = vsel %vm707, %v775, %v776
        %v778 = vrot.slane %v246, 5
        %v779 = vrot.slane %v778, 4
        %v780 = vrot.slane %v247, 5
        %v781 = vsel %vm707, %v779, %v780
        %v782 = vrot.slane %v780, 4
        %v783 = vrot.slane %v248, 5
        %v784 = vsel %vm707, %v782, %v783
        %v785 = vrot.slane %v249, 5
        %v786 = vrot.slane %v785, 4
        %v787 = vrot.slane %v250, 5
        %v788 = vsel %vm707, %v786, %v787
        %v789 = vrot.slane %v787, 4
        %v790 = vrot.slane %v251, 5
        %v791 = vsel %vm707, %v789, %v790
        %v792 = vrot.slane %v252, 5
        %v793 = vrot.slane %v792, 4
        %v794 = vrot.slane %v253, 5
        %v795 = vsel %vm707, %v793, %v794
        %v796 = vrot.slane %v794, 4
        %v797 = vrot.slane %v254, 5
        %v798 = vsel %vm707, %v796, %v797
        %v799 = vrot.slane %v255, 5
        %v800 = vrot.slane %v799, 4
        %v801 = vrot.slane %v256, 5
        %v802 = vsel %vm707, %v800, %v801
        %v803 = vrot.slane %v801, 4
        %v804 = vrot.slane %v257, 5
        %v805 = vsel %vm707, %v803, %v804
        %v806 = vrot.slane %v258, 5
        %v807 = vrot.slane %v806, 4
        %v808 = vrot.slane %v259, 5
        %v809 = vsel %vm707, %v807, %v808
        %v810 = vrot.slane %v808, 4
        %v811 = vrot.slane %v260, 5
        %v812 = vsel %vm707, %v810, %v811
        %v813 = vrot.slane %v261, 5
        %v814 = vrot.slane %v813, 4
        %v815 = vrot.slane %v262, 5
        %v816 = vsel %vm707, %v814, %v815
        %v817 = vrot.slane %v815, 4
        %v818 = vrot.slane %v263, 5
        %v819 = vsel %vm707, %v817, %v818
        %v821 = vshrl.u32 %v264, 16
        %v823 = vrot.slane %v821, 4
        %v824 = vshll.u32 %v264, 16
        %v826 = vrot.slane %v824, 5
        %v827 = vor.u32 %v823, %v826
        %v828 = vrot.slane %v827, 4
        %v830 = vshll.u32 %v265, 16
        %v832 = vrot.slane %v830, 5
        %v833 = vsel %vm272, %v828, %v832
        %v834 = vshrl.u32 %v265, 16
        %v836 = vrot.slane %v834, 4
        %v837 = vor.u32 %v836, %v832
        %v838 = vrot.slane %v837, 4
        %v840 = vshll.u32 %v266, 16
        %v842 = vrot.slane %v840, 5
        %v843 = vsel %vm272, %v838, %v842
        %v847 = vrot.slane %v264, 5
        %v848 = vrot.slane %v847, 4
        %v849 = vrot.slane %v265, 5
        %v850 = vsel %vm707, %v848, %v849
        %v851 = vrot.slane %v849, 4
        %v852 = vrot.slane %v266, 5
        %v853 = vsel %vm707, %v851, %v852
        %v855 = vshrl.u32 %v267, 16
        %v857 = vrot.slane %v855, 4
        %v858 = vshll.u32 %v267, 16
        %v860 = vrot.slane %v858, 5
        %v861 = vor.u32 %v857, %v860
        %v862 = vrot.slane %v861, 4
        %v864 = vshll.u32 %v268, 16
        %v866 = vrot.slane %v864, 5
        %v867 = vsel %vm272, %v862, %v866
        %v868 = vshrl.u32 %v268, 16
        %v870 = vrot.slane %v868, 4
        %v871 = vor.u32 %v870, %v866
        %v872 = vrot.slane %v871, 4
        %v874 = vshll.u32 %v269, 16
        %v876 = vrot.slane %v874, 5
        %v877 = vsel %vm272, %v872, %v876
        %v881 = vrot.slane %v267, 5
        %v882 = vrot.slane %v881, 4
        %v883 = vrot.slane %v268, 5
        %v884 = vsel %vm707, %v882, %v883
        %v885 = vrot.slane %v883, 4
        %v886 = vrot.slane %v269, 5
        %v887 = vsel %vm707, %v885, %v886
        %v888 = vunpack.c.l.b16 %v216
        %v889 = vunpack.c.l.b16 %v217
        %v890 = vunpack.c.l.b16 %v219
        %v891 = vunpack.c.l.b16 %v220
        %v892 = vunpack.c.l.b16 %v222
        %v893 = vunpack.c.l.b16 %v223
        %v894 = vunpack.c.l.b16 %v225
        %v895 = vunpack.c.l.b16 %v226
        %v896 = vunpack.c.l.b16 %v228
        %v897 = vunpack.c.l.b16 %v229
        %v898 = vunpack.c.l.b16 %v231
        %v899 = vunpack.c.l.b16 %v232
        %v900 = vunpack.c.l.b16 %v234
        %v901 = vunpack.c.l.b16 %v235
        %v902 = vunpack.c.l.b16 %v237
        %v903 = vunpack.c.l.b16 %v238
        %v904 = vunpack.c.l.b16 %v240
        %v905 = vunpack.c.l.b16 %v241
        %v906 = vunpack.c.l.b16 %v243
        %v907 = vunpack.c.l.b16 %v244
        %v908 = vunpack.c.l.b16 %v246
        %v909 = vunpack.c.l.b16 %v247
        %v910 = vunpack.c.l.b16 %v249
        %v911 = vunpack.c.l.b16 %v250
        %v912 = vunpack.c.l.b16 %v252
        %v913 = vunpack.c.l.b16 %v253
        %v914 = vunpack.c.l.b16 %v255
        %v915 = vunpack.c.l.b16 %v256
        %v916 = vunpack.c.l.b16 %v258
        %v917 = vunpack.c.l.b16 %v259
        %v918 = vunpack.c.l.b16 %v261
        %v919 = vunpack.c.l.b16 %v262
        %v920 = vpack.c.b16 %v889, %v888
        %v921 = vpack.c.b16 %v891, %v890
        %v922 = vpack.c.b16 %v893, %v892
        %v923 = vpack.c.b16 %v895, %v894
        %v924 = vpack.c.b16 %v897, %v896
        %v925 = vpack.c.b16 %v899, %v898
        %v926 = vpack.c.b16 %v901, %v900
        %v927 = vpack.c.b16 %v903, %v902
        %v928 = vpack.c.b16 %v905, %v904
        %v929 = vpack.c.b16 %v907, %v906
        %v930 = vpack.c.b16 %v909, %v908
        %v931 = vpack.c.b16 %v911, %v910
        %v932 = vpack.c.b16 %v913, %v912
        %v933 = vpack.c.b16 %v915, %v914
        %v934 = vpack.c.b16 %v917, %v916
        %v935 = vpack.c.b16 %v919, %v918
        %v936 = vunpack.c.l.b16 %v286
        %v937 = vunpack.c.l.b16 %v296
        %v938 = vunpack.c.l.b16 %v310
        %v939 = vunpack.c.l.b16 %v320
        %v940 = vunpack.c.l.b16 %v334
        %v941 = vunpack.c.l.b16 %v344
        %v942 = vunpack.c.l.b16 %v358
        %v943 = vunpack.c.l.b16 %v368
        %v944 = vunpack.c.l.b16 %v382
        %v945 = vunpack.c.l.b16 %v392
        %v946 = vunpack.c.l.b16 %v406
        %v947 = vunpack.c.l.b16 %v416
        %v948 = vunpack.c.l.b16 %v430
        %v949 = vunpack.c.l.b16 %v440
        %v950 = vunpack.c.l.b16 %v454
        %v951 = vunpack.c.l.b16 %v464
        %v952 = vunpack.c.l.b16 %v478
        %v953 = vunpack.c.l.b16 %v488
        %v954 = vunpack.c.l.b16 %v502
        %v955 = vunpack.c.l.b16 %v512
        %v956 = vunpack.c.l.b16 %v526
        %v957 = vunpack.c.l.b16 %v536
        %v958 = vunpack.c.l.b16 %v550
        %v959 = vunpack.c.l.b16 %v560
        %v960 = vunpack.c.l.b16 %v574
        %v961 = vunpack.c.l.b16 %v584
        %v962 = vunpack.c.l.b16 %v598
        %v963 = vunpack.c.l.b16 %v608
        %v964 = vunpack.c.l.b16 %v622
        %v965 = vunpack.c.l.b16 %v632
        %v966 = vunpack.c.l.b16 %v646
        %v967 = vunpack.c.l.b16 %v656
        %v968 = vpack.c.b16 %v937, %v936
        %v969 = vpack.c.b16 %v939, %v938
        %v970 = vpack.c.b16 %v941, %v940
        %v971 = vpack.c.b16 %v943, %v942
        %v972 = vpack.c.b16 %v945, %v944
        %v973 = vpack.c.b16 %v947, %v946
        %v974 = vpack.c.b16 %v949, %v948
        %v975 = vpack.c.b16 %v951, %v950
        %v976 = vpack.c.b16 %v953, %v952
        %v977 = vpack.c.b16 %v955, %v954
        %v978 = vpack.c.b16 %v957, %v956
        %v979 = vpack.c.b16 %v959, %v958
        %v980 = vpack.c.b16 %v961, %v960
        %v981 = vpack.c.b16 %v963, %v962
        %v982 = vpack.c.b16 %v965, %v964
        %v983 = vpack.c.b16 %v967, %v966
        %984 = vrot.lane.b32.xlu0 %v968, 8
        %v985 = vpop.permute.xlu0 %984
        %986 = vrot.lane.b32.xlu0 %v969, 8
        %v987 = vpop.permute.xlu0 %986
        %988 = vrot.lane.b32.xlu0 %v970, 8
        %v989 = vpop.permute.xlu0 %988
        %990 = vrot.lane.b32.xlu0 %v971, 8
        %v991 = vpop.permute.xlu0 %990
        %992 = vrot.lane.b32.xlu0 %v972, 8
        %v993 = vpop.permute.xlu0 %992
        %994 = vrot.lane.b32.xlu0 %v973, 8
        %v995 = vpop.permute.xlu0 %994
        %996 = vrot.lane.b32.xlu0 %v974, 8
        %v997 = vpop.permute.xlu0 %996
        %998 = vrot.lane.b32.xlu0 %v975, 8
        %v999 = vpop.permute.xlu0 %998
        %1000 = vrot.lane.b32.xlu0 %v976, 8
        %v1001 = vpop.permute.xlu0 %1000
        %1002 = vrot.lane.b32.xlu0 %v977, 8
        %v1003 = vpop.permute.xlu0 %1002
        %1004 = vrot.lane.b32.xlu0 %v978, 8
        %v1005 = vpop.permute.xlu0 %1004
        %1006 = vrot.lane.b32.xlu0 %v979, 8
        %v1007 = vpop.permute.xlu0 %1006
        %1008 = vrot.lane.b32.xlu0 %v980, 8
        %v1009 = vpop.permute.xlu0 %1008
        %1010 = vrot.lane.b32.xlu0 %v981, 8
        %v1011 = vpop.permute.xlu0 %1010
        %1012 = vrot.lane.b32.xlu0 %v982, 8
        %v1013 = vpop.permute.xlu0 %1012
        %1014 = vrot.lane.b32.xlu0 %v983, 8
        %v1015 = vpop.permute.xlu0 %1014
        %v1016 = vunpack.c.l.b16 %v711
        %v1017 = vunpack.c.l.b16 %v714
        %v1018 = vunpack.c.l.b16 %v718
        %v1019 = vunpack.c.l.b16 %v721
        %v1020 = vunpack.c.l.b16 %v725
        %v1021 = vunpack.c.l.b16 %v728
        %v1022 = vunpack.c.l.b16 %v732
        %v1023 = vunpack.c.l.b16 %v735
        %v1024 = vunpack.c.l.b16 %v739
        %v1025 = vunpack.c.l.b16 %v742
        %v1026 = vunpack.c.l.b16 %v746
        %v1027 = vunpack.c.l.b16 %v749
        %v1028 = vunpack.c.l.b16 %v753
        %v1029 = vunpack.c.l.b16 %v756
        %v1030 = vunpack.c.l.b16 %v760
        %v1031 = vunpack.c.l.b16 %v763
        %v1032 = vunpack.c.l.b16 %v767
        %v1033 = vunpack.c.l.b16 %v770
        %v1034 = vunpack.c.l.b16 %v774
        %v1035 = vunpack.c.l.b16 %v777
        %v1036 = vunpack.c.l.b16 %v781
        %v1037 = vunpack.c.l.b16 %v784
        %v1038 = vunpack.c.l.b16 %v788
        %v1039 = vunpack.c.l.b16 %v791
        %v1040 = vunpack.c.l.b16 %v795
        %v1041 = vunpack.c.l.b16 %v798
        %v1042 = vunpack.c.l.b16 %v802
        %v1043 = vunpack.c.l.b16 %v805
        %v1044 = vunpack.c.l.b16 %v809
        %v1045 = vunpack.c.l.b16 %v812
        %v1046 = vunpack.c.l.b16 %v816
        %v1047 = vunpack.c.l.b16 %v819
        %v1048 = vpack.c.b16 %v1017, %v1016
        %v1049 = vpack.c.b16 %v1019, %v1018
        %v1050 = vpack.c.b16 %v1021, %v1020
        %v1051 = vpack.c.b16 %v1023, %v1022
        %v1052 = vpack.c.b16 %v1025, %v1024
        %v1053 = vpack.c.b16 %v1027, %v1026
        %v1054 = vpack.c.b16 %v1029, %v1028
        %v1055 = vpack.c.b16 %v1031, %v1030
        %v1056 = vpack.c.b16 %v1033, %v1032
        %v1057 = vpack.c.b16 %v1035, %v1034
        %v1058 = vpack.c.b16 %v1037, %v1036
        %v1059 = vpack.c.b16 %v1039, %v1038
        %v1060 = vpack.c.b16 %v1041, %v1040
        %v1061 = vpack.c.b16 %v1043, %v1042
        %v1062 = vpack.c.b16 %v1045, %v1044
        %v1063 = vpack.c.b16 %v1047, %v1046
        %1064 = vrot.lane.b32.xlu0 %v1048, 16
        %v1065 = vpop.permute.xlu0 %1064
        %1066 = vrot.lane.b32.xlu0 %v1049, 16
        %v1067 = vpop.permute.xlu0 %1066
        %1068 = vrot.lane.b32.xlu0 %v1050, 16
        %v1069 = vpop.permute.xlu0 %1068
        %1070 = vrot.lane.b32.xlu0 %v1051, 16
        %v1071 = vpop.permute.xlu0 %1070
        %1072 = vrot.lane.b32.xlu0 %v1052, 16
        %v1073 = vpop.permute.xlu0 %1072
        %1074 = vrot.lane.b32.xlu0 %v1053, 16
        %v1075 = vpop.permute.xlu0 %1074
        %1076 = vrot.lane.b32.xlu0 %v1054, 16
        %v1077 = vpop.permute.xlu0 %1076
        %1078 = vrot.lane.b32.xlu0 %v1055, 16
        %v1079 = vpop.permute.xlu0 %1078
        %1080 = vrot.lane.b32.xlu0 %v1056, 16
        %v1081 = vpop.permute.xlu0 %1080
        %1082 = vrot.lane.b32.xlu0 %v1057, 16
        %v1083 = vpop.permute.xlu0 %1082
        %1084 = vrot.lane.b32.xlu0 %v1058, 16
        %v1085 = vpop.permute.xlu0 %1084
        %1086 = vrot.lane.b32.xlu0 %v1059, 16
        %v1087 = vpop.permute.xlu0 %1086
        %1088 = vrot.lane.b32.xlu0 %v1060, 16
        %v1089 = vpop.permute.xlu0 %1088
        %1090 = vrot.lane.b32.xlu0 %v1061, 16
        %v1091 = vpop.permute.xlu0 %1090
        %1092 = vrot.lane.b32.xlu0 %v1062, 16
        %v1093 = vpop.permute.xlu0 %1092
        %1094 = vrot.lane.b32.xlu0 %v1063, 16
        %v1095 = vpop.permute.xlu0 %1094
        %v1096 = vunpack.c.l.b16 %v264
        %v1097 = vunpack.c.l.b16 %v265
        %v1098 = vpack.c.b16 %v1097, %v1096
        %1099 = vrot.lane.b32.xlu0 %v921, 24
        %v1100 = vpop.permute.xlu0 %1099
        %1101 = vrot.lane.b32.xlu0 %v922, 24
        %v1102 = vpop.permute.xlu0 %1101
        %1103 = vrot.lane.b32.xlu0 %v923, 24
        %v1104 = vpop.permute.xlu0 %1103
        %1105 = vrot.lane.b32.xlu0 %v924, 24
        %v1106 = vpop.permute.xlu0 %1105
        %1107 = vrot.lane.b32.xlu0 %v925, 24
        %v1108 = vpop.permute.xlu0 %1107
        %1109 = vrot.lane.b32.xlu0 %v926, 24
        %v1110 = vpop.permute.xlu0 %1109
        %1111 = vrot.lane.b32.xlu0 %v927, 24
        %v1112 = vpop.permute.xlu0 %1111
        %1113 = vrot.lane.b32.xlu0 %v928, 24
        %v1114 = vpop.permute.xlu0 %1113
        %1115 = vrot.lane.b32.xlu0 %v929, 24
        %v1116 = vpop.permute.xlu0 %1115
        %1117 = vrot.lane.b32.xlu0 %v930, 24
        %v1118 = vpop.permute.xlu0 %1117
        %1119 = vrot.lane.b32.xlu0 %v931, 24
        %v1120 = vpop.permute.xlu0 %1119
        %1121 = vrot.lane.b32.xlu0 %v932, 24
        %v1122 = vpop.permute.xlu0 %1121
        %1123 = vrot.lane.b32.xlu0 %v933, 24
        %v1124 = vpop.permute.xlu0 %1123
        %1125 = vrot.lane.b32.xlu0 %v934, 24
        %v1126 = vpop.permute.xlu0 %1125
        %1127 = vrot.lane.b32.xlu0 %v935, 24
        %v1128 = vpop.permute.xlu0 %1127
        %1129 = vrot.lane.b32.xlu0 %v1098, 24
        %v1130 = vpop.permute.xlu0 %1129
        %v1131 = vunpack.c.l.b16 %v833
        %v1132 = vunpack.c.l.b16 %v843
        %v1133 = vpack.c.b16 %v1132, %v1131
        %1134 = vrot.lane.b32.xlu0 %v969, 32
        %v1135 = vpop.permute.xlu0 %1134
        %1136 = vrot.lane.b32.xlu0 %v970, 32
        %v1137 = vpop.permute.xlu0 %1136
        %1138 = vrot.lane.b32.xlu0 %v971, 32
        %v1139 = vpop.permute.xlu0 %1138
        %1140 = vrot.lane.b32.xlu0 %v972, 32
        %v1141 = vpop.permute.xlu0 %1140
        %1142 = vrot.lane.b32.xlu0 %v973, 32
        %v1143 = vpop.permute.xlu0 %1142
        %1144 = vrot.lane.b32.xlu0 %v974, 32
        %v1145 = vpop.permute.xlu0 %1144
        %1146 = vrot.lane.b32.xlu0 %v975, 32
        %v1147 = vpop.permute.xlu0 %1146
        %1148 = vrot.lane.b32.xlu0 %v976, 32
        %v1149 = vpop.permute.xlu0 %1148
        %1150 = vrot.lane.b32.xlu0 %v977, 32
        %v1151 = vpop.permute.xlu0 %1150
        %1152 = vrot.lane.b32.xlu0 %v978, 32
        %v1153 = vpop.permute.xlu0 %1152
        %1154 = vrot.lane.b32.xlu0 %v979, 32
        %v1155 = vpop.permute.xlu0 %1154
        %1156 = vrot.lane.b32.xlu0 %v980, 32
        %v1157 = vpop.permute.xlu0 %1156
        %1158 = vrot.lane.b32.xlu0 %v981, 32
        %v1159 = vpop.permute.xlu0 %1158
        %1160 = vrot.lane.b32.xlu0 %v982, 32
        %v1161 = vpop.permute.xlu0 %1160
        %1162 = vrot.lane.b32.xlu0 %v983, 32
        %v1163 = vpop.permute.xlu0 %1162
        %1164 = vrot.lane.b32.xlu0 %v1133, 32
        %v1165 = vpop.permute.xlu0 %1164
        %v1166 = vunpack.c.l.b16 %v850
        %v1167 = vunpack.c.l.b16 %v853
        %v1168 = vpack.c.b16 %v1167, %v1166
        %1169 = vrot.lane.b32.xlu0 %v1049, 40
        %v1170 = vpop.permute.xlu0 %1169
        %1171 = vrot.lane.b32.xlu0 %v1050, 40
        %v1172 = vpop.permute.xlu0 %1171
        %1173 = vrot.lane.b32.xlu0 %v1051, 40
        %v1174 = vpop.permute.xlu0 %1173
        %1175 = vrot.lane.b32.xlu0 %v1052, 40
        %v1176 = vpop.permute.xlu0 %1175
        %1177 = vrot.lane.b32.xlu0 %v1053, 40
        %v1178 = vpop.permute.xlu0 %1177
        %1179 = vrot.lane.b32.xlu0 %v1054, 40
        %v1180 = vpop.permute.xlu0 %1179
        %1181 = vrot.lane.b32.xlu0 %v1055, 40
        %v1182 = vpop.permute.xlu0 %1181
        %1183 = vrot.lane.b32.xlu0 %v1056, 40
        %v1184 = vpop.permute.xlu0 %1183
        %1185 = vrot.lane.b32.xlu0 %v1057, 40
        %v1186 = vpop.permute.xlu0 %1185
        %1187 = vrot.lane.b32.xlu0 %v1058, 40
        %v1188 = vpop.permute.xlu0 %1187
        %1189 = vrot.lane.b32.xlu0 %v1059, 40
        %v1190 = vpop.permute.xlu0 %1189
        %1191 = vrot.lane.b32.xlu0 %v1060, 40
        %v1192 = vpop.permute.xlu0 %1191
        %1193 = vrot.lane.b32.xlu0 %v1061, 40
        %v1194 = vpop.permute.xlu0 %1193
        %1195 = vrot.lane.b32.xlu0 %v1062, 40
        %v1196 = vpop.permute.xlu0 %1195
        %1197 = vrot.lane.b32.xlu0 %v1063, 40
        %v1198 = vpop.permute.xlu0 %1197
        %1199 = vrot.lane.b32.xlu0 %v1168, 40
        %v1200 = vpop.permute.xlu0 %1199
        %v1201 = vunpack.c.l.b16 %v267
        %v1202 = vunpack.c.l.b16 %v268
        %v1203 = vpack.c.b16 %v1202, %v1201
        %1204 = vrot.lane.b32.xlu0 %v922, 48
        %v1205 = vpop.permute.xlu0 %1204
        %1206 = vrot.lane.b32.xlu0 %v923, 48
        %v1207 = vpop.permute.xlu0 %1206
        %1208 = vrot.lane.b32.xlu0 %v924, 48
        %v1209 = vpop.permute.xlu0 %1208
        %1210 = vrot.lane.b32.xlu0 %v925, 48
        %v1211 = vpop.permute.xlu0 %1210
        %1212 = vrot.lane.b32.xlu0 %v926, 48
        %v1213 = vpop.permute.xlu0 %1212
        %1214 = vrot.lane.b32.xlu0 %v927, 48
        %v1215 = vpop.permute.xlu0 %1214
        %1216 = vrot.lane.b32.xlu0 %v928, 48
        %v1217 = vpop.permute.xlu0 %1216
        %1218 = vrot.lane.b32.xlu0 %v929, 48
        %v1219 = vpop.permute.xlu0 %1218
        %1220 = vrot.lane.b32.xlu0 %v930, 48
        %v1221 = vpop.permute.xlu0 %1220
        %1222 = vrot.lane.b32.xlu0 %v931, 48
        %v1223 = vpop.permute.xlu0 %1222
        %1224 = vrot.lane.b32.xlu0 %v932, 48
        %v1225 = vpop.permute.xlu0 %1224
        %1226 = vrot.lane.b32.xlu0 %v933, 48
        %v1227 = vpop.permute.xlu0 %1226
        %1228 = vrot.lane.b32.xlu0 %v934, 48
        %v1229 = vpop.permute.xlu0 %1228
        %1230 = vrot.lane.b32.xlu0 %v935, 48
        %v1231 = vpop.permute.xlu0 %1230
        %1232 = vrot.lane.b32.xlu0 %v1098, 48
        %v1233 = vpop.permute.xlu0 %1232
        %1234 = vrot.lane.b32.xlu0 %v1203, 48
        %v1235 = vpop.permute.xlu0 %1234
        %v1236 = vunpack.c.l.b16 %v867
        %v1237 = vunpack.c.l.b16 %v877
        %v1238 = vpack.c.b16 %v1237, %v1236
        %1239 = vrot.lane.b32.xlu0 %v970, 56
        %v1240 = vpop.permute.xlu0 %1239
        %1241 = vrot.lane.b32.xlu0 %v971, 56
        %v1242 = vpop.permute.xlu0 %1241
        %1243 = vrot.lane.b32.xlu0 %v972, 56
        %v1244 = vpop.permute.xlu0 %1243
        %1245 = vrot.lane.b32.xlu0 %v973, 56
        %v1246 = vpop.permute.xlu0 %1245
        %1247 = vrot.lane.b32.xlu0 %v974, 56
        %v1248 = vpop.permute.xlu0 %1247
        %1249 = vrot.lane.b32.xlu0 %v975, 56
        %v1250 = vpop.permute.xlu0 %1249
        %1251 = vrot.lane.b32.xlu0 %v976, 56
        %v1252 = vpop.permute.xlu0 %1251
        %1253 = vrot.lane.b32.xlu0 %v977, 56
        %v1254 = vpop.permute.xlu0 %1253
        %1255 = vrot.lane.b32.xlu0 %v978, 56
        %v1256 = vpop.permute.xlu0 %1255
        %1257 = vrot.lane.b32.xlu0 %v979, 56
        %v1258 = vpop.permute.xlu0 %1257
        %1259 = vrot.lane.b32.xlu0 %v980, 56
        %v1260 = vpop.permute.xlu0 %1259
        %1261 = vrot.lane.b32.xlu0 %v981, 56
        %v1262 = vpop.permute.xlu0 %1261
        %1263 = vrot.lane.b32.xlu0 %v982, 56
        %v1264 = vpop.permute.xlu0 %1263
        %1265 = vrot.lane.b32.xlu0 %v983, 56
        %v1266 = vpop.permute.xlu0 %1265
        %1267 = vrot.lane.b32.xlu0 %v1133, 56
        %v1268 = vpop.permute.xlu0 %1267
        %1269 = vrot.lane.b32.xlu0 %v1238, 56
        %v1270 = vpop.permute.xlu0 %1269
        %v1271 = vunpack.c.l.b16 %v884
        %v1272 = vunpack.c.l.b16 %v887
        %v1273 = vpack.c.b16 %v1272, %v1271
        %1274 = vrot.lane.b32.xlu0 %v1050, 64
        %v1275 = vpop.permute.xlu0 %1274
        %1276 = vrot.lane.b32.xlu0 %v1051, 64
        %v1277 = vpop.permute.xlu0 %1276
        %1278 = vrot.lane.b32.xlu0 %v1052, 64
        %v1279 = vpop.permute.xlu0 %1278
        %1280 = vrot.lane.b32.xlu0 %v1053, 64
        %v1281 = vpop.permute.xlu0 %1280
        %1282 = vrot.lane.b32.xlu0 %v1054, 64
        %v1283 = vpop.permute.xlu0 %1282
        %1284 = vrot.lane.b32.xlu0 %v1055, 64
        %v1285 = vpop.permute.xlu0 %1284
        %1286 = vrot.lane.b32.xlu0 %v1056, 64
        %v1287 = vpop.permute.xlu0 %1286
        %1288 = vrot.lane.b32.xlu0 %v1057, 64
        %v1289 = vpop.permute.xlu0 %1288
        %1290 = vrot.lane.b32.xlu0 %v1058, 64
        %v1291 = vpop.permute.xlu0 %1290
        %1292 = vrot.lane.b32.xlu0 %v1059, 64
        %v1293 = vpop.permute.xlu0 %1292
        %1294 = vrot.lane.b32.xlu0 %v1060, 64
        %v1295 = vpop.permute.xlu0 %1294
        %1296 = vrot.lane.b32.xlu0 %v1061, 64
        %v1297 = vpop.permute.xlu0 %1296
        %1298 = vrot.lane.b32.xlu0 %v1062, 64
        %v1299 = vpop.permute.xlu0 %1298
        %1300 = vrot.lane.b32.xlu0 %v1063, 64
        %v1301 = vpop.permute.xlu0 %1300
        %1302 = vrot.lane.b32.xlu0 %v1168, 64
        %v1303 = vpop.permute.xlu0 %1302
        %1304 = vrot.lane.b32.xlu0 %v1273, 64
        %v1305 = vpop.permute.xlu0 %1304
        %vm1306 = vcmask 64512
        %v1309 = vsel %vm1306, %v920, %v985
        %v1312 = vsel %vm1306, %v921, %v987
        %v1315 = vsel %vm1306, %v922, %v989
        %v1318 = vsel %vm1306, %v923, %v991
        %v1321 = vsel %vm1306, %v924, %v993
        %v1324 = vsel %vm1306, %v925, %v995
        %v1327 = vsel %vm1306, %v926, %v997
        %v1330 = vsel %vm1306, %v927, %v999
        %v1333 = vsel %vm1306, %v928, %v1001
        %v1336 = vsel %vm1306, %v929, %v1003
        %v1339 = vsel %vm1306, %v930, %v1005
        %v1342 = vsel %vm1306, %v931, %v1007
        %v1345 = vsel %vm1306, %v932, %v1009
        %v1348 = vsel %vm1306, %v933, %v1011
        %v1351 = vsel %vm1306, %v934, %v1013
        %v1354 = vsel %vm1306, %v935, %v1015
        %vm1355 = vcmask 130048
        %v1357 = vsel %vm1355, %v1309, %v1065
        %v1359 = vsel %vm1355, %v1312, %v1067
        %v1361 = vsel %vm1355, %v1315, %v1069
        %v1363 = vsel %vm1355, %v1318, %v1071
        %v1365 = vsel %vm1355, %v1321, %v1073
        %v1367 = vsel %vm1355, %v1324, %v1075
        %v1369 = vsel %vm1355, %v1327, %v1077
        %v1371 = vsel %vm1355, %v1330, %v1079
        %v1373 = vsel %vm1355, %v1333, %v1081
        %v1375 = vsel %vm1355, %v1336, %v1083
        %v1377 = vsel %vm1355, %v1339, %v1085
        %v1379 = vsel %vm1355, %v1342, %v1087
        %v1381 = vsel %vm1355, %v1345, %v1089
        %v1383 = vsel %vm1355, %v1348, %v1091
        %v1385 = vsel %vm1355, %v1351, %v1093
        %v1387 = vsel %vm1355, %v1354, %v1095
        %vm1388 = vcmask 195584
        %v1390 = vsel %vm1388, %v1357, %v1100
        %v1392 = vsel %vm1388, %v1359, %v1102
        %v1394 = vsel %vm1388, %v1361, %v1104
        %v1396 = vsel %vm1388, %v1363, %v1106
        %v1398 = vsel %vm1388, %v1365, %v1108
        %v1400 = vsel %vm1388, %v1367, %v1110
        %v1402 = vsel %vm1388, %v1369, %v1112
        %v1404 = vsel %vm1388, %v1371, %v1114
        %v1406 = vsel %vm1388, %v1373, %v1116
        %v1408 = vsel %vm1388, %v1375, %v1118
        %v1410 = vsel %vm1388, %v1377, %v1120
        %v1412 = vsel %vm1388, %v1379, %v1122
        %v1414 = vsel %vm1388, %v1381, %v1124
        %v1416 = vsel %vm1388, %v1383, %v1126
        %v1418 = vsel %vm1388, %v1385, %v1128
        %v1420 = vsel %vm1388, %v1387, %v1130
        %vm1421 = vcmask 261120
        %v1423 = vsel %vm1421, %v1390, %v1135
        %v1425 = vsel %vm1421, %v1392, %v1137
        %v1427 = vsel %vm1421, %v1394, %v1139
        %v1429 = vsel %vm1421, %v1396, %v1141
        %v1431 = vsel %vm1421, %v1398, %v1143
        %v1433 = vsel %vm1421, %v1400, %v1145
        %v1435 = vsel %vm1421, %v1402, %v1147
        %v1437 = vsel %vm1421, %v1404, %v1149
        %v1439 = vsel %vm1421, %v1406, %v1151
        %v1441 = vsel %vm1421, %v1408, %v1153
        %v1443 = vsel %vm1421, %v1410, %v1155
        %v1445 = vsel %vm1421, %v1412, %v1157
        %v1447 = vsel %vm1421, %v1414, %v1159
        %v1449 = vsel %vm1421, %v1416, %v1161
        %v1451 = vsel %vm1421, %v1418, %v1163
        %v1453 = vsel %vm1421, %v1420, %v1165
        %vm1454 = vcmask 326656
        %v1456 = vsel %vm1454, %v1423, %v1170
        %v1458 = vsel %vm1454, %v1425, %v1172
        %v1460 = vsel %vm1454, %v1427, %v1174
        %v1462 = vsel %vm1454, %v1429, %v1176
        %v1464 = vsel %vm1454, %v1431, %v1178
        %v1466 = vsel %vm1454, %v1433, %v1180
        %v1468 = vsel %vm1454, %v1435, %v1182
        %v1470 = vsel %vm1454, %v1437, %v1184
        %v1472 = vsel %vm1454, %v1439, %v1186
        %v1474 = vsel %vm1454, %v1441, %v1188
        %v1476 = vsel %vm1454, %v1443, %v1190
        %v1478 = vsel %vm1454, %v1445, %v1192
        %v1480 = vsel %vm1454, %v1447, %v1194
        %v1482 = vsel %vm1454, %v1449, %v1196
        %v1484 = vsel %vm1454, %v1451, %v1198
        %v1486 = vsel %vm1454, %v1453, %v1200
        %vm1487 = vcmask 392192
        %v1489 = vsel %vm1487, %v1456, %v1205
        %v1491 = vsel %vm1487, %v1458, %v1207
        %v1493 = vsel %vm1487, %v1460, %v1209
        %v1495 = vsel %vm1487, %v1462, %v1211
        %v1497 = vsel %vm1487, %v1464, %v1213
        %v1499 = vsel %vm1487, %v1466, %v1215
        %v1501 = vsel %vm1487, %v1468, %v1217
        %v1503 = vsel %vm1487, %v1470, %v1219
        %v1505 = vsel %vm1487, %v1472, %v1221
        %v1507 = vsel %vm1487, %v1474, %v1223
        %v1509 = vsel %vm1487, %v1476, %v1225
        %v1511 = vsel %vm1487, %v1478, %v1227
        %v1513 = vsel %vm1487, %v1480, %v1229
        %v1515 = vsel %vm1487, %v1482, %v1231
        %v1517 = vsel %vm1487, %v1484, %v1233
        %v1519 = vsel %vm1487, %v1486, %v1235
        %vm1520 = vcmask 457728
        %v1522 = vsel %vm1520, %v1489, %v1240
        %v1524 = vsel %vm1520, %v1491, %v1242
        %v1526 = vsel %vm1520, %v1493, %v1244
        %v1528 = vsel %vm1520, %v1495, %v1246
        %v1530 = vsel %vm1520, %v1497, %v1248
        %v1532 = vsel %vm1520, %v1499, %v1250
        %v1534 = vsel %vm1520, %v1501, %v1252
        %v1536 = vsel %vm1520, %v1503, %v1254
        %v1538 = vsel %vm1520, %v1505, %v1256
        %v1540 = vsel %vm1520, %v1507, %v1258
        %v1542 = vsel %vm1520, %v1509, %v1260
        %v1544 = vsel %vm1520, %v1511, %v1262
        %v1546 = vsel %vm1520, %v1513, %v1264
        %v1548 = vsel %vm1520, %v1515, %v1266
        %v1550 = vsel %vm1520, %v1517, %v1268
        %v1552 = vsel %vm1520, %v1519, %v1270
        %vm1553 = vcmask 523264
        %v1555 = vsel %vm1553, %v1522, %v1275
        %v1557 = vsel %vm1553, %v1524, %v1277
        %v1559 = vsel %vm1553, %v1526, %v1279
        %v1561 = vsel %vm1553, %v1528, %v1281
        %v1563 = vsel %vm1553, %v1530, %v1283
        %v1565 = vsel %vm1553, %v1532, %v1285
        %v1567 = vsel %vm1553, %v1534, %v1287
        %v1569 = vsel %vm1553, %v1536, %v1289
        %v1571 = vsel %vm1553, %v1538, %v1291
        %v1573 = vsel %vm1553, %v1540, %v1293
        %v1575 = vsel %vm1553, %v1542, %v1295
        %v1577 = vsel %vm1553, %v1544, %v1297
        %v1579 = vsel %vm1553, %v1546, %v1299
        %v1581 = vsel %vm1553, %v1548, %v1301
        %v1583 = vsel %vm1553, %v1550, %v1303
        %v1585 = vsel %vm1553, %v1552, %v1305
        %v1586 = vld [vmem:[#allocation5] sm:$0xf]
        %v1587 = vld [vmem:[#allocation5 + $0x4] sm:$0xf]
        %v1588 = vld [vmem:[#allocation5 + $0x8] sm:$0xf]
        %v1589 = vld [vmem:[#allocation5 + $0xc] sm:$0xf]
        %v1590 = vld [vmem:[#allocation5 + $0x10] sm:$0xf]
        %v1591 = vld [vmem:[#allocation5 + $0x14] sm:$0xf]
        %v1592 = vld [vmem:[#allocation5 + $0x18] sm:$0xf]
        %v1593 = vld [vmem:[#allocation5 + $0x1c] sm:$0xf]
        %v1594 = vld [vmem:[#allocation5 + $0x20] sm:$0xf]
        %v1604 = vunpack.c.l.b16 %v1586
        %v1605 = vunpack.c.l.b16 %v1587
        %v1606 = vunpack.c.l.b16 %v1588
        %v1607 = vunpack.c.l.b16 %v1589
        %v1608 = vunpack.c.l.b16 %v1590
        %v1609 = vunpack.c.l.b16 %v1591
        %v1610 = vunpack.c.l.b16 %v1592
        %v1611 = vunpack.c.l.b16 %v1593
        %v1612 = vunpack.c.l.b16 %v1594
        %v1613 = vpack.c.b16 %v1605, %v1604
        %v1614 = vpack.c.b16 %v1607, %v1606
        %v1615 = vpack.c.b16 %v1609, %v1608
        %v1616 = vpack.c.b16 %v1611, %v1610
        %v1617 = vpack.c.b16 %v1612, %v1612
        %vm1622 = vcmask 588800
        %v1623 = vsel %vm1622, %v1555, 0
        %v1625 = vsel %vm1622, %v1557, 0
        %v1627 = vsel %vm1622, %v1559, 0
        %v1629 = vsel %vm1622, %v1561, 0
        %v1631 = vsel %vm1622, %v1563, 0
        %v1633 = vsel %vm1622, %v1565, 0
        %v1635 = vsel %vm1622, %v1567, 0
        %v1637 = vsel %vm1622, %v1569, 0
        %v1639 = vsel %vm1622, %v1571, 0
        %v1641 = vsel %vm1622, %v1573, 0
        %v1643 = vsel %vm1622, %v1575, 0
        %v1645 = vsel %vm1622, %v1577, 0
        %v1647 = vsel %vm1622, %v1579, 0
        %v1649 = vsel %vm1622, %v1581, 0
        %v1651 = vsel %vm1622, %v1583, 0
        %v1653 = vsel %vm1622, %v1585, 0
        %vm1655 = vcmask 1043456
        %v1657 = vsel %vm1655, %v1617, 0
        %1659 = vmatprep.subr.bf16.mxu0 0
        %1660 = vmatpush1.bf16.msra.mxu0 %v1613
        %1661 = vmatprep.subr.bf16.mxu0 0
        %1662 = vmatpush1.bf16.msra.mxu0 %v1614
        %1663 = vmatprep.subr.bf16.mxu0 0
        %1664 = vmatpush1.bf16.msra.mxu0 %v1615
        %1665 = vmatprep.subr.bf16.mxu0 0
        %1666 = vmatpush1.bf16.msra.mxu0 %v1616
        %1667 = vmatprep.subr.bf16.mxu0 0
        %1668 = vmatpush1.bf16.msra.mxu0 %v1657
        %1669 = vmatprep.subr.bf16.mxu0 0
        %1670 = vmatpush1.bf16.msra.mxu0 0
        %1671 = vmatprep.subr.bf16.mxu0 0
        %1672 = vmatpush1.bf16.msra.mxu0 0
        %1673 = vmatprep.subr.bf16.mxu0 0
        %1674 = vmatpush1.bf16.msra.mxu0 0
        %1675 = vmatprep.subr.bf16.mxu0 0
        %1676 = vmatpush1.bf16.msra.mxu0 0
        %1677 = vmatprep.subr.bf16.mxu0 0
        %1678 = vmatpush1.bf16.msra.mxu0 0
        %1679 = vmatprep.subr.bf16.mxu0 0
        %1680 = vmatpush1.bf16.msra.mxu0 0
        %1681 = vmatprep.subr.bf16.mxu0 0
        %1682 = vmatpush1.bf16.msra.mxu0 0
        %1683 = vmatprep.subr.bf16.mxu0 0
        %1684 = vmatpush1.bf16.msra.mxu0 0
        %1685 = vmatprep.subr.bf16.mxu0 0
        %1686 = vmatpush1.bf16.msra.mxu0 0
        %1687 = vmatprep.subr.bf16.mxu0 0
        %1688 = vmatpush1.bf16.msra.mxu0 0
        %1689 = vmatprep.subr.bf16.mxu0 0
        %1690 = vmatpush1.bf16.msra.mxu0 0
        %1691 = vmatprep.mubr.bf16.mxu0 0
        %1692 = vmatmul.mubr.bf16.gmra.mrb[0].mxu0 %v1623
        %v1693 = vpop.f32.mrb[0].mxu0
        %v1694 = vadd.f32 0.0, %v1693
        %v1695 = vpop.f32.mrb[0].mxu0
        %v1696 = vpop.f32.mrb[0].mxu0
        %v1697 = vadd.f32 0.0, %v1696
        %v1698 = vpop.f32.mrb[0].mxu0
        %1699 = vmatprep.mubr.bf16.mxu0 0
        %1700 = vmatmul.mubr.bf16.gmra.mrb[0].mxu0 %v1625
        %v1701 = vpop.f32.mrb[0].mxu0
        %v1702 = vadd.f32 0.0, %v1701
        %v1703 = vpop.f32.mrb[0].mxu0
        %v1704 = vpop.f32.mrb[0].mxu0
        %v1705 = vadd.f32 0.0, %v1704
        %v1706 = vpop.f32.mrb[0].mxu0
        %1707 = vmatprep.mubr.bf16.mxu0 0
        %1708 = vmatmul.mubr.bf16.gmra.mrb[0].mxu0 %v1627
        %v1709 = vpop.f32.mrb[0].mxu0
        %v1710 = vadd.f32 0.0, %v1709
        %v1711 = vpop.f32.mrb[0].mxu0
        %v1712 = vpop.f32.mrb[0].mxu0
        %v1713 = vadd.f32 0.0, %v1712
        %v1714 = vpop.f32.mrb[0].mxu0
        %1715 = vmatprep.mubr.bf16.mxu0 0
        %1716 = vmatmul.mubr.bf16.gmra.mrb[0].mxu0 %v1629
        %v1717 = vpop.f32.mrb[0].mxu0
        %v1718 = vadd.f32 0.0, %v1717
        %v1719 = vpop.f32.mrb[0].mxu0
        %v1720 = vpop.f32.mrb[0].mxu0
        %v1721 = vadd.f32 0.0, %v1720
        %v1722 = vpop.f32.mrb[0].mxu0
        %1723 = vmatprep.mubr.bf16.mxu0 0
        %1724 = vmatmul.mubr.bf16.gmra.mrb[0].mxu0 %v1631
        %v1725 = vpop.f32.mrb[0].mxu0
        %v1726 = vadd.f32 0.0, %v1725
        %v1727 = vpop.f32.mrb[0].mxu0
        %v1728 = vpop.f32.mrb[0].mxu0
        %v1729 = vadd.f32 0.0, %v1728
        %v1730 = vpop.f32.mrb[0].mxu0
        %1731 = vmatprep.mubr.bf16.mxu0 0
        %1732 = vmatmul.mubr.bf16.gmra.mrb[0].mxu0 %v1633
        %v1733 = vpop.f32.mrb[0].mxu0
        %v1734 = vadd.f32 0.0, %v1733
        %v1735 = vpop.f32.mrb[0].mxu0
        %v1736 = vpop.f32.mrb[0].mxu0
        %v1737 = vadd.f32 0.0, %v1736
        %v1738 = vpop.f32.mrb[0].mxu0
        %1739 = vmatprep.mubr.bf16.mxu0 0
        %1740 = vmatmul.mubr.bf16.gmra.mrb[0].mxu0 %v1635
        %v1741 = vpop.f32.mrb[0].mxu0
        %v1742 = vadd.f32 0.0, %v1741
        %v1743 = vpop.f32.mrb[0].mxu0
        %v1744 = vpop.f32.mrb[0].mxu0
        %v1745 = vadd.f32 0.0, %v1744
        %v1746 = vpop.f32.mrb[0].mxu0
        %1747 = vmatprep.mubr.bf16.mxu0 0
        %1748 = vmatmul.mubr.bf16.gmra.mrb[0].mxu0 %v1637
        %v1749 = vpop.f32.mrb[0].mxu0
        %v1750 = vadd.f32 0.0, %v1749
        %v1751 = vpop.f32.mrb[0].mxu0
        %v1752 = vpop.f32.mrb[0].mxu0
        %v1753 = vadd.f32 0.0, %v1752
        %v1754 = vpop.f32.mrb[0].mxu0
        %1755 = vmatprep.mubr.bf16.mxu0 0
        %1756 = vmatmul.mubr.bf16.gmra.mrb[0].mxu0 %v1639
        %v1757 = vpop.f32.mrb[0].mxu0
        %v1758 = vadd.f32 0.0, %v1757
        %v1759 = vpop.f32.mrb[0].mxu0
        %v1760 = vpop.f32.mrb[0].mxu0
        %v1761 = vadd.f32 0.0, %v1760
        %v1762 = vpop.f32.mrb[0].mxu0
        %1763 = vmatprep.mubr.bf16.mxu0 0
        %1764 = vmatmul.mubr.bf16.gmra.mrb[0].mxu0 %v1641
        %v1765 = vpop.f32.mrb[0].mxu0
        %v1766 = vadd.f32 0.0, %v1765
        %v1767 = vpop.f32.mrb[0].mxu0
        %v1768 = vpop.f32.mrb[0].mxu0
        %v1769 = vadd.f32 0.0, %v1768
        %v1770 = vpop.f32.mrb[0].mxu0
        %1771 = vmatprep.mubr.bf16.mxu0 0
        %1772 = vmatmul.mubr.bf16.gmra.mrb[0].mxu0 %v1643
        %v1773 = vpop.f32.mrb[0].mxu0
        %v1774 = vadd.f32 0.0, %v1773
        %v1775 = vpop.f32.mrb[0].mxu0
        %v1776 = vpop.f32.mrb[0].mxu0
        %v1777 = vadd.f32 0.0, %v1776
        %v1778 = vpop.f32.mrb[0].mxu0
        %1779 = vmatprep.mubr.bf16.mxu0 0
        %1780 = vmatmul.mubr.bf16.gmra.mrb[0].mxu0 %v1645
        %v1781 = vpop.f32.mrb[0].mxu0
        %v1782 = vadd.f32 0.0, %v1781
        %v1783 = vpop.f32.mrb[0].mxu0
        %v1784 = vpop.f32.mrb[0].mxu0
        %v1785 = vadd.f32 0.0, %v1784
        %v1786 = vpop.f32.mrb[0].mxu0
        %1787 = vmatprep.mubr.bf16.mxu0 0
        %1788 = vmatmul.mubr.bf16.gmra.mrb[0].mxu0 %v1647
        %v1789 = vpop.f32.mrb[0].mxu0
        %v1790 = vadd.f32 0.0, %v1789
        %v1791 = vpop.f32.mrb[0].mxu0
        %v1792 = vpop.f32.mrb[0].mxu0
        %v1793 = vadd.f32 0.0, %v1792
        %v1794 = vpop.f32.mrb[0].mxu0
        %1795 = vmatprep.mubr.bf16.mxu0 0
        %1796 = vmatmul.mubr.bf16.gmra.mrb[0].mxu0 %v1649
        %v1797 = vpop.f32.mrb[0].mxu0
        %v1798 = vadd.f32 0.0, %v1797
        %v1799 = vpop.f32.mrb[0].mxu0
        %v1800 = vpop.f32.mrb[0].mxu0
        %v1801 = vadd.f32 0.0, %v1800
        %v1802 = vpop.f32.mrb[0].mxu0
        %1803 = vmatprep.mubr.bf16.mxu0 0
        %1804 = vmatmul.mubr.bf16.gmra.mrb[0].mxu0 %v1651
        %v1805 = vpop.f32.mrb[0].mxu0
        %v1806 = vadd.f32 0.0, %v1805
        %v1807 = vpop.f32.mrb[0].mxu0
        %v1808 = vpop.f32.mrb[0].mxu0
        %v1809 = vadd.f32 0.0, %v1808
        %v1810 = vpop.f32.mrb[0].mxu0
        %1811 = vmatprep.mubr.bf16.mxu0 0
        %1812 = vmatmul.mubr.bf16.gmra.mrb[0].mxu0 %v1653
        %v1813 = vpop.f32.mrb[0].mxu0
        %v1814 = vadd.f32 0.0, %v1813
        %v1815 = vpop.f32.mrb[0].mxu0
        %v1816 = vpop.f32.mrb[0].mxu0
        %v1817 = vadd.f32 0.0, %v1816
        %v1818 = vpop.f32.mrb[0].mxu0
        %1819 = vdwg.mxu0
        %v1820 = vadd.f32 %v1694, %v1697
        %v1821 = vadd.f32 %v1820, %v1702
        %v1822 = vadd.f32 %v1821, %v1705
        %v1823 = vadd.f32 %v1822, %v1710
        %v1824 = vadd.f32 %v1823, %v1713
        %v1825 = vadd.f32 %v1824, %v1718
        %v1826 = vadd.f32 %v1825, %v1721
        %v1827 = vadd.f32 %v1826, %v1726
        %v1828 = vadd.f32 %v1827, %v1729
        %v1829 = vadd.f32 %v1828, %v1734
        %v1830 = vadd.f32 %v1829, %v1737
        %v1831 = vadd.f32 %v1830, %v1742
        %v1832 = vadd.f32 %v1831, %v1745
        %v1833 = vadd.f32 %v1832, %v1750
        %v1834 = vadd.f32 %v1833, %v1753
        %v1835 = vadd.f32 %v1834, %v1758
        %v1836 = vadd.f32 %v1835, %v1761
        %v1837 = vadd.f32 %v1836, %v1766
        %v1838 = vadd.f32 %v1837, %v1769
        %v1839 = vadd.f32 %v1838, %v1774
        %v1840 = vadd.f32 %v1839, %v1777
        %v1841 = vadd.f32 %v1840, %v1782
        %v1842 = vadd.f32 %v1841, %v1785
        %v1843 = vadd.f32 %v1842, %v1790
        %v1844 = vadd.f32 %v1843, %v1793
        %v1845 = vadd.f32 %v1844, %v1798
        %v1846 = vadd.f32 %v1845, %v1801
        %v1847 = vadd.f32 %v1846, %v1806
        %v1848 = vadd.f32 %v1847, %v1809
        %v1849 = vadd.f32 %v1848, %v1814
        %v1850 = vadd.f32 %v1849, %v1817
        %v1851 = vrot.slane %v1850, 4
        %v1852 = vadd.f32 %v1850, %v1851
        %v1853 = vrot.slane %v1852, 2
        %v1854 = vadd.f32 %v1852, %v1853
        %v1855 = vrot.slane %v1854, 1
        %v1856 = vadd.f32 %v1854, %v1855
        %1857 = vst [vmem:[%s214] sm:$0x1] %v1856
        %v1858 = vmul.f32 %v1694, %v1694
        %v1859 = vmul.f32 %v1697, %v1697
        %v1860 = vmul.f32 %v1702, %v1702
        %v1861 = vmul.f32 %v1705, %v1705
        %v1862 = vmul.f32 %v1710, %v1710
        %v1863 = vmul.f32 %v1713, %v1713
        %v1864 = vmul.f32 %v1718, %v1718
        %v1865 = vmul.f32 %v1721, %v1721
        %v1866 = vmul.f32 %v1726, %v1726
        %v1867 = vmul.f32 %v1729, %v1729
        %v1868 = vmul.f32 %v1734, %v1734
        %v1869 = vmul.f32 %v1737, %v1737
        %v1870 = vmul.f32 %v1742, %v1742
        %v1871 = vmul.f32 %v1745, %v1745
        %v1872 = vmul.f32 %v1750, %v1750
        %v1873 = vmul.f32 %v1753, %v1753
        %v1874 = vmul.f32 %v1758, %v1758
        %v1875 = vmul.f32 %v1761, %v1761
        %v1876 = vmul.f32 %v1766, %v1766
        %v1877 = vmul.f32 %v1769, %v1769
        %v1878 = vmul.f32 %v1774, %v1774
        %v1879 = vmul.f32 %v1777, %v1777
        %v1880 = vmul.f32 %v1782, %v1782
        %v1881 = vmul.f32 %v1785, %v1785
        %v1882 = vmul.f32 %v1790, %v1790
        %v1883 = vmul.f32 %v1793, %v1793
        %v1884 = vmul.f32 %v1798, %v1798
        %v1885 = vmul.f32 %v1801, %v1801
        %v1886 = vmul.f32 %v1806, %v1806
        %v1887 = vmul.f32 %v1809, %v1809
        %v1888 = vmul.f32 %v1814, %v1814
        %v1889 = vmul.f32 %v1817, %v1817
        %v1890 = vadd.f32 %v1858, %v1859
        %v1891 = vadd.f32 %v1890, %v1860
        %v1892 = vadd.f32 %v1891, %v1861
        %v1893 = vadd.f32 %v1892, %v1862
        %v1894 = vadd.f32 %v1893, %v1863
        %v1895 = vadd.f32 %v1894, %v1864
        %v1896 = vadd.f32 %v1895, %v1865
        %v1897 = vadd.f32 %v1896, %v1866
        %v1898 = vadd.f32 %v1897, %v1867
        %v1899 = vadd.f32 %v1898, %v1868
        %v1900 = vadd.f32 %v1899, %v1869
        %v1901 = vadd.f32 %v1900, %v1870
        %v1902 = vadd.f32 %v1901, %v1871
        %v1903 = vadd.f32 %v1902, %v1872
        %v1904 = vadd.f32 %v1903, %v1873
        %v1905 = vadd.f32 %v1904, %v1874
        %v1906 = vadd.f32 %v1905, %v1875
        %v1907 = vadd.f32 %v1906, %v1876
        %v1908 = vadd.f32 %v1907, %v1877
        %v1909 = vadd.f32 %v1908, %v1878
        %v1910 = vadd.f32 %v1909, %v1879
        %v1911 = vadd.f32 %v1910, %v1880
        %v1912 = vadd.f32 %v1911, %v1881
        %v1913 = vadd.f32 %v1912, %v1882
        %v1914 = vadd.f32 %v1913, %v1883
        %v1915 = vadd.f32 %v1914, %v1884
        %v1916 = vadd.f32 %v1915, %v1885
        %v1917 = vadd.f32 %v1916, %v1886
        %v1918 = vadd.f32 %v1917, %v1887
        %v1919 = vadd.f32 %v1918, %v1888
        %v1920 = vadd.f32 %v1919, %v1889
        %v1921 = vrot.slane %v1920, 4
        %v1922 = vadd.f32 %v1920, %v1921
        %v1923 = vrot.slane %v1922, 2
        %v1924 = vadd.f32 %v1922, %v1923
        %v1925 = vrot.slane %v1924, 1
        %v1926 = vadd.f32 %v1924, %v1925
        %1927 = vst [vmem:[%s214 + $0x1] sm:$0x1] %v1926
        %v1928 = vpack.c.bf16 %v1697, %v1694
        %v1929 = vpack.c.bf16 %v1705, %v1702
        %v1930 = vpack.c.bf16 %v1713, %v1710
        %v1931 = vpack.c.bf16 %v1721, %v1718
        %v1932 = vpack.c.bf16 %v1729, %v1726
        %v1933 = vpack.c.bf16 %v1737, %v1734
        %v1934 = vpack.c.bf16 %v1745, %v1742
        %v1935 = vpack.c.bf16 %v1753, %v1750
        %v1936 = vpack.c.bf16 %v1761, %v1758
        %v1937 = vpack.c.bf16 %v1769, %v1766
        %v1938 = vpack.c.bf16 %v1777, %v1774
        %v1939 = vpack.c.bf16 %v1785, %v1782
        %v1940 = vpack.c.bf16 %v1793, %v1790
        %v1941 = vpack.c.bf16 %v1801, %v1798
        %v1942 = vpack.c.bf16 %v1809, %v1806
        %v1943 = vpack.c.bf16 %v1817, %v1814
        %v1960 = vunpack.c.l.b16 %v1928
        %v1961 = vunpack.c.h.b16 %v1928
        %v1962 = vunpack.c.l.b16 %v1929
        %v1963 = vunpack.c.h.b16 %v1929
        %v1964 = vunpack.c.l.b16 %v1930
        %v1965 = vunpack.c.h.b16 %v1930
        %v1966 = vunpack.c.l.b16 %v1931
        %v1967 = vunpack.c.h.b16 %v1931
        %v1968 = vunpack.c.l.b16 %v1932
        %v1969 = vunpack.c.h.b16 %v1932
        %v1970 = vunpack.c.l.b16 %v1933
        %v1971 = vunpack.c.h.b16 %v1933
        %v1972 = vunpack.c.l.b16 %v1934
        %v1973 = vunpack.c.h.b16 %v1934
        %v1974 = vunpack.c.l.b16 %v1935
        %v1975 = vunpack.c.h.b16 %v1935
        %v1976 = vunpack.c.l.b16 %v1936
        %v1977 = vunpack.c.h.b16 %v1936
        %v1978 = vunpack.c.l.b16 %v1937
        %v1979 = vunpack.c.h.b16 %v1937
        %v1980 = vunpack.c.l.b16 %v1938
        %v1981 = vunpack.c.h.b16 %v1938
        %v1982 = vunpack.c.l.b16 %v1939
        %v1983 = vunpack.c.h.b16 %v1939
        %v1984 = vunpack.c.l.b16 %v1940
        %v1985 = vunpack.c.h.b16 %v1940
        %v1986 = vunpack.c.l.b16 %v1941
        %v1987 = vunpack.c.h.b16 %v1941
        %v1988 = vunpack.c.l.b16 %v1942
        %v1989 = vunpack.c.h.b16 %v1942
        %v1990 = vunpack.c.l.b16 %v1943
        %v1991 = vunpack.c.h.b16 %v1943
        %v1992 = vpack.c.b16 %v1960, %v1960
        %v1993 = vpack.c.b16 %v1961, %v1961
        %v1994 = vpack.c.b16 %v1962, %v1962
        %v1995 = vpack.c.b16 %v1963, %v1963
        %v1996 = vpack.c.b16 %v1964, %v1964
        %v1997 = vpack.c.b16 %v1965, %v1965
        %v1998 = vpack.c.b16 %v1966, %v1966
        %v1999 = vpack.c.b16 %v1967, %v1967
        %v2000 = vpack.c.b16 %v1968, %v1968
        %v2001 = vpack.c.b16 %v1969, %v1969
        %v2002 = vpack.c.b16 %v1970, %v1970
        %v2003 = vpack.c.b16 %v1971, %v1971
        %v2004 = vpack.c.b16 %v1972, %v1972
        %v2005 = vpack.c.b16 %v1973, %v1973
        %v2006 = vpack.c.b16 %v1974, %v1974
        %v2007 = vpack.c.b16 %v1975, %v1975
        %v2008 = vpack.c.b16 %v1976, %v1976
        %v2009 = vpack.c.b16 %v1977, %v1977
        %v2010 = vpack.c.b16 %v1978, %v1978
        %v2011 = vpack.c.b16 %v1979, %v1979
        %v2012 = vpack.c.b16 %v1980, %v1980
        %v2013 = vpack.c.b16 %v1981, %v1981
        %v2014 = vpack.c.b16 %v1982, %v1982
        %v2015 = vpack.c.b16 %v1983, %v1983
        %v2016 = vpack.c.b16 %v1984, %v1984
        %v2017 = vpack.c.b16 %v1985, %v1985
        %v2018 = vpack.c.b16 %v1986, %v1986
        %v2019 = vpack.c.b16 %v1987, %v1987
        %v2020 = vpack.c.b16 %v1988, %v1988
        %v2021 = vpack.c.b16 %v1989, %v1989
        %v2022 = vpack.c.b16 %v1990, %v1990
        %v2023 = vpack.c.b16 %v1991, %v1991
        %2056 = vst [vmem:[%s207] sm:$0xf] %v1992
        %2057 = vst [vmem:[%s207 + $0x4] sm:$0xf] %v1993
        %2058 = vst [vmem:[%s207 + $0x8] sm:$0xf] %v1994
        %2059 = vst [vmem:[%s207 + $0xc] sm:$0xf] %v1995
        %2060 = vst [vmem:[%s207 + $0x10] sm:$0xf] %v1996
        %2061 = vst [vmem:[%s207 + $0x14] sm:$0xf] %v1997
        %2062 = vst [vmem:[%s207 + $0x18] sm:$0xf] %v1998
        %2063 = vst [vmem:[%s207 + $0x1c] sm:$0xf] %v1999
        %2064 = vst [vmem:[%s207 + $0x20] sm:$0xf] %v2000
        %2065 = vst [vmem:[%s207 + $0x24] sm:$0xf] %v2001
        %2066 = vst [vmem:[%s207 + $0x28] sm:$0xf] %v2002
        %2067 = vst [vmem:[%s207 + $0x2c] sm:$0xf] %v2003
        %2068 = vst [vmem:[%s207 + $0x30] sm:$0xf] %v2004
        %2069 = vst [vmem:[%s207 + $0x34] sm:$0xf] %v2005
        %2070 = vst [vmem:[%s207 + $0x38] sm:$0xf] %v2006
        %2071 = vst [vmem:[%s207 + $0x3c] sm:$0xf] %v2007
        %2072 = vst [vmem:[%s207 + $0x40] sm:$0xf] %v2008
        %2073 = vst [vmem:[%s207 + $0x44] sm:$0xf] %v2009
        %2074 = vst [vmem:[%s207 + $0x48] sm:$0xf] %v2010
        %2075 = vst [vmem:[%s207 + $0x4c] sm:$0xf] %v2011
        %2076 = vst [vmem:[%s207 + $0x50] sm:$0xf] %v2012
        %2077 = vst [vmem:[%s207 + $0x54] sm:$0xf] %v2013
        %2078 = vst [vmem:[%s207 + $0x58] sm:$0xf] %v2014
        %2079 = vst [vmem:[%s207 + $0x5c] sm:$0xf] %v2015
        %2080 = vst [vmem:[%s207 + $0x60] sm:$0xf] %v2016
        %2081 = vst [vmem:[%s207 + $0x64] sm:$0xf] %v2017
        %2082 = vst [vmem:[%s207 + $0x68] sm:$0xf] %v2018
        %2083 = vst [vmem:[%s207 + $0x6c] sm:$0xf] %v2019
        %2084 = vst [vmem:[%s207 + $0x70] sm:$0xf] %v2020
        %2085 = vst [vmem:[%s207 + $0x74] sm:$0xf] %v2021
        %2086 = vst [vmem:[%s207 + $0x78] sm:$0xf] %v2022
        %2087 = vst [vmem:[%s207 + $0x7c] sm:$0xf] %v2023
        %s2088 = sand.u32 %s80, 1
        %s2089 = scalar_lea.sflag [#allocation4], %s2088
        %s2090 = sand.u32 %s80, 1
        %s2091 = smul.addr %s2090, 128
        %s2092 = scalar_lea.vmem [#allocation7], %s2091
        %s2093 = sand.u32 %s106, 1
        %s2094 = scalar_lea.sflag [#allocation9], %s2093
        %s2095 = sand.u32 %s106, 1
        %s2096 = smul.addr %s2095, 2
        %s2097 = scalar_lea.vmem [#allocation8], %s2096
        // Predicated region
        $region37: #{conv_block_forward.6} parent=27 // pred_check
          %p2098 = pneg %p90
        $region38: #{conv_block_forward.6} parent=27 // pred_check_branch
          %2100 = sbr.rel (%p2098) target = $region40
        $region39: #{conv_block_forward.6} parent=27 // pred_region
          %s2102 = ssub.s32 2048, 2048
          %2103 = vsyncadd %s2089, %s2102
          %s2104 = smul.addr %s25, 32
          %s2105 = smul.addr %s2104, 64
          %s2106 = scalar_lea.hbm %s2, %s2105
          %s2107 = sshll.u32 %s2092, 4
          %s2108 = int_to_ptr.vmem [resolvable:$true] %s2107
          %2113 = dma.vmem_to_hbm [thread:$0]  %s2108, 2048, %s2106, %s2089, 64, 64, 4
        $region40: #{conv_block_forward.6} parent=27 // pred_fallthru
          _
        // Predicated region
        $region41: #{conv_block_forward.6} parent=27 // pred_check
          %p2114 = pneg %p116
        $region42: #{conv_block_forward.6} parent=27 // pred_check_branch
          %2116 = sbr.rel (%p2114) target = $region44
        $region43: #{conv_block_forward.6} parent=27 // pred_region
          %s2118 = ssub.s32 32, 32
          %2119 = vsyncadd %s2094, %s2118
          %s2120 = smul.addr %s25, 32
          %s2121 = scalar_lea.hbm %s3, %s2120
          %s2123 = sshll.u32 %s2097, 4
          %s2124 = int_to_ptr.vmem [resolvable:$true] %s2123
          %2126 = dma.vmem_to_hbm [thread:$0]  %s2124, 32, %s2121, %s2094
        $region44: #{conv_block_forward.6} parent=27 // pred_fallthru
          _
      $region28: #{conv_block_forward.6} parent=5 // pred_fallthru
        _
      %p2127 = scmp.le.s32.totalorder 2, %s20
      // Predicated region
      $region45: #{conv_block_forward.6} parent=5 // pred_check
        %p2128 = pneg %p2127
      $region46: #{conv_block_forward.6} parent=5 // pred_check_branch
        %2130 = sbr.rel (%p2128) target = $region48
      $region47: #{conv_block_forward.6} parent=5 // pred_region
        %s2131 = ssub.s32 %s20, 2
        // Predicated region
        $region49: #{conv_block_forward.6} parent=47 // pred_check
          %p2132 = pneg %p96
        $region50: #{conv_block_forward.6} parent=47 // pred_check_branch
          %2134 = sbr.rel (%p2132) target = $region52
        $region51: #{conv_block_forward.6} parent=47 // pred_region
          %s2135 = sand.u32 %s81, 1
          %s2136 = scalar_lea.sflag [#allocation4], %s2135
          %s2137 = sand.u32 %s81, 1
          %s2138 = smul.addr %s2137, 128
          %s2139 = scalar_lea.vmem [#allocation7], %s2138
          %2140 = dma.done %s2136, 2048
        $region52: #{conv_block_forward.6} parent=47 // pred_fallthru
          _
        // Predicated region
        $region53: #{conv_block_forward.6} parent=47 // pred_check
          %p2141 = pneg %p122
        $region54: #{conv_block_forward.6} parent=47 // pred_check_branch
          %2143 = sbr.rel (%p2141) target = $region56
        $region55: #{conv_block_forward.6} parent=47 // pred_region
          %s2144 = sand.u32 %s107, 1
          %s2145 = scalar_lea.sflag [#allocation9], %s2144
          %s2146 = sand.u32 %s107, 1
          %s2147 = smul.addr %s2146, 2
          %s2148 = scalar_lea.vmem [#allocation8], %s2147
          %2149 = dma.done %s2145, 32
        $region56: #{conv_block_forward.6} parent=47 // pred_fallthru
          _
      $region48: #{conv_block_forward.6} parent=5 // pred_fallthru
        _
    $region6: #{conv_block_forward.6} parent=1 // loop_footer
      %s24 = sadd.s32 1, %s20
    $region7: #{conv_block_forward.6} parent=1 // loop_footer_branch
      %19 = sbr.rel target = $region3
    $region8: #{conv_block_forward.6} parent=1 // loop_exit
      _
    %2150 = vsyncpa [#allocation3], 1
    %s2151 = scalar_lea.sflag [#allocation3], 1
    %2152 = vsyncpa %s2151, 1
    %2153 = vsyncpa [#allocation6], 1
    %2154 = vsyncpa [#allocation4], 1
    %s2155 = scalar_lea.sflag [#allocation4], 1
    %2156 = vsyncpa %s2155, 1
    %2157 = vsyncpa [#allocation9], 1
    %s2158 = scalar_lea.sflag [#allocation9], 1
    %2159 = vsyncpa %s2158, 1

</llo_original>
